<compile_context>
chip_gen: v7x
topology: tpu7x:2x2x1
jax: 0.10.0
libtpu: 0.0.40
codegen_flags: <defaults>
</compile_context>

<pallas_src>
import functools
import math

import jax
import jax.numpy as jnp
from jax.experimental import pallas as pl
from jax.experimental.pallas import tpu as pltpu


def _round_up(a, b):
    return (a + b - 1) // b * b


def _default_block():
    """256 fills the 2x256^2 MXU on v6e/v7x; 128 matches v5e's 4x128^2 MXU."""
    try:
        kind = jax.devices()[0].device_kind.lower()
    except Exception:
        return 256
    if ("v5e" in kind) or ("v5 lite" in kind) or ("v5litepod" in kind):
        return 128
    return 256


def _pick_vmem_limit(est_bytes):
    """Scoped-VMEM limit: generous headroom over the estimate, clamped to chip capacity."""
    try:
        cap = int(pltpu.get_tpu_info().vmem_capacity_bytes)
    except Exception:
        cap = 64 * 1024 * 1024
    want = max(int(1.5 * est_bytes) + (8 << 20), 32 << 20)
    return int(min(want, int(cap * 0.9)))


def _split_heads(x2d, n_head, d_attn):
    """(tile, H*D) -> (H, tile, D) via static lane slices stacked on a new leading axis."""
    return jnp.stack([x2d[:, h * d_attn:(h + 1) * d_attn] for h in range(n_head)], axis=0)


def _merge_heads(x3d, n_head):
    """(H, tile, D) -> (tile, H*D) via lane concatenation."""
    return jnp.concatenate([x3d[h] for h in range(n_head)], axis=-1)


def _flash_attn_kernel(*refs, n_head, d_attn, sm_scale, separate_v_src):
    """Grid = (batch, triangular step).  Step s covers (qi, ki) = (qi_tab[s], ki_tab[s]),
    with ki <= qi always (no wasted above-diagonal steps)."""
    qi_tab, ki_tab = refs[0], refs[1]
    i = 2
    xqk_ref = refs[i]; i += 1                  # (1, tile, E) source tile qi (Q and K source)
    if separate_v_src:
        xv_ref = refs[i]; i += 1               # (1, tile, E) V source tile qi (PPE path)
    else:
        xv_ref = xqk_ref
    (wq_ref, wk_ref, wv_ref, wp_ref,
     bq_ref, bk_ref, bv_ref, bp_ref) = refs[i:i + 8]
    i += 8
    o_ref = refs[i]; i += 1
    q_heads, k_cache, v_cache, acc_sc, m_sc, l_sc = refs[i:i + 6]

    step = pl.program_id(1)
    qi = qi_tab[step]
    ki = ki_tab[step]
    neg_big = jnp.float32(-1e30)

    @pl.when(ki == 0)
    def _init():
        # Q projection once per (b, qi); fold 1/sqrt(d) into Q.
        q = jnp.dot(xqk_ref[0], wq_ref[...],
                    preferred_element_type=jnp.float32) + bq_ref[...]        # (T, H*D) f32
        q = q * jnp.float32(sm_scale)
        q_heads[...] = _split_heads(q, n_head, d_attn).astype(q_heads.dtype)
        m_sc[...] = jnp.full(m_sc.shape, neg_big, jnp.float32)
        l_sc[...] = jnp.zeros(l_sc.shape, jnp.float32)
        acc_sc[...] = jnp.zeros(acc_sc.shape, jnp.float32)

    def _online_update(kh, vh, masked):
        qh = q_heads[...]                                                    # (H, T, D)
        s = jnp.einsum("hqd,hkd->hqk", qh, kh,
                       preferred_element_type=jnp.float32)                   # (H, T, T) f32
        if masked:
            # Diagonal tile: local (within-tile) causal mask; also masks padded key columns,
            # which only exist in the last KV tile and are only visited as a diagonal tile.
            row = jax.lax.broadcasted_iota(jnp.int32, s.shape, 1)
            col = jax.lax.broadcasted_iota(jnp.int32, s.shape, 2)
            s = jnp.where(col <= row, s, neg_big)
        m_prev = m_sc[...]                                                   # (H, T, 1)
        m_next = jnp.maximum(m_prev, jnp.max(s, axis=-1, keepdims=True))
        alpha = jnp.exp(m_prev - m_next)
        probs = jnp.exp(s - m_next)
        l_sc[...] = alpha * l_sc[...] + jnp.sum(probs, axis=-1, keepdims=True)
        acc_sc[...] = alpha * acc_sc[...] + jnp.einsum(
            "hqk,hkd->hqd", probs.astype(vh.dtype), vh,
            preferred_element_type=jnp.float32)
        m_sc[...] = m_next

    @pl.when(ki < qi)
    def _off_diagonal():
        # Fully unmasked tile; K/V heads come straight from the persistent VMEM cache.
        _online_update(k_cache[ki], v_cache[ki], masked=False)

    @pl.when(ki == qi)
    def _diagonal_and_finalize():
        # First (and only) visit of this KV tile: project K/V once, cache, use now.
        k = jnp.dot(xqk_ref[0], wk_ref[...],
                    preferred_element_type=jnp.float32) + bk_ref[...]        # (T, H*D) f32
        v = jnp.dot(xv_ref[0], wv_ref[...],
                    preferred_element_type=jnp.float32) + bv_ref[...]
        kh = _split_heads(k, n_head, d_attn).astype(k_cache.dtype)
        vh = _split_heads(v, n_head, d_attn).astype(v_cache.dtype)
        k_cache[ki] = kh
        v_cache[ki] = vh
        _online_update(kh, vh, masked=True)

        # ki == qi is the last contributing step for this query tile: finalize + project out.
        inv_l = pl.reciprocal(l_sc[...], approx=True)                        # (H, T, 1)
        acc = acc_sc[...] * inv_l                                            # (H, T, D) f32
        y = _merge_heads(acc, n_head).astype(wp_ref.dtype)                   # (T, H*D)
        out = jnp.dot(y, wp_ref[...],
                      preferred_element_type=jnp.float32) + bp_ref[...]      # (T, E) f32
        o_ref[0] = out.astype(o_ref.dtype)


def causal_attention(x, e, p, params, *, n_head, d_attn, use_ppe_encoding=False,
                     block=None, compute_dtype=None):
    """Pallas-backed forward pass equivalent to CausalAttention.forward (eval mode).

    block: tile size along the sequence (default: 256 on v6e/v7x, 128 on v5e).
    compute_dtype: MXU operand dtype (e.g. jnp.bfloat16); accumulation / softmax stats stay f32.
    """
    B, S, E = x.shape
    HD = n_head * d_attn
    out_dtype = x.dtype
    cdt = jnp.dtype(compute_dtype) if compute_dtype is not None else jnp.dtype(x.dtype)

    # Source selection mirrors the PyTorch forward; Q and K always share a source tensor.
    if use_ppe_encoding:
        src_qk, src_v = p, e
        separate_v_src = True
    else:
        src_qk, src_v = x, x
        separate_v_src = False        # single activation stream: no duplicate DMA / VMEM

    if block is None:
        block = _default_block()
    tile = _round_up(min(block, _round_up(S, 8)), 8)
    S_pad = _round_up(S, tile)
    n_tiles = S_pad // tile

    def _prep(a):
        if S_pad != S:
            a = jnp.pad(a, ((0, 0), (0, S_pad - S), (0, 0)))
        return a.astype(cdt)

    inputs = [_prep(src_qk)]
    if separate_v_src:
        inputs.append(_prep(src_v))

    # nn.Linear computes x @ W.T + b -> pre-transpose weights to (in, out); biases stay f32.
    wq_t = params["wq"].T.astype(cdt)   # (E, HD)
    wk_t = params["wk"].T.astype(cdt)
    wv_t = params["wv"].T.astype(cdt)
    wp_t = params["wp"].T.astype(cdt)   # (HD, E)
    bq = params["bq"].reshape(1, HD).astype(jnp.float32)
    bk = params["bk"].reshape(1, HD).astype(jnp.float32)
    bv = params["bv"].reshape(1, HD).astype(jnp.float32)
    bp = params["bp"].reshape(1, E).astype(jnp.float32)
    inputs += [wq_t, wk_t, wv_t, wp_t, bq, bk, bv, bp]

    # Triangular step tables: one grid step per contributing (qi, ki <= qi) pair.
    qi_list, ki_list = [], []
    for q_i in range(n_tiles):
        for k_i in range(q_i + 1):
            qi_list.append(q_i)
            ki_list.append(k_i)
    qi_tab = jnp.asarray(qi_list, dtype=jnp.int32)
    ki_tab = jnp.asarray(ki_list, dtype=jnp.int32)
    n_steps = len(qi_list)

    kernel = functools.partial(_flash_attn_kernel, n_head=n_head, d_attn=d_attn,
                               sm_scale=1.0 / math.sqrt(d_attn),
                               separate_v_src=separate_v_src)

    # Activation / output tiles depend only on qi -> one DMA per (b, q-row).
    src_map = lambda b, s, qi_t, ki_t: (b, qi_t[s], 0)
    act_spec = pl.BlockSpec((1, tile, E), src_map)

    def _const_spec(shape):
        idx = lambda b, s, qi_t, ki_t: (0, 0)
        try:
            # Constant index_map -> single-buffer to halve weight VMEM residency (v7x).
            return pl.BlockSpec(shape, idx, pipeline_mode=pl.Buffered(1))
        except Exception:  # older JAX without pipeline_mode / Buffered
            return pl.BlockSpec(shape, idx)

    in_specs = [act_spec]
    if separate_v_src:
        in_specs.append(pl.BlockSpec((1, tile, E), src_map))
    in_specs += [
        _const_spec((E, HD)),    # Wq^T
        _const_spec((E, HD)),    # Wk^T
        _const_spec((E, HD)),    # Wv^T
        _const_spec((HD, E)),    # Wp^T
        _const_spec((1, HD)),    # bq
        _const_spec((1, HD)),    # bk
        _const_spec((1, HD)),    # bv
        _const_spec((1, E)),     # bp
    ]

    scratch_shapes = [
        pltpu.VMEM((n_head, tile, d_attn), cdt),             # Q heads (pre-scaled), per q-row
        pltpu.VMEM((n_tiles, n_head, tile, d_attn), cdt),    # K head cache (per kv tile)
        pltpu.VMEM((n_tiles, n_head, tile, d_attn), cdt),    # V head cache (per kv tile)
        pltpu.VMEM((n_head, tile, d_attn), jnp.float32),     # acc
        pltpu.VMEM((n_head, tile, 1), jnp.float32),          # m (running max)
        pltpu.VMEM((n_head, tile, 1), jnp.float32),          # l (running sum)
    ]

    csize = jnp.dtype(cdt).itemsize
    osize = jnp.dtype(out_dtype).itemsize
    n_src = 2 if separate_v_src else 1
    est_vmem = int(
        2 * n_tiles * HD * tile * csize          # persistent K/V head caches
        + HD * tile * (csize + 4)                # q_heads + f32 accumulator
        + 2 * n_head * tile * 4                  # m / l statistics
        + 3 * n_head * tile * tile * 4           # in-flight f32 score/prob temporaries
        + 2 * n_src * tile * E * csize           # double-buffered activation tiles
        + 2 * tile * E * osize                   # double-buffered output tile
        + 4 * E * HD * csize + (3 * HD + E) * 4  # single-buffered weights + biases
    )
    vmem_limit = _pick_vmem_limit(est_vmem)

    flops = int(8 * B * S_pad * E * HD + 2 * B * S_pad * S_pad * HD)
    transcendentals = int(B * n_head * S_pad * S_pad // 2)
    bytes_accessed = int(csize * (n_src * B * S_pad * E + 4 * E * HD) + osize * B * S_pad * E)

    out = pl.pallas_call(
        kernel,
        out_shape=jax.ShapeDtypeStruct((B, S_pad, E), out_dtype),
        grid_spec=pltpu.PrefetchScalarGridSpec(
            num_scalar_prefetch=2,
            grid=(B, n_steps),
            in_specs=in_specs,
            out_specs=pl.BlockSpec((1, tile, E), lambda b, s, qi_t, ki_t: (b, qi_t[s], 0)),
            scratch_shapes=scratch_shapes,
        ),
        compiler_params=pltpu.CompilerParams(
            # Step axis is "arbitrary": the K/V cache creates cross-step dependences within
            # a batch; batches are fully independent -> megacore parallelism over batch.
            dimension_semantics=("parallel", "arbitrary"),
            vmem_limit_bytes=vmem_limit,
        ),
        cost_estimate=pl.CostEstimate(flops=flops,
                                      transcendentals=transcendentals,
                                      bytes_accessed=bytes_accessed),
    )(qi_tab, ki_tab, *inputs)

    return out[:, :S, :]


def _reference(x, e, p, params, *, n_head, d_attn, use_ppe_encoding=False):
    """Plain-JAX reference mirroring the PyTorch forward (eval mode, dropout=0)."""
    B, S, E = x.shape
    src_qk = p if use_ppe_encoding else x
    src_v = e if use_ppe_encoding else x

    def lin(a, w, b):
        return a @ w.T + b

    q = lin(src_qk, params["wq"], params["bq"]).reshape(B, S, n_head, d_attn).transpose(0, 2, 1, 3)
    k = lin(src_qk, params["wk"], params["bk"]).reshape(B, S, n_head, d_attn).transpose(0, 2, 1, 3)
    v = lin(src_v, params["wv"], params["bv"]).reshape(B, S, n_head, d_attn).transpose(0, 2, 1, 3)

    scale = 1.0 / math.sqrt(d_attn)
    s = jnp.einsum("bhqd,bhkd->bhqk", q, k) * scale
    mask = jnp.tril(jnp.ones((S, S), dtype=bool))
    s = jnp.where(mask, s, -jnp.inf)
    a = jax.nn.softmax(s, axis=-1)
    y = jnp.einsum("bhqk,bhkd->bhqd", a, v)
    y = y.transpose(0, 2, 1, 3).reshape(B, S, n_head * d_attn)
    return lin(y, params["wp"], params["bp"])


def _init_params(key, d_embed, n_head, d_attn):
    """Deterministic nn.Linear-style init: U(-1/sqrt(fan_in), 1/sqrt(fan_in))."""
    HD = n_head * d_attn
    ks = jax.random.split(key, 8)
    lim_e = 1.0 / math.sqrt(d_embed)
    lim_h = 1.0 / math.sqrt(HD)
    u = lambda k, shape, lim: jax.random.uniform(k, shape, jnp.float32, -lim, lim)
    return {
        "wq": u(ks[0], (HD, d_embed), lim_e), "bq": u(ks[1], (HD,), lim_e),
        "wk": u(ks[2], (HD, d_embed), lim_e), "bk": u(ks[3], (HD,), lim_e),
        "wv": u(ks[4], (HD, d_embed), lim_e), "bv": u(ks[5], (HD,), lim_e),
        "wp": u(ks[6], (d_embed, HD), lim_h), "bp": u(ks[7], (d_embed,), lim_h),
    }


if __name__ == "__main__":
    # Small config that still exercises the triangular grid, the KV cache (off-diagonal
    # reuse), padding and both source-wiring paths.
    B, S, d_embed, n_head, d_attn = 2, 512, 128, 2, 64

    key = jax.random.PRNGKey(0)
    kx, ke, kp, kw = jax.random.split(key, 4)
    x = jax.random.normal(kx, (B, S, d_embed), jnp.float32)
    e = jax.random.normal(ke, (B, S, d_embed), jnp.float32)
    p = jax.random.normal(kp, (B, S, d_embed), jnp.float32)
    params = _init_params(kw, d_embed, n_head, d_attn)

    ref = _reference(x, e, p, params, n_head=n_head, d_attn=d_attn, use_ppe_encoding=False)

    # 1) f32, 128-tiles: 4x4 tile triangle -> exercises cache reuse + unmasked off-diag path.
    out = causal_attention(x, e, p, params, n_head=n_head, d_attn=d_attn,
                           use_ppe_encoding=False, block=128)
    out = jax.block_until_ready(out)
    assert out.shape == (B, S, d_embed)
    assert jnp.allclose(out, ref, atol=1e-2, rtol=1e-2), "f32/128 kernel mismatch vs reference"

    # 2) f32, chip-default tile (256 on v6e/v7x, 128 on v5e).
    out2 = jax.block_until_ready(
        causal_attention(x, e, p, params, n_head=n_head, d_attn=d_attn, use_ppe_encoding=False))
    assert jnp.allclose(out2, ref, atol=1e-2, rtol=1e-2), "f32/default-tile kernel mismatch"

    # 3) bf16 MXU path (f32 accumulation + f32 softmax stats).
    out3 = jax.block_until_ready(
        causal_attention(x, e, p, params, n_head=n_head, d_attn=d_attn, use_ppe_encoding=False,
                         compute_dtype=jnp.bfloat16))
    assert jnp.allclose(out3, ref, atol=5e-2, rtol=5e-2), "bf16 kernel mismatch vs reference"

    # 4) PPE path (separate V source) with a non-tile-multiple sequence length (padding path).
    S2 = 320
    x2, e2, p2 = x[:, :S2], e[:, :S2], p[:, :S2]
    ref_ppe = _reference(x2, e2, p2, params, n_head=n_head, d_attn=d_attn, use_ppe_encoding=True)
    out4 = jax.block_until_ready(
        causal_attention(x2, e2, p2, params, n_head=n_head, d_attn=d_attn,
                         use_ppe_encoding=True, block=128))
    assert out4.shape == (B, S2, d_embed)
    assert jnp.allclose(out4, ref_ppe, atol=1e-2, rtol=1e-2), "ppe kernel mismatch vs reference"

    print("KERNEL_OK")
</pallas_src>

<mosaic_0001>
module attributes {stable_mosaic.version = 11 : i64} {
  func.func @_flash_attn_kernel(%arg0: i32, %arg1: i32, %arg2: memref<10xi32, #tpu.memory_space<smem>>, %arg3: memref<10xi32, #tpu.memory_space<smem>>, %arg4: memref<1x128x128xf32, #tpu.memory_space<vmem>>, %arg5: memref<128x128xf32, #tpu.memory_space<vmem>>, %arg6: memref<128x128xf32, #tpu.memory_space<vmem>>, %arg7: memref<128x128xf32, #tpu.memory_space<vmem>>, %arg8: memref<128x128xf32, #tpu.memory_space<vmem>>, %arg9: memref<1x128xf32, #tpu.memory_space<vmem>>, %arg10: memref<1x128xf32, #tpu.memory_space<vmem>>, %arg11: memref<1x128xf32, #tpu.memory_space<vmem>>, %arg12: memref<1x128xf32, #tpu.memory_space<vmem>>, %arg13: memref<1x128x128xf32, #tpu.memory_space<vmem>>, %arg14: memref<2x128x64xf32, #tpu.memory_space<vmem>>, %arg15: memref<4x2x128x64xf32, #tpu.memory_space<vmem>>, %arg16: memref<4x2x128x64xf32, #tpu.memory_space<vmem>>, %arg17: memref<2x128x64xf32, #tpu.memory_space<vmem>>, %arg18: memref<2x128x1xf32, #tpu.memory_space<vmem>>, %arg19: memref<2x128x1xf32, #tpu.memory_space<vmem>>) attributes {dimension_semantics = [#tpu.dimension_semantics<parallel>, #tpu.dimension_semantics<arbitrary>], iteration_bounds = array<i64: 2, 10>, scalar_prefetch = 2 : i64, scratch_operands = 6 : i64, tpu.core_type = #tpu.core_type<tc>, window_params = [{transform_indices = @transform_0, window_bounds = array<i64: 1, 128, 128>}, {pipeline_mode = #tpu.pipeline_mode<synchronous>, transform_indices = @transform_1, window_bounds = array<i64: 128, 128>}, {pipeline_mode = #tpu.pipeline_mode<synchronous>, transform_indices = @transform_2, window_bounds = array<i64: 128, 128>}, {pipeline_mode = #tpu.pipeline_mode<synchronous>, transform_indices = @transform_3, window_bounds = array<i64: 128, 128>}, {pipeline_mode = #tpu.pipeline_mode<synchronous>, transform_indices = @transform_4, window_bounds = array<i64: 128, 128>}, {pipeline_mode = #tpu.pipeline_mode<synchronous>, transform_indices = @transform_5, window_bounds = array<i64: 1, 128>}, {pipeline_mode = #tpu.pipeline_mode<synchronous>, transform_indices = @transform_6, window_bounds = array<i64: 1, 128>}, {pipeline_mode = #tpu.pipeline_mode<synchronous>, transform_indices = @transform_7, window_bounds = array<i64: 1, 128>}, {pipeline_mode = #tpu.pipeline_mode<synchronous>, transform_indices = @transform_8, window_bounds = array<i64: 1, 128>}, {transform_indices = @transform_9, window_bounds = array<i64: 1, 128, 128>}]} {
    %0 = arith.index_cast %arg1 : i32 to index
    %1 = memref.load %arg2[%0] : memref<10xi32, #tpu.memory_space<smem>>
    %2 = arith.index_cast %arg1 : i32 to index
    %3 = memref.load %arg3[%2] : memref<10xi32, #tpu.memory_space<smem>>
    %c0_i32 = arith.constant 0 : i32
    %4 = arith.cmpi eq, %3, %c0_i32 : i32
    %5 = arith.extui %4 : i1 to i32
    %cst = arith.constant -1.000000e+30 : f32
    %c0_i32_0 = arith.constant 0 : i32
    %6 = arith.cmpi ne, %5, %c0_i32_0 : i32
    scf.if %6 {
      %c0 = arith.constant 0 : index
      %c0_4 = arith.constant 0 : index
      %c0_5 = arith.constant 0 : index
      %13 = vector.load %arg4[%c0, %c0_4, %c0_5] : memref<1x128x128xf32, #tpu.memory_space<vmem>>, vector<1x128x128xf32>
      %14 = vector.shape_cast %13 : vector<1x128x128xf32> to vector<128x128xf32>
      %c0_6 = arith.constant 0 : index
      %c0_7 = arith.constant 0 : index
      %15 = vector.load %arg5[%c0_6, %c0_7] : memref<128x128xf32, #tpu.memory_space<vmem>>, vector<128x128xf32>
      %cst_8 = arith.constant dense<0.000000e+00> : vector<128x128xf32>
      %16 = tpu.matmul %14, %15, %cst_8 {dimension_numbers = #tpu.dot_dimension_numbers<[1], [0], [0], [1], [0, 0, 1, 1], [], []>} : vector<128x128xf32>, vector<128x128xf32>, vector<128x128xf32> -> vector<128x128xf32>
      %c0_9 = arith.constant 0 : index
      %c0_10 = arith.constant 0 : index
      %17 = vector.load %arg9[%c0_9, %c0_10] : memref<1x128xf32, #tpu.memory_space<vmem>>, vector<1x128xf32>
      %18 = vector.broadcast %17 : vector<1x128xf32> to vector<128x128xf32>
      %19 = arith.addf %16, %18 : vector<128x128xf32>
      %cst_11 = arith.constant 1.250000e-01 : f32
      %20 = vector.broadcast %cst_11 : f32 to vector<128x128xf32>
      %21 = arith.mulf %19, %20 : vector<128x128xf32>
      %22 = vector.extract_strided_slice %21 {offsets = [0, 0], sizes = [128, 64], strides = [1, 1]} : vector<128x128xf32> to vector<128x64xf32>
      %23 = vector.extract_strided_slice %21 {offsets = [0, 64], sizes = [128, 64], strides = [1, 1]} : vector<128x128xf32> to vector<128x64xf32>
      %24 = vector.shape_cast %22 : vector<128x64xf32> to vector<1x128x64xf32>
      %25 = vector.shape_cast %23 : vector<128x64xf32> to vector<1x128x64xf32>
      %26 = tpu.concatenate %24, %25 in 0 : vector<1x128x64xf32>, vector<1x128x64xf32> -> vector<2x128x64xf32>
      %c0_12 = arith.constant 0 : index
      %c0_13 = arith.constant 0 : index
      %c0_14 = arith.constant 0 : index
      %27 = vector.load %arg14[%c0_12, %c0_13, %c0_14] : memref<2x128x64xf32, #tpu.memory_space<vmem>>, vector<2x128x64xf32>
      tpu.vector_store %arg14[%c0_12, %c0_13, %c0_14], %26 {strides = array<i32>} : memref<2x128x64xf32, #tpu.memory_space<vmem>>, vector<2x128x64xf32>,
      %28 = vector.broadcast %cst : f32 to vector<2x128x1xf32>
      %c0_15 = arith.constant 0 : index
      %c0_16 = arith.constant 0 : index
      %c0_17 = arith.constant 0 : index
      %29 = vector.load %arg18[%c0_15, %c0_16, %c0_17] : memref<2x128x1xf32, #tpu.memory_space<vmem>>, vector<2x128x1xf32>
      tpu.vector_store %arg18[%c0_15, %c0_16, %c0_17], %28 {strides = array<i32>} : memref<2x128x1xf32, #tpu.memory_space<vmem>>, vector<2x128x1xf32>,
      %cst_18 = arith.constant 0.000000e+00 : f32
      %30 = vector.broadcast %cst_18 : f32 to vector<2x128x1xf32>
      %c0_19 = arith.constant 0 : index
      %c0_20 = arith.constant 0 : index
      %c0_21 = arith.constant 0 : index
      %31 = vector.load %arg19[%c0_19, %c0_20, %c0_21] : memref<2x128x1xf32, #tpu.memory_space<vmem>>, vector<2x128x1xf32>
      tpu.vector_store %arg19[%c0_19, %c0_20, %c0_21], %30 {strides = array<i32>} : memref<2x128x1xf32, #tpu.memory_space<vmem>>, vector<2x128x1xf32>,
      %cst_22 = arith.constant 0.000000e+00 : f32
      %32 = vector.broadcast %cst_22 : f32 to vector<2x128x64xf32>
      %c0_23 = arith.constant 0 : index
      %c0_24 = arith.constant 0 : index
      %c0_25 = arith.constant 0 : index
      %33 = vector.load %arg17[%c0_23, %c0_24, %c0_25] : memref<2x128x64xf32, #tpu.memory_space<vmem>>, vector<2x128x64xf32>
      tpu.vector_store %arg17[%c0_23, %c0_24, %c0_25], %32 {strides = array<i32>} : memref<2x128x64xf32, #tpu.memory_space<vmem>>, vector<2x128x64xf32>,
    } else {
    }
    %7 = arith.cmpi slt, %3, %1 : i32
    %8 = arith.extui %7 : i1 to i32
    %c0_i32_1 = arith.constant 0 : i32
    %9 = arith.cmpi ne, %8, %c0_i32_1 : i32
    scf.if %9 {
      %13 = arith.index_cast %3 : i32 to index
      %c0 = arith.constant 0 : index
      %c0_4 = arith.constant 0 : index
      %c0_5 = arith.constant 0 : index
      %14 = vector.load %arg15[%13, %c0, %c0_4, %c0_5] : memref<4x2x128x64xf32, #tpu.memory_space<vmem>>, vector<1x2x128x64xf32>
      %15 = vector.shape_cast %14 : vector<1x2x128x64xf32> to vector<2x128x64xf32>
      %16 = arith.index_cast %3 : i32 to index
      %c0_6 = arith.constant 0 : index
      %c0_7 = arith.constant 0 : index
      %c0_8 = arith.constant 0 : index
      %17 = vector.load %arg16[%16, %c0_6, %c0_7, %c0_8] : memref<4x2x128x64xf32, #tpu.memory_space<vmem>>, vector<1x2x128x64xf32>
      %18 = vector.shape_cast %17 : vector<1x2x128x64xf32> to vector<2x128x64xf32>
      %c0_9 = arith.constant 0 : index
      %c0_10 = arith.constant 0 : index
      %c0_11 = arith.constant 0 : index
      %19 = vector.load %arg14[%c0_9, %c0_10, %c0_11] : memref<2x128x64xf32, #tpu.memory_space<vmem>>, vector<2x128x64xf32>
      "tpu.trace_start"() <{level = 10 : i32, message = "hqd,hkd->hqk"}> : () -> ()
      %cst_12 = arith.constant dense<0.000000e+00> : vector<2x128x128xf32>
      %20 = tpu.matmul %19, %15, %cst_12 {dimension_numbers = #tpu.dot_dimension_numbers<[2], [2], [1], [1], [0, 0, 0, 1, 1, 1], [0], [0]>} : vector<2x128x64xf32>, vector<2x128x64xf32>, vector<2x128x128xf32> -> vector<2x128x128xf32>
      "tpu.trace_stop"() : () -> ()
      %c0_13 = arith.constant 0 : index
      %c0_14 = arith.constant 0 : index
      %c0_15 = arith.constant 0 : index
      %21 = vector.load %arg18[%c0_13, %c0_14, %c0_15] : memref<2x128x1xf32, #tpu.memory_space<vmem>>, vector<2x128x1xf32>
      %cst_16 = arith.constant dense<0xFF800000> : vector<2x128xf32>
      %22 = vector.multi_reduction <maximumf>, %20, %cst_16 [2] : vector<2x128x128xf32> to vector<2x128xf32>
      %23 = vector.shape_cast %22 : vector<2x128xf32> to vector<2x128x1xf32>
      %24 = arith.maximumf %21, %23 : vector<2x128x1xf32>
      %25 = arith.subf %21, %24 : vector<2x128x1xf32>
      %26 = math.exp %25 : vector<2x128x1xf32>
      %27 = vector.broadcast %24 : vector<2x128x1xf32> to vector<2x128x128xf32>
      %28 = arith.subf %20, %27 : vector<2x128x128xf32>
      %29 = math.exp %28 : vector<2x128x128xf32>
      %c0_17 = arith.constant 0 : index
      %c0_18 = arith.constant 0 : index
      %c0_19 = arith.constant 0 : index
      %30 = vector.load %arg19[%c0_17, %c0_18, %c0_19] : memref<2x128x1xf32, #tpu.memory_space<vmem>>, vector<2x128x1xf32>
      %31 = arith.mulf %26, %30 : vector<2x128x1xf32>
      %cst_20 = arith.constant dense<0.000000e+00> : vector<2x128xf32>
      %32 = vector.multi_reduction <add>, %29, %cst_20 [2] : vector<2x128x128xf32> to vector<2x128xf32>
      %33 = vector.shape_cast %32 : vector<2x128xf32> to vector<2x128x1xf32>
      %34 = arith.addf %31, %33 : vector<2x128x1xf32>
      %c0_21 = arith.constant 0 : index
      %c0_22 = arith.constant 0 : index
      %c0_23 = arith.constant 0 : index
      %35 = vector.load %arg19[%c0_21, %c0_22, %c0_23] : memref<2x128x1xf32, #tpu.memory_space<vmem>>, vector<2x128x1xf32>
      tpu.vector_store %arg19[%c0_21, %c0_22, %c0_23], %34 {strides = array<i32>} : memref<2x128x1xf32, #tpu.memory_space<vmem>>, vector<2x128x1xf32>,
      %c0_24 = arith.constant 0 : index
      %c0_25 = arith.constant 0 : index
      %c0_26 = arith.constant 0 : index
      %36 = vector.load %arg17[%c0_24, %c0_25, %c0_26] : memref<2x128x64xf32, #tpu.memory_space<vmem>>, vector<2x128x64xf32>
      %37 = vector.broadcast %26 : vector<2x128x1xf32> to vector<2x128x64xf32>
      %38 = arith.mulf %37, %36 : vector<2x128x64xf32>
      "tpu.trace_start"() <{level = 10 : i32, message = "hqk,hkd->hqd"}> : () -> ()
      %cst_27 = arith.constant dense<0.000000e+00> : vector<2x128x64xf32>
      %39 = tpu.matmul %29, %18, %cst_27 {dimension_numbers = #tpu.dot_dimension_numbers<[2], [1], [1], [2], [0, 0, 0, 1, 1, 2], [0], [0]>} : vector<2x128x128xf32>, vector<2x128x64xf32>, vector<2x128x64xf32> -> vector<2x128x64xf32>
      "tpu.trace_stop"() : () -> ()
      %40 = arith.addf %38, %39 : vector<2x128x64xf32>
      %c0_28 = arith.constant 0 : index
      %c0_29 = arith.constant 0 : index
      %c0_30 = arith.constant 0 : index
      %41 = vector.load %arg17[%c0_28, %c0_29, %c0_30] : memref<2x128x64xf32, #tpu.memory_space<vmem>>, vector<2x128x64xf32>
      tpu.vector_store %arg17[%c0_28, %c0_29, %c0_30], %40 {strides = array<i32>} : memref<2x128x64xf32, #tpu.memory_space<vmem>>, vector<2x128x64xf32>,
      %c0_31 = arith.constant 0 : index
      %c0_32 = arith.constant 0 : index
      %c0_33 = arith.constant 0 : index
      %42 = vector.load %arg18[%c0_31, %c0_32, %c0_33] : memref<2x128x1xf32, #tpu.memory_space<vmem>>, vector<2x128x1xf32>
      tpu.vector_store %arg18[%c0_31, %c0_32, %c0_33], %24 {strides = array<i32>} : memref<2x128x1xf32, #tpu.memory_space<vmem>>, vector<2x128x1xf32>,
    } else {
    }
    %10 = arith.cmpi eq, %3, %1 : i32
    %11 = arith.extui %10 : i1 to i32
    %cst_2 = arith.constant -1.000000e+30 : f32
    %c0_i32_3 = arith.constant 0 : i32
    %12 = arith.cmpi ne, %11, %c0_i32_3 : i32
    scf.if %12 {
      %c0 = arith.constant 0 : index
      %c0_4 = arith.constant 0 : index
      %c0_5 = arith.constant 0 : index
      %13 = vector.load %arg4[%c0, %c0_4, %c0_5] : memref<1x128x128xf32, #tpu.memory_space<vmem>>, vector<1x128x128xf32>
      %14 = vector.shape_cast %13 : vector<1x128x128xf32> to vector<128x128xf32>
      %c0_6 = arith.constant 0 : index
      %c0_7 = arith.constant 0 : index
      %15 = vector.load %arg6[%c0_6, %c0_7] : memref<128x128xf32, #tpu.memory_space<vmem>>, vector<128x128xf32>
      %cst_8 = arith.constant dense<0.000000e+00> : vector<128x128xf32>
      %16 = tpu.matmul %14, %15, %cst_8 {dimension_numbers = #tpu.dot_dimension_numbers<[1], [0], [0], [1], [0, 0, 1, 1], [], []>} : vector<128x128xf32>, vector<128x128xf32>, vector<128x128xf32> -> vector<128x128xf32>
      %c0_9 = arith.constant 0 : index
      %c0_10 = arith.constant 0 : index
      %17 = vector.load %arg10[%c0_9, %c0_10] : memref<1x128xf32, #tpu.memory_space<vmem>>, vector<1x128xf32>
      %18 = vector.broadcast %17 : vector<1x128xf32> to vector<128x128xf32>
      %19 = arith.addf %16, %18 : vector<128x128xf32>
      %c0_11 = arith.constant 0 : index
      %c0_12 = arith.constant 0 : index
      %c0_13 = arith.constant 0 : index
      %20 = vector.load %arg4[%c0_11, %c0_12, %c0_13] : memref<1x128x128xf32, #tpu.memory_space<vmem>>, vector<1x128x128xf32>
      %21 = vector.shape_cast %20 : vector<1x128x128xf32> to vector<128x128xf32>
      %c0_14 = arith.constant 0 : index
      %c0_15 = arith.constant 0 : index
      %22 = vector.load %arg7[%c0_14, %c0_15] : memref<128x128xf32, #tpu.memory_space<vmem>>, vector<128x128xf32>
      %cst_16 = arith.constant dense<0.000000e+00> : vector<128x128xf32>
      %23 = tpu.matmul %21, %22, %cst_16 {dimension_numbers = #tpu.dot_dimension_numbers<[1], [0], [0], [1], [0, 0, 1, 1], [], []>} : vector<128x128xf32>, vector<128x128xf32>, vector<128x128xf32> -> vector<128x128xf32>
      %c0_17 = arith.constant 0 : index
      %c0_18 = arith.constant 0 : index
      %24 = vector.load %arg11[%c0_17, %c0_18] : memref<1x128xf32, #tpu.memory_space<vmem>>, vector<1x128xf32>
      %25 = vector.broadcast %24 : vector<1x128xf32> to vector<128x128xf32>
      %26 = arith.addf %23, %25 : vector<128x128xf32>
      %27 = vector.extract_strided_slice %19 {offsets = [0, 0], sizes = [128, 64], strides = [1, 1]} : vector<128x128xf32> to vector<128x64xf32>
      %28 = vector.extract_strided_slice %19 {offsets = [0, 64], sizes = [128, 64], strides = [1, 1]} : vector<128x128xf32> to vector<128x64xf32>
      %29 = vector.shape_cast %27 : vector<128x64xf32> to vector<1x128x64xf32>
      %30 = vector.shape_cast %28 : vector<128x64xf32> to vector<1x128x64xf32>
      %31 = tpu.concatenate %29, %30 in 0 : vector<1x128x64xf32>, vector<1x128x64xf32> -> vector<2x128x64xf32>
      %32 = vector.extract_strided_slice %26 {offsets = [0, 0], sizes = [128, 64], strides = [1, 1]} : vector<128x128xf32> to vector<128x64xf32>
      %33 = vector.extract_strided_slice %26 {offsets = [0, 64], sizes = [128, 64], strides = [1, 1]} : vector<128x128xf32> to vector<128x64xf32>
      %34 = vector.shape_cast %32 : vector<128x64xf32> to vector<1x128x64xf32>
      %35 = vector.shape_cast %33 : vector<128x64xf32> to vector<1x128x64xf32>
      %36 = tpu.concatenate %34, %35 in 0 : vector<1x128x64xf32>, vector<1x128x64xf32> -> vector<2x128x64xf32>
      %37 = arith.index_cast %3 : i32 to index
      %c0_19 = arith.constant 0 : index
      %c0_20 = arith.constant 0 : index
      %c0_21 = arith.constant 0 : index
      %38 = vector.load %arg15[%37, %c0_19, %c0_20, %c0_21] : memref<4x2x128x64xf32, #tpu.memory_space<vmem>>, vector<1x2x128x64xf32>
      %39 = vector.shape_cast %38 : vector<1x2x128x64xf32> to vector<2x128x64xf32>
      %40 = vector.shape_cast %31 : vector<2x128x64xf32> to vector<1x2x128x64xf32>
      tpu.vector_store %arg15[%37, %c0_19, %c0_20, %c0_21], %40 {strides = array<i32>} : memref<4x2x128x64xf32, #tpu.memory_space<vmem>>, vector<1x2x128x64xf32>,
      %41 = arith.index_cast %3 : i32 to index
      %c0_22 = arith.constant 0 : index
      %c0_23 = arith.constant 0 : index
      %c0_24 = arith.constant 0 : index
      %42 = vector.load %arg16[%41, %c0_22, %c0_23, %c0_24] : memref<4x2x128x64xf32, #tpu.memory_space<vmem>>, vector<1x2x128x64xf32>
      %43 = vector.shape_cast %42 : vector<1x2x128x64xf32> to vector<2x128x64xf32>
      %44 = vector.shape_cast %36 : vector<2x128x64xf32> to vector<1x2x128x64xf32>
      tpu.vector_store %arg16[%41, %c0_22, %c0_23, %c0_24], %44 {strides = array<i32>} : memref<4x2x128x64xf32, #tpu.memory_space<vmem>>, vector<1x2x128x64xf32>,
      %c0_25 = arith.constant 0 : index
      %c0_26 = arith.constant 0 : index
      %c0_27 = arith.constant 0 : index
      %45 = vector.load %arg14[%c0_25, %c0_26, %c0_27] : memref<2x128x64xf32, #tpu.memory_space<vmem>>, vector<2x128x64xf32>
      "tpu.trace_start"() <{level = 10 : i32, message = "hqd,hkd->hqk"}> : () -> ()
      %cst_28 = arith.constant dense<0.000000e+00> : vector<2x128x128xf32>
      %46 = tpu.matmul %45, %31, %cst_28 {dimension_numbers = #tpu.dot_dimension_numbers<[2], [2], [1], [1], [0, 0, 0, 1, 1, 1], [0], [0]>} : vector<2x128x64xf32>, vector<2x128x64xf32>, vector<2x128x128xf32> -> vector<2x128x128xf32>
      "tpu.trace_stop"() : () -> ()
      %47 = tpu.iota {dimensions = array<i32: 1>} : vector<2x128x128xi32>
      %48 = tpu.iota {dimensions = array<i32: 2>} : vector<2x128x128xi32>
      %49 = arith.cmpi sle, %48, %47 : vector<2x128x128xi32>
      %50 = vector.broadcast %cst_2 : f32 to vector<2x128x128xf32>
      %51 = arith.select %49, %46, %50 : vector<2x128x128xi1>, vector<2x128x128xf32>
      %c0_29 = arith.constant 0 : index
      %c0_30 = arith.constant 0 : index
      %c0_31 = arith.constant 0 : index
      %52 = vector.load %arg18[%c0_29, %c0_30, %c0_31] : memref<2x128x1xf32, #tpu.memory_space<vmem>>, vector<2x128x1xf32>
      %cst_32 = arith.constant dense<0xFF800000> : vector<2x128xf32>
      %53 = vector.multi_reduction <maximumf>, %51, %cst_32 [2] : vector<2x128x128xf32> to vector<2x128xf32>
      %54 = vector.shape_cast %53 : vector<2x128xf32> to vector<2x128x1xf32>
      %55 = arith.maximumf %52, %54 : vector<2x128x1xf32>
      %56 = arith.subf %52, %55 : vector<2x128x1xf32>
      %57 = math.exp %56 : vector<2x128x1xf32>
      %58 = vector.broadcast %55 : vector<2x128x1xf32> to vector<2x128x128xf32>
      %59 = arith.subf %51, %58 : vector<2x128x128xf32>
      %60 = math.exp %59 : vector<2x128x128xf32>
      %c0_33 = arith.constant 0 : index
      %c0_34 = arith.constant 0 : index
      %c0_35 = arith.constant 0 : index
      %61 = vector.load %arg19[%c0_33, %c0_34, %c0_35] : memref<2x128x1xf32, #tpu.memory_space<vmem>>, vector<2x128x1xf32>
      %62 = arith.mulf %57, %61 : vector<2x128x1xf32>
      %cst_36 = arith.constant dense<0.000000e+00> : vector<2x128xf32>
      %63 = vector.multi_reduction <add>, %60, %cst_36 [2] : vector<2x128x128xf32> to vector<2x128xf32>
      %64 = vector.shape_cast %63 : vector<2x128xf32> to vector<2x128x1xf32>
      %65 = arith.addf %62, %64 : vector<2x128x1xf32>
      %c0_37 = arith.constant 0 : index
      %c0_38 = arith.constant 0 : index
      %c0_39 = arith.constant 0 : index
      %66 = vector.load %arg19[%c0_37, %c0_38, %c0_39] : memref<2x128x1xf32, #tpu.memory_space<vmem>>, vector<2x128x1xf32>
      tpu.vector_store %arg19[%c0_37, %c0_38, %c0_39], %65 {strides = array<i32>} : memref<2x128x1xf32, #tpu.memory_space<vmem>>, vector<2x128x1xf32>,
      %c0_40 = arith.constant 0 : index
      %c0_41 = arith.constant 0 : index
      %c0_42 = arith.constant 0 : index
      %67 = vector.load %arg17[%c0_40, %c0_41, %c0_42] : memref<2x128x64xf32, #tpu.memory_space<vmem>>, vector<2x128x64xf32>
      %68 = vector.broadcast %57 : vector<2x128x1xf32> to vector<2x128x64xf32>
      %69 = arith.mulf %68, %67 : vector<2x128x64xf32>
      "tpu.trace_start"() <{level = 10 : i32, message = "hqk,hkd->hqd"}> : () -> ()
      %cst_43 = arith.constant dense<0.000000e+00> : vector<2x128x64xf32>
      %70 = tpu.matmul %60, %36, %cst_43 {dimension_numbers = #tpu.dot_dimension_numbers<[2], [1], [1], [2], [0, 0, 0, 1, 1, 2], [0], [0]>} : vector<2x128x128xf32>, vector<2x128x64xf32>, vector<2x128x64xf32> -> vector<2x128x64xf32>
      "tpu.trace_stop"() : () -> ()
      %71 = arith.addf %69, %70 : vector<2x128x64xf32>
      %c0_44 = arith.constant 0 : index
      %c0_45 = arith.constant 0 : index
      %c0_46 = arith.constant 0 : index
      %72 = vector.load %arg17[%c0_44, %c0_45, %c0_46] : memref<2x128x64xf32, #tpu.memory_space<vmem>>, vector<2x128x64xf32>
      tpu.vector_store %arg17[%c0_44, %c0_45, %c0_46], %71 {strides = array<i32>} : memref<2x128x64xf32, #tpu.memory_space<vmem>>, vector<2x128x64xf32>,
      %c0_47 = arith.constant 0 : index
      %c0_48 = arith.constant 0 : index
      %c0_49 = arith.constant 0 : index
      %73 = vector.load %arg18[%c0_47, %c0_48, %c0_49] : memref<2x128x1xf32, #tpu.memory_space<vmem>>, vector<2x128x1xf32>
      tpu.vector_store %arg18[%c0_47, %c0_48, %c0_49], %55 {strides = array<i32>} : memref<2x128x1xf32, #tpu.memory_space<vmem>>, vector<2x128x1xf32>,
      %c0_50 = arith.constant 0 : index
      %c0_51 = arith.constant 0 : index
      %c0_52 = arith.constant 0 : index
      %74 = vector.load %arg19[%c0_50, %c0_51, %c0_52] : memref<2x128x1xf32, #tpu.memory_space<vmem>>, vector<2x128x1xf32>
      %75 = tpu.reciprocal %74 {approx = true} : vector<2x128x1xf32> -> vector<2x128x1xf32>
      %c0_53 = arith.constant 0 : index
      %c0_54 = arith.constant 0 : index
      %c0_55 = arith.constant 0 : index
      %76 = vector.load %arg17[%c0_53, %c0_54, %c0_55] : memref<2x128x64xf32, #tpu.memory_space<vmem>>, vector<2x128x64xf32>
      %77 = vector.broadcast %75 : vector<2x128x1xf32> to vector<2x128x64xf32>
      %78 = arith.mulf %76, %77 : vector<2x128x64xf32>
      %79 = vector.extract_strided_slice %78 {offsets = [0, 0, 0], sizes = [1, 128, 64], strides = [1, 1, 1]} : vector<2x128x64xf32> to vector<1x128x64xf32>
      %80 = vector.shape_cast %79 : vector<1x128x64xf32> to vector<128x64xf32>
      %81 = vector.extract_strided_slice %78 {offsets = [1, 0, 0], sizes = [1, 128, 64], strides = [1, 1, 1]} : vector<2x128x64xf32> to vector<1x128x64xf32>
      %82 = vector.shape_cast %81 : vector<1x128x64xf32> to vector<128x64xf32>
      %83 = tpu.concatenate %80, %82 in 1 : vector<128x64xf32>, vector<128x64xf32> -> vector<128x128xf32>
      %c0_56 = arith.constant 0 : index
      %c0_57 = arith.constant 0 : index
      %84 = vector.load %arg8[%c0_56, %c0_57] : memref<128x128xf32, #tpu.memory_space<vmem>>, vector<128x128xf32>
      %cst_58 = arith.constant dense<0.000000e+00> : vector<128x128xf32>
      %85 = tpu.matmul %83, %84, %cst_58 {dimension_numbers = #tpu.dot_dimension_numbers<[1], [0], [0], [1], [0, 0, 1, 1], [], []>} : vector<128x128xf32>, vector<128x128xf32>, vector<128x128xf32> -> vector<128x128xf32>
      %c0_59 = arith.constant 0 : index
      %c0_60 = arith.constant 0 : index
      %86 = vector.load %arg12[%c0_59, %c0_60] : memref<1x128xf32, #tpu.memory_space<vmem>>, vector<1x128xf32>
      %87 = vector.broadcast %86 : vector<1x128xf32> to vector<128x128xf32>
      %88 = arith.addf %85, %87 : vector<128x128xf32>
      %c0_61 = arith.constant 0 : index
      %c0_62 = arith.constant 0 : index
      %c0_63 = arith.constant 0 : index
      %89 = vector.load %arg13[%c0_61, %c0_62, %c0_63] : memref<1x128x128xf32, #tpu.memory_space<vmem>>, vector<1x128x128xf32>
      %90 = vector.shape_cast %89 : vector<1x128x128xf32> to vector<128x128xf32>
      %91 = vector.shape_cast %88 : vector<128x128xf32> to vector<1x128x128xf32>
      tpu.vector_store %arg13[%c0_61, %c0_62, %c0_63], %91 {strides = array<i32>} : memref<1x128x128xf32, #tpu.memory_space<vmem>>, vector<1x128x128xf32>,
    } else {
    }
    return
  }
  func.func @transform_0(%arg0: i32, %arg1: i32, %arg2: memref<10xi32, #tpu.memory_space<smem>>, %arg3: memref<10xi32, #tpu.memory_space<smem>>) -> (i32, i32, i32) {
    %0 = arith.index_cast %arg1 : i32 to index
    %1 = memref.load %arg2[%0] : memref<10xi32, #tpu.memory_space<smem>>
    %c0_i32 = arith.constant 0 : i32
    %c0_i32_0 = arith.constant 0 : i32
    return %arg0, %1, %c0_i32 : i32, i32, i32
  }
  func.func @transform_1(%arg0: i32, %arg1: i32, %arg2: memref<10xi32, #tpu.memory_space<smem>>, %arg3: memref<10xi32, #tpu.memory_space<smem>>) -> (i32, i32) {
    %c0_i32 = arith.constant 0 : i32
    %c0_i32_0 = arith.constant 0 : i32
    %c0_i32_1 = arith.constant 0 : i32
    return %c0_i32, %c0_i32_0 : i32, i32
  }
  func.func @transform_2(%arg0: i32, %arg1: i32, %arg2: memref<10xi32, #tpu.memory_space<smem>>, %arg3: memref<10xi32, #tpu.memory_space<smem>>) -> (i32, i32) {
    %c0_i32 = arith.constant 0 : i32
    %c0_i32_0 = arith.constant 0 : i32
    %c0_i32_1 = arith.constant 0 : i32
    return %c0_i32, %c0_i32_0 : i32, i32
  }
  func.func @transform_3(%arg0: i32, %arg1: i32, %arg2: memref<10xi32, #tpu.memory_space<smem>>, %arg3: memref<10xi32, #tpu.memory_space<smem>>) -> (i32, i32) {
    %c0_i32 = arith.constant 0 : i32
    %c0_i32_0 = arith.constant 0 : i32
    %c0_i32_1 = arith.constant 0 : i32
    return %c0_i32, %c0_i32_0 : i32, i32
  }
  func.func @transform_4(%arg0: i32, %arg1: i32, %arg2: memref<10xi32, #tpu.memory_space<smem>>, %arg3: memref<10xi32, #tpu.memory_space<smem>>) -> (i32, i32) {
    %c0_i32 = arith.constant 0 : i32
    %c0_i32_0 = arith.constant 0 : i32
    %c0_i32_1 = arith.constant 0 : i32
    return %c0_i32, %c0_i32_0 : i32, i32
  }
  func.func @transform_5(%arg0: i32, %arg1: i32, %arg2: memref<10xi32, #tpu.memory_space<smem>>, %arg3: memref<10xi32, #tpu.memory_space<smem>>) -> (i32, i32) {
    %c0_i32 = arith.constant 0 : i32
    %c0_i32_0 = arith.constant 0 : i32
    %c0_i32_1 = arith.constant 0 : i32
    return %c0_i32, %c0_i32_0 : i32, i32
  }
  func.func @transform_6(%arg0: i32, %arg1: i32, %arg2: memref<10xi32, #tpu.memory_space<smem>>, %arg3: memref<10xi32, #tpu.memory_space<smem>>) -> (i32, i32) {
    %c0_i32 = arith.constant 0 : i32
    %c0_i32_0 = arith.constant 0 : i32
    %c0_i32_1 = arith.constant 0 : i32
    return %c0_i32, %c0_i32_0 : i32, i32
  }
  func.func @transform_7(%arg0: i32, %arg1: i32, %arg2: memref<10xi32, #tpu.memory_space<smem>>, %arg3: memref<10xi32, #tpu.memory_space<smem>>) -> (i32, i32) {
    %c0_i32 = arith.constant 0 : i32
    %c0_i32_0 = arith.constant 0 : i32
    %c0_i32_1 = arith.constant 0 : i32
    return %c0_i32, %c0_i32_0 : i32, i32
  }
  func.func @transform_8(%arg0: i32, %arg1: i32, %arg2: memref<10xi32, #tpu.memory_space<smem>>, %arg3: memref<10xi32, #tpu.memory_space<smem>>) -> (i32, i32) {
    %c0_i32 = arith.constant 0 : i32
    %c0_i32_0 = arith.constant 0 : i32
    %c0_i32_1 = arith.constant 0 : i32
    return %c0_i32, %c0_i32_0 : i32, i32
  }
  func.func @transform_9(%arg0: i32, %arg1: i32, %arg2: memref<10xi32, #tpu.memory_space<smem>>, %arg3: memref<10xi32, #tpu.memory_space<smem>>) -> (i32, i32, i32) {
    %0 = arith.index_cast %arg1 : i32 to index
    %1 = memref.load %arg2[%0] : memref<10xi32, #tpu.memory_space<smem>>
    %c0_i32 = arith.constant 0 : i32
    %c0_i32_0 = arith.constant 0 : i32
    return %arg0, %1, %c0_i32 : i32, i32, i32
  }
}

</mosaic_0001>

<llo_original>
// kernel: tpu_custom_call.1
$region0: #{tpu_custom_call.1}
  #allocation0 [shape = 'u32[]', space=smem, size = 0x4, offset = 0x4, fixed_abs, tag = 'smem constant byte address 0x4 - core index']
  #allocation1 [shape = 'u32[144,128]{1,0:T(1,128)}', space=vmem, size = 0x12000, scoped, tag = 'internal scratch']
  #allocation2 [shape = 'f32[2,128,64]{2,1,0:T(8,128)}', space=vmem, size = 0x20000, scoped, tag = 'scratch operand']
  #allocation3 [shape = 'f32[4,2,128,64]{3,2,1,0:T(8,128)}', space=vmem, size = 0x80000, scoped, tag = 'scratch operand']
  #allocation4 [shape = 'f32[4,2,128,64]{3,2,1,0:T(8,128)}', space=vmem, size = 0x80000, scoped, tag = 'scratch operand']
  #allocation5 [shape = 'f32[2,128,64]{2,1,0:T(8,128)}', space=vmem, size = 0x20000, scoped, tag = 'scratch operand']
  #allocation6 [shape = 'f32[2,128,1]{2,1,0:T(8,128)}', space=vmem, size = 0x20000, scoped, tag = 'scratch operand']
  #allocation7 [shape = 'f32[2,128,1]{2,1,0:T(8,128)}', space=vmem, size = 0x20000, scoped, tag = 'scratch operand']
  #allocation8 [shape = 's32[1]{0}', space=sflag, size = 0x4, scoped, tag = 'scoped memory for tpu_custom_call.1']
  #allocation9 [shape = 'u8[512]{0}', space=smem, size = 0x200, scoped, tag = 'prefetched SMEM operand 0']
  #allocation10 [shape = 'u8[512]{0}', space=smem, size = 0x200, scoped, tag = 'prefetched SMEM operand 1']
  %s0 = inlined_call_operand.hbm [shape: s32[10], index: 0, kind: input, shape index: {}]
  %s1 = inlined_call_operand.vmem [shape: s32[10], index: 1, kind: input, shape index: {}]
  %s2 = inlined_call_operand.hbm [shape: f32[2,512,128], index: 2, kind: input, shape index: {}]
  %s3 = inlined_call_operand.hbm [shape: f32[128,128], index: 3, kind: input, shape index: {}]
  %s4 = inlined_call_operand.hbm [shape: f32[128,128], index: 4, kind: input, shape index: {}]
  %s5 = inlined_call_operand.hbm [shape: f32[128,128], index: 5, kind: input, shape index: {}]
  %s6 = inlined_call_operand.hbm [shape: f32[128,128], index: 6, kind: input, shape index: {}]
  %s7 = inlined_call_operand.vmem [shape: f32[1,128], index: 7, kind: input, shape index: {}]
  %s8 = inlined_call_operand.vmem [shape: f32[1,128], index: 8, kind: input, shape index: {}]
  %s9 = inlined_call_operand.vmem [shape: f32[1,128], index: 9, kind: input, shape index: {}]
  %s10 = inlined_call_operand.vmem [shape: f32[1,128], index: 10, kind: input, shape index: {}]
  %s11 = inlined_call_operand.hbm [shape: f32[2,512,128], index: 11, kind: output, shape index: {}]
  %s12 = sld [smem:[#allocation0]]
  $region101: #{tpu_custom_call.1} parent=0
    _
  %s14 = ssub.s32 1, %s12
  %s15 = scalar_select 0, %s14, %s12
  %17 = dma.hbm_to_smem %s0, 16, [#allocation9], [#allocation8]
  %s18 = sshll.u32 %s1, 4
  %s19 = int_to_ptr.vmem [resolvable:$true] %s18
  %21 = dma.vmem_to_smem %s19, 16, [#allocation10], [#allocation8]
  %22 = dma.done [#allocation8], 32
  %23 = sfence
  $region1: #{tpu_custom_call.1} parent=0
    #allocation11 [shape = 'u8[131072]{0}', space=vmem, size = 0x20000, scoped, tag = 'input window, operand 2']
    #allocation12 [shape = 's32[2]{0}', space=sflag, size = 0x8, scoped, tag = 'scoped memory for tpu_custom_call.1']
    #allocation13 [shape = 's32[2]{0}', space=sflag, size = 0x8, scoped, tag = 'scoped memory for tpu_custom_call.1']
    #allocation14 [shape = 'u8[65536]{0}', space=vmem, size = 0x10000, scoped, tag = 'input window, operand 3, single buffered']
    #allocation15 [shape = 's32[1]{0}', space=sflag, size = 0x4, scoped, tag = 'scoped memory for tpu_custom_call.1']
    #allocation16 [shape = 'u8[65536]{0}', space=vmem, size = 0x10000, scoped, tag = 'input window, operand 4, single buffered']
    #allocation17 [shape = 'u8[65536]{0}', space=vmem, size = 0x10000, scoped, tag = 'input window, operand 5, single buffered']
    #allocation18 [shape = 's32[1]{0}', space=sflag, size = 0x4, scoped, tag = 'scoped memory for tpu_custom_call.1']
    #allocation19 [shape = 'u8[65536]{0}', space=vmem, size = 0x10000, scoped, tag = 'input window, operand 6, single buffered']
    #allocation20 [shape = 'u8[131072]{0}', space=vmem, size = 0x20000, scoped, tag = 'output window, operand 0']
    %24 = vsyncpa [#allocation12], 0
    %s25 = scalar_lea.sflag [#allocation12], 1
    %26 = vsyncpa %s25, 0
    %27 = vsyncpa [#allocation15], 0
    %28 = vsyncpa [#allocation18], 0
    %29 = vsyncpa [#allocation13], 0
    %s30 = scalar_lea.sflag [#allocation13], 1
    %31 = vsyncpa %s30, 0
    loop: start=0, step=1, limit=22
    $region2: #{tpu_custom_call.1} parent=1 // loop_pre_header
      _
    $region3: #{tpu_custom_call.1} parent=1 // loop_header
      %s33 = sphi 0, %s37
      %p34 = scmp.ge.s32.totalorder %s33, 22
      %s40 = sphi 0, %s52
      %s41 = sphi 0, %s48
      %s42 = sphi 0, %s40
      %s43 = sphi 0, %s41
      %s44 = sphi 0, %s42
      %s45 = sphi 0, %s43
      %s59 = sphi 0, %s61
      %s62 = sphi 0, %s59
      %s63 = sphi 0, %s62
      %s79 = sphi 0, %s63
      %s83 = sphi 0, %s83
      %s85 = sphi 0, %s83
      %s86 = sphi 0, %s85
      %s100 = sphi 0, %s86
      %s104 = sphi 0, %s104
      %s106 = sphi 0, %s104
      %s107 = sphi 0, %s106
      %s121 = sphi 0, %s107
      %s125 = sphi 0, %s125
      %s127 = sphi 0, %s125
      %s128 = sphi 0, %s127
      %s142 = sphi 0, %s128
      %s146 = sphi 0, %s146
      %s148 = sphi 0, %s146
      %s149 = sphi 0, %s148
      %s163 = sphi 0, %s149
      %s167 = sphi 0, %s167
      %s169 = sphi 0, %s167
      %s170 = sphi 0, %s169
      %s184 = sphi 0, %s170
      %s188 = sphi 0, %s188
      %s190 = sphi 0, %s188
      %s191 = sphi 0, %s190
      %s205 = sphi 0, %s191
      %s209 = sphi 0, %s209
      %s211 = sphi 0, %s209
      %s212 = sphi 0, %s211
      %s226 = sphi 0, %s212
      %s230 = sphi 0, %s230
      %s232 = sphi 0, %s230
      %s233 = sphi 0, %s232
      %s247 = sphi 0, %s233
      %s257 = sphi 0, %s259
      %s260 = sphi 0, %s257
      %s261 = sphi 0, %s260
      %s277 = sphi 0, %s261
    $region4: #{tpu_custom_call.1} parent=1 // loop_header_branch
      %36 = sbr.rel (%p34) target = $region8
    $region5: #{tpu_custom_call.1} parent=1 // loop_body
      %s38 = ssub.s32 %s33, 1
      %s39 = ssub.s32 %s33, 2
      %s46 = sadd.s32 1, %s41
      %p47 = scmp.ge.s32.totalorder %s46, 10
      %s48 = scalar_select %p47, 0, %s46
      %s49 = sadd.s32 1, %s40
      %s50 = scalar_select %p47, %s49, %s40
      %p51 = scmp.ge.s32.totalorder %s50, 2
      %s52 = scalar_select %p51, 0, %s50
      %s53 = sld [smem:[#allocation9 + %s41]]
      %s54 = sld [smem:[#allocation9 + %s48]]
      %s55 = ssub.s32 %s40, %s52
      %s56 = ssub.s32 %s53, %s54
      %s57 = sor.u32 %s55, %s56
      %p58 = scmp.eq.s32.totalorder %s57, 0
      %s60 = sadd.s32 %s59, 1
      %s61 = scalar_select %p58, %s59, %s60
      %p64 = pneg %p58
      %p65 = scmp.eq.s32.totalorder %s33, 19
      %p66 = por %p64, %p65
      %p67 = scmp.ne.s32.totalorder %s59, %s62
      %p68 = scmp.eq.s32.totalorder %s33, 0
      %p69 = por %p67, %p68
      %p70 = scmp.ne.s32.totalorder %s59, %s62
      %p71 = scmp.eq.s32.totalorder %s38, 19
      %p72 = por %p70, %p71
      %p73 = scmp.ne.s32.totalorder %s62, %s63
      %p74 = scmp.eq.s32.totalorder %s38, 0
      %p75 = por %p73, %p74
      %p76 = scmp.ne.s32.totalorder %s62, %s63
      %p77 = scmp.eq.s32.totalorder %s39, 19
      %p78 = por %p76, %p77
      %p80 = scmp.ne.s32.totalorder %s63, %s79
      %p81 = scmp.eq.s32.totalorder %s39, 0
      %p82 = por %p80, %p81
      %s84 = sadd.s32 %s83, 1
      %p87 = scmp.eq.s32.totalorder %s33, 19
      %p88 = scmp.ne.s32.totalorder %s83, %s85
      %p89 = scmp.eq.s32.totalorder %s33, 0
      %p90 = por %p88, %p89
      %p91 = scmp.ne.s32.totalorder %s83, %s85
      %p92 = scmp.eq.s32.totalorder %s38, 19
      %p93 = por %p91, %p92
      %p94 = scmp.ne.s32.totalorder %s85, %s86
      %p95 = scmp.eq.s32.totalorder %s38, 0
      %p96 = por %p94, %p95
      %p97 = scmp.ne.s32.totalorder %s85, %s86
      %p98 = scmp.eq.s32.totalorder %s39, 19
      %p99 = por %p97, %p98
      %p101 = scmp.ne.s32.totalorder %s86, %s100
      %p102 = scmp.eq.s32.totalorder %s39, 0
      %p103 = por %p101, %p102
      %s105 = sadd.s32 %s104, 1
      %p108 = scmp.eq.s32.totalorder %s33, 19
      %p109 = scmp.ne.s32.totalorder %s104, %s106
      %p110 = scmp.eq.s32.totalorder %s33, 0
      %p111 = por %p109, %p110
      %p112 = scmp.ne.s32.totalorder %s104, %s106
      %p113 = scmp.eq.s32.totalorder %s38, 19
      %p114 = por %p112, %p113
      %p115 = scmp.ne.s32.totalorder %s106, %s107
      %p116 = scmp.eq.s32.totalorder %s38, 0
      %p117 = por %p115, %p116
      %p118 = scmp.ne.s32.totalorder %s106, %s107
      %p119 = scmp.eq.s32.totalorder %s39, 19
      %p120 = por %p118, %p119
      %p122 = scmp.ne.s32.totalorder %s107, %s121
      %p123 = scmp.eq.s32.totalorder %s39, 0
      %p124 = por %p122, %p123
      %s126 = sadd.s32 %s125, 1
      %p129 = scmp.eq.s32.totalorder %s33, 19
      %p130 = scmp.ne.s32.totalorder %s125, %s127
      %p131 = scmp.eq.s32.totalorder %s33, 0
      %p132 = por %p130, %p131
      %p133 = scmp.ne.s32.totalorder %s125, %s127
      %p134 = scmp.eq.s32.totalorder %s38, 19
      %p135 = por %p133, %p134
      %p136 = scmp.ne.s32.totalorder %s127, %s128
      %p137 = scmp.eq.s32.totalorder %s38, 0
      %p138 = por %p136, %p137
      %p139 = scmp.ne.s32.totalorder %s127, %s128
      %p140 = scmp.eq.s32.totalorder %s39, 19
      %p141 = por %p139, %p140
      %p143 = scmp.ne.s32.totalorder %s128, %s142
      %p144 = scmp.eq.s32.totalorder %s39, 0
      %p145 = por %p143, %p144
      %s147 = sadd.s32 %s146, 1
      %p150 = scmp.eq.s32.totalorder %s33, 19
      %p151 = scmp.ne.s32.totalorder %s146, %s148
      %p152 = scmp.eq.s32.totalorder %s33, 0
      %p153 = por %p151, %p152
      %p154 = scmp.ne.s32.totalorder %s146, %s148
      %p155 = scmp.eq.s32.totalorder %s38, 19
      %p156 = por %p154, %p155
      %p157 = scmp.ne.s32.totalorder %s148, %s149
      %p158 = scmp.eq.s32.totalorder %s38, 0
      %p159 = por %p157, %p158
      %p160 = scmp.ne.s32.totalorder %s148, %s149
      %p161 = scmp.eq.s32.totalorder %s39, 19
      %p162 = por %p160, %p161
      %p164 = scmp.ne.s32.totalorder %s149, %s163
      %p165 = scmp.eq.s32.totalorder %s39, 0
      %p166 = por %p164, %p165
      %s168 = sadd.s32 %s167, 1
      %p171 = scmp.eq.s32.totalorder %s33, 19
      %p172 = scmp.ne.s32.totalorder %s167, %s169
      %p173 = scmp.eq.s32.totalorder %s33, 0
      %p174 = por %p172, %p173
      %p175 = scmp.ne.s32.totalorder %s167, %s169
      %p176 = scmp.eq.s32.totalorder %s38, 19
      %p177 = por %p175, %p176
      %p178 = scmp.ne.s32.totalorder %s169, %s170
      %p179 = scmp.eq.s32.totalorder %s38, 0
      %p180 = por %p178, %p179
      %p181 = scmp.ne.s32.totalorder %s169, %s170
      %p182 = scmp.eq.s32.totalorder %s39, 19
      %p183 = por %p181, %p182
      %p185 = scmp.ne.s32.totalorder %s170, %s184
      %p186 = scmp.eq.s32.totalorder %s39, 0
      %p187 = por %p185, %p186
      %s189 = sadd.s32 %s188, 1
      %p192 = scmp.eq.s32.totalorder %s33, 19
      %p193 = scmp.ne.s32.totalorder %s188, %s190
      %p194 = scmp.eq.s32.totalorder %s33, 0
      %p195 = por %p193, %p194
      %p196 = scmp.ne.s32.totalorder %s188, %s190
      %p197 = scmp.eq.s32.totalorder %s38, 19
      %p198 = por %p196, %p197
      %p199 = scmp.ne.s32.totalorder %s190, %s191
      %p200 = scmp.eq.s32.totalorder %s38, 0
      %p201 = por %p199, %p200
      %p202 = scmp.ne.s32.totalorder %s190, %s191
      %p203 = scmp.eq.s32.totalorder %s39, 19
      %p204 = por %p202, %p203
      %p206 = scmp.ne.s32.totalorder %s191, %s205
      %p207 = scmp.eq.s32.totalorder %s39, 0
      %p208 = por %p206, %p207
      %s210 = sadd.s32 %s209, 1
      %p213 = scmp.eq.s32.totalorder %s33, 19
      %p214 = scmp.ne.s32.totalorder %s209, %s211
      %p215 = scmp.eq.s32.totalorder %s33, 0
      %p216 = por %p214, %p215
      %p217 = scmp.ne.s32.totalorder %s209, %s211
      %p218 = scmp.eq.s32.totalorder %s38, 19
      %p219 = por %p217, %p218
      %p220 = scmp.ne.s32.totalorder %s211, %s212
      %p221 = scmp.eq.s32.totalorder %s38, 0
      %p222 = por %p220, %p221
      %p223 = scmp.ne.s32.totalorder %s211, %s212
      %p224 = scmp.eq.s32.totalorder %s39, 19
      %p225 = por %p223, %p224
      %p227 = scmp.ne.s32.totalorder %s212, %s226
      %p228 = scmp.eq.s32.totalorder %s39, 0
      %p229 = por %p227, %p228
      %s231 = sadd.s32 %s230, 1
      %p234 = scmp.eq.s32.totalorder %s33, 19
      %p235 = scmp.ne.s32.totalorder %s230, %s232
      %p236 = scmp.eq.s32.totalorder %s33, 0
      %p237 = por %p235, %p236
      %p238 = scmp.ne.s32.totalorder %s230, %s232
      %p239 = scmp.eq.s32.totalorder %s38, 19
      %p240 = por %p238, %p239
      %p241 = scmp.ne.s32.totalorder %s232, %s233
      %p242 = scmp.eq.s32.totalorder %s38, 0
      %p243 = por %p241, %p242
      %p244 = scmp.ne.s32.totalorder %s232, %s233
      %p245 = scmp.eq.s32.totalorder %s39, 19
      %p246 = por %p244, %p245
      %p248 = scmp.ne.s32.totalorder %s233, %s247
      %p249 = scmp.eq.s32.totalorder %s39, 0
      %p250 = por %p248, %p249
      %s251 = sld [smem:[#allocation9 + %s41]]
      %s252 = sld [smem:[#allocation9 + %s48]]
      %s253 = ssub.s32 %s40, %s52
      %s254 = ssub.s32 %s251, %s252
      %s255 = sor.u32 %s253, %s254
      %p256 = scmp.eq.s32.totalorder %s255, 0
      %s258 = sadd.s32 %s257, 1
      %s259 = scalar_select %p256, %s257, %s258
      %p262 = pneg %p256
      %p263 = scmp.eq.s32.totalorder %s33, 19
      %p264 = por %p262, %p263
      %p265 = scmp.ne.s32.totalorder %s257, %s260
      %p266 = scmp.eq.s32.totalorder %s33, 0
      %p267 = por %p265, %p266
      %p268 = scmp.ne.s32.totalorder %s257, %s260
      %p269 = scmp.eq.s32.totalorder %s38, 19
      %p270 = por %p268, %p269
      %p271 = scmp.ne.s32.totalorder %s260, %s261
      %p272 = scmp.eq.s32.totalorder %s38, 0
      %p273 = por %p271, %p272
      %p274 = scmp.ne.s32.totalorder %s260, %s261
      %p275 = scmp.eq.s32.totalorder %s39, 19
      %p276 = por %p274, %p275
      %p278 = scmp.ne.s32.totalorder %s261, %s277
      %p279 = scmp.eq.s32.totalorder %s39, 0
      %p280 = por %p278, %p279
      %p281 = scmp.le.s32.totalorder 1, %s33
      %p282 = scmp.lt.s32.totalorder %s33, 21
      %p283 = pnand %p281, %p282
      %p284 = pneg %p283
      // Predicated region
      $region9: #{tpu_custom_call.1} parent=5 // pred_check
        _
      $region10: #{tpu_custom_call.1} parent=5 // pred_check_branch
        %286 = sbr.rel (%p283) target = $region12
      $region11: #{tpu_custom_call.1} parent=5 // pred_region
        %s287 = ssub.s32 %s33, 1
        // Predicated region
        $region13: #{tpu_custom_call.1} parent=11 // pred_check
          %p288 = pneg %p96
        $region14: #{tpu_custom_call.1} parent=11 // pred_check_branch
          %290 = sbr.rel (%p288) target = $region16
        $region15: #{tpu_custom_call.1} parent=11 // pred_region
          %s292 = ssub.s32 2048, 2048
          %293 = vsyncadd [#allocation15], %s292
          %s294 = sshll.u32 [#allocation14], 4
          %s295 = int_to_ptr.vmem [resolvable:$true] %s294
          %300 = dma.hbm_to_vmem [thread:$0]  %s3, 2048, %s295, [#allocation15], 128, 128, 8
        $region16: #{tpu_custom_call.1} parent=11 // pred_fallthru
          _
        // Predicated region
        $region17: #{tpu_custom_call.1} parent=11 // pred_check
          %p301 = pneg %p117
        $region18: #{tpu_custom_call.1} parent=11 // pred_check_branch
          %303 = sbr.rel (%p301) target = $region20
        $region19: #{tpu_custom_call.1} parent=11 // pred_region
          %s305 = ssub.s32 2048, 2048
          %306 = vsyncadd [#allocation15], %s305
          %s307 = sshll.u32 [#allocation16], 4
          %s308 = int_to_ptr.vmem [resolvable:$true] %s307
          %313 = dma.hbm_to_vmem [thread:$0]  %s4, 2048, %s308, [#allocation15], 128, 128, 8
        $region20: #{tpu_custom_call.1} parent=11 // pred_fallthru
          _
        // Predicated region
        $region21: #{tpu_custom_call.1} parent=11 // pred_check
          %p314 = pneg %p138
        $region22: #{tpu_custom_call.1} parent=11 // pred_check_branch
          %316 = sbr.rel (%p314) target = $region24
        $region23: #{tpu_custom_call.1} parent=11 // pred_region
          %s318 = ssub.s32 2048, 2048
          %319 = vsyncadd [#allocation18], %s318
          %s320 = sshll.u32 [#allocation17], 4
          %s321 = int_to_ptr.vmem [resolvable:$true] %s320
          %326 = dma.hbm_to_vmem [thread:$0]  %s5, 2048, %s321, [#allocation18], 128, 128, 8
        $region24: #{tpu_custom_call.1} parent=11 // pred_fallthru
          _
        // Predicated region
        $region25: #{tpu_custom_call.1} parent=11 // pred_check
          %p327 = pneg %p159
        $region26: #{tpu_custom_call.1} parent=11 // pred_check_branch
          %329 = sbr.rel (%p327) target = $region28
        $region27: #{tpu_custom_call.1} parent=11 // pred_region
          %s331 = ssub.s32 2048, 2048
          %332 = vsyncadd [#allocation18], %s331
          %s333 = sshll.u32 [#allocation19], 4
          %s334 = int_to_ptr.vmem [resolvable:$true] %s333
          %339 = dma.hbm_to_vmem [thread:$0]  %s6, 2048, %s334, [#allocation18], 128, 128, 8
        $region28: #{tpu_custom_call.1} parent=11 // pred_fallthru
          _
        // Predicated region
        $region29: #{tpu_custom_call.1} parent=11 // pred_check
          %p340 = pneg %p180
        $region30: #{tpu_custom_call.1} parent=11 // pred_check_branch
          %342 = sbr.rel (%p340) target = $region32
        $region31: #{tpu_custom_call.1} parent=11 // pred_region
          _
        $region32: #{tpu_custom_call.1} parent=11 // pred_fallthru
          _
        // Predicated region
        $region33: #{tpu_custom_call.1} parent=11 // pred_check
          %p343 = pneg %p201
        $region34: #{tpu_custom_call.1} parent=11 // pred_check_branch
          %345 = sbr.rel (%p343) target = $region36
        $region35: #{tpu_custom_call.1} parent=11 // pred_region
          _
        $region36: #{tpu_custom_call.1} parent=11 // pred_fallthru
          _
        // Predicated region
        $region37: #{tpu_custom_call.1} parent=11 // pred_check
          %p346 = pneg %p222
        $region38: #{tpu_custom_call.1} parent=11 // pred_check_branch
          %348 = sbr.rel (%p346) target = $region40
        $region39: #{tpu_custom_call.1} parent=11 // pred_region
          _
        $region40: #{tpu_custom_call.1} parent=11 // pred_fallthru
          _
        // Predicated region
        $region41: #{tpu_custom_call.1} parent=11 // pred_check
          %p349 = pneg %p243
        $region42: #{tpu_custom_call.1} parent=11 // pred_check_branch
          %351 = sbr.rel (%p349) target = $region44
        $region43: #{tpu_custom_call.1} parent=11 // pred_region
          _
        $region44: #{tpu_custom_call.1} parent=11 // pred_fallthru
          _
      $region12: #{tpu_custom_call.1} parent=5 // pred_fallthru
        _
      %p352 = scmp.lt.s32.totalorder %s33, 20
      // Predicated region
      $region45: #{tpu_custom_call.1} parent=5 // pred_check
        %p353 = pneg %p352
      $region46: #{tpu_custom_call.1} parent=5 // pred_check_branch
        %355 = sbr.rel (%p353) target = $region48
      $region47: #{tpu_custom_call.1} parent=5 // pred_region
        // Predicated region
        $region49: #{tpu_custom_call.1} parent=47 // pred_check
          %p356 = pneg %p69
        $region50: #{tpu_custom_call.1} parent=47 // pred_check_branch
          %358 = sbr.rel (%p356) target = $region52
        $region51: #{tpu_custom_call.1} parent=47 // pred_region
          %s359 = sand.u32 %s59, 1
          %s360 = scalar_lea.sflag [#allocation12], %s359
          %s361 = sand.u32 %s59, 1
          %s362 = smul.addr %s361, 128
          %s363 = scalar_lea.vmem [#allocation11], %s362
          %s364 = sld [smem:[#allocation9 + %s41]]
          %s365 = smul.u32 16, %s364
          %s367 = ssub.s32 2048, 2048
          %368 = vsyncadd %s360, %s367
          %s369 = smul.addr %s40, 64
          %s370 = sadd.s32 %s365, %s369
          %s371 = smul.addr %s370, 128
          %s372 = scalar_lea.hbm %s2, %s371
          %s373 = sshll.u32 %s363, 4
          %s374 = int_to_ptr.vmem [resolvable:$true] %s373
          %379 = dma.hbm_to_vmem [thread:$0]  %s372, 2048, %s374, %s360, 128, 128, 8
        $region52: #{tpu_custom_call.1} parent=47 // pred_fallthru
          _
      $region48: #{tpu_custom_call.1} parent=5 // pred_fallthru
        _
      %p380 = scmp.le.s32.totalorder 1, %s33
      %p381 = scmp.lt.s32.totalorder %s33, 21
      %p382 = pnand %p380, %p381
      %p383 = pneg %p382
      // Predicated region
      $region53: #{tpu_custom_call.1} parent=5 // pred_check
        _
      $region54: #{tpu_custom_call.1} parent=5 // pred_check_branch
        %385 = sbr.rel (%p382) target = $region56
      $region55: #{tpu_custom_call.1} parent=5 // pred_region
        %s386 = ssub.s32 %s33, 1
        %s387 = sand.u32 %s62, 1
        %s388 = scalar_lea.sflag [#allocation12], %s387
        %s389 = sand.u32 %s62, 1
        %s390 = smul.addr %s389, 128
        %s391 = scalar_lea.vmem [#allocation11], %s390
        // Predicated region
        $region57: #{tpu_custom_call.1} parent=55 // pred_check
          %p392 = pneg %p75
        $region58: #{tpu_custom_call.1} parent=55 // pred_check_branch
          %394 = sbr.rel (%p392) target = $region60
        $region59: #{tpu_custom_call.1} parent=55 // pred_region
          %395 = dma.done %s388, 2048
        $region60: #{tpu_custom_call.1} parent=55 // pred_fallthru
          _
        // Predicated region
        $region61: #{tpu_custom_call.1} parent=55 // pred_check
          %p396 = pneg %p96
        $region62: #{tpu_custom_call.1} parent=55 // pred_check_branch
          %398 = sbr.rel (%p396) target = $region64
        $region63: #{tpu_custom_call.1} parent=55 // pred_region
          %399 = dma.done [#allocation15], 2048
        $region64: #{tpu_custom_call.1} parent=55 // pred_fallthru
          _
        // Predicated region
        $region65: #{tpu_custom_call.1} parent=55 // pred_check
          %p400 = pneg %p117
        $region66: #{tpu_custom_call.1} parent=55 // pred_check_branch
          %402 = sbr.rel (%p400) target = $region68
        $region67: #{tpu_custom_call.1} parent=55 // pred_region
          %403 = dma.done [#allocation15], 2048
        $region68: #{tpu_custom_call.1} parent=55 // pred_fallthru
          _
        // Predicated region
        $region69: #{tpu_custom_call.1} parent=55 // pred_check
          %p404 = pneg %p138
        $region70: #{tpu_custom_call.1} parent=55 // pred_check_branch
          %406 = sbr.rel (%p404) target = $region72
        $region71: #{tpu_custom_call.1} parent=55 // pred_region
          %407 = dma.done [#allocation18], 2048
        $region72: #{tpu_custom_call.1} parent=55 // pred_fallthru
          _
        // Predicated region
        $region73: #{tpu_custom_call.1} parent=55 // pred_check
          %p408 = pneg %p159
        $region74: #{tpu_custom_call.1} parent=55 // pred_check_branch
          %410 = sbr.rel (%p408) target = $region76
        $region75: #{tpu_custom_call.1} parent=55 // pred_region
          %411 = dma.done [#allocation18], 2048
        $region76: #{tpu_custom_call.1} parent=55 // pred_fallthru
          _
        %s412 = sand.u32 %s62, 1
        %s413 = scalar_lea.sflag [#allocation12], %s412
        %s414 = sand.u32 %s62, 1
        %s415 = smul.addr %s414, 128
        %s416 = scalar_lea.vmem [#allocation11], %s415
        %p417 = pneg %p75
        %p418 = pneg %p72
        %p419 = pneg %p96
        %p420 = pneg %p93
        %p421 = pneg %p117
        %p422 = pneg %p114
        %p423 = pneg %p138
        %p424 = pneg %p135
        %p425 = pneg %p159
        %p426 = pneg %p156
        %p427 = pneg %p180
        %p428 = pneg %p177
        %p429 = pneg %p201
        %p430 = pneg %p198
        %p431 = pneg %p222
        %p432 = pneg %p219
        %p433 = pneg %p243
        %p434 = pneg %p240
        %p435 = pneg %p273
        %p436 = pneg %p270
        %s437 = sand.u32 %s260, 1
        %s438 = scalar_lea.sflag [#allocation13], %s437
        %s439 = sand.u32 %s260, 1
        %s440 = smul.addr %s439, 128
        %s441 = scalar_lea.vmem [#allocation20], %s440
        %s442 = sld [smem:[#allocation9 + %s43]]
        %s443 = smul.u32 16, %s442
        %s444 = sld [smem:[#allocation9 + %s43]]
        %s445 = smul.u32 16, %s444
        %s446 = sld [smem:[#allocation9 + %s43]]
        %s447 = sld [smem:[#allocation10 + %s43]]
        %p448 = scmp.eq.s32.totalorder %s447, 0
        // Predicated region
        $region77: #{tpu_custom_call.1} parent=55 // pred_check
          %p449 = pneg %p448
        $region78: #{tpu_custom_call.1} parent=55 // pred_check_branch
          %451 = sbr.rel (%p449) target = $region80
        $region79: #{tpu_custom_call.1} parent=55 // pred_region
          %v452 = vld [vmem:[%s391] sm:$0xff]
          %v453 = vld [vmem:[%s391 + $0x8] sm:$0xff]
          %v454 = vld [vmem:[%s391 + $0x10] sm:$0xff]
          %v455 = vld [vmem:[%s391 + $0x18] sm:$0xff]
          %v456 = vld [vmem:[%s391 + $0x20] sm:$0xff]
          %v457 = vld [vmem:[%s391 + $0x28] sm:$0xff]
          %v458 = vld [vmem:[%s391 + $0x30] sm:$0xff]
          %v459 = vld [vmem:[%s391 + $0x38] sm:$0xff]
          %v460 = vld [vmem:[%s391 + $0x40] sm:$0xff]
          %v461 = vld [vmem:[%s391 + $0x48] sm:$0xff]
          %v462 = vld [vmem:[%s391 + $0x50] sm:$0xff]
          %v463 = vld [vmem:[%s391 + $0x58] sm:$0xff]
          %v464 = vld [vmem:[%s391 + $0x60] sm:$0xff]
          %v465 = vld [vmem:[%s391 + $0x68] sm:$0xff]
          %v466 = vld [vmem:[%s391 + $0x70] sm:$0xff]
          %v467 = vld [vmem:[%s391 + $0x78] sm:$0xff]
          %v468 = vld [vmem:[#allocation14] sm:$0xff]
          %v469 = vld [vmem:[#allocation14 + $0x8] sm:$0xff]
          %v470 = vld [vmem:[#allocation14 + $0x10] sm:$0xff]
          %v471 = vld [vmem:[#allocation14 + $0x18] sm:$0xff]
          %v472 = vld [vmem:[#allocation14 + $0x20] sm:$0xff]
          %v473 = vld [vmem:[#allocation14 + $0x28] sm:$0xff]
          %v474 = vld [vmem:[#allocation14 + $0x30] sm:$0xff]
          %v475 = vld [vmem:[#allocation14 + $0x38] sm:$0xff]
          %v476 = vld [vmem:[#allocation14 + $0x40] sm:$0xff]
          %v477 = vld [vmem:[#allocation14 + $0x48] sm:$0xff]
          %v478 = vld [vmem:[#allocation14 + $0x50] sm:$0xff]
          %v479 = vld [vmem:[#allocation14 + $0x58] sm:$0xff]
          %v480 = vld [vmem:[#allocation14 + $0x60] sm:$0xff]
          %v481 = vld [vmem:[#allocation14 + $0x68] sm:$0xff]
          %v482 = vld [vmem:[#allocation14 + $0x70] sm:$0xff]
          %v483 = vld [vmem:[#allocation14 + $0x78] sm:$0xff]
          %v484 = vld [vmem:[%s7] sm:$0x1]
          %v486 = vlaneseq
          %v487 = vshrl.u32 %v486, 7
          %v488 = vsub.s32 0, %v487
          %v489 = vrot.slane %v484, %v488
          %491 = vmatprep.subr.mxu0 0.0
          %492 = vmatpush1.msra.mxu0 %v468
          %493 = vmatprep.subr.mxu0 0.0
          %494 = vmatpush1.msra.mxu0 %v469
          %495 = vmatprep.subr.mxu0 0.0
          %496 = vmatpush1.msra.mxu0 %v470
          %497 = vmatprep.subr.mxu0 0.0
          %498 = vmatpush1.msra.mxu0 %v471
          %499 = vmatprep.subr.mxu0 0.0
          %500 = vmatpush1.msra.mxu0 %v472
          %501 = vmatprep.subr.mxu0 0.0
          %502 = vmatpush1.msra.mxu0 %v473
          %503 = vmatprep.subr.mxu0 0.0
          %504 = vmatpush1.msra.mxu0 %v474
          %505 = vmatprep.subr.mxu0 0.0
          %506 = vmatpush1.msra.mxu0 %v475
          %507 = vmatprep.subr.mxu0 0.0
          %508 = vmatpush1.msra.mxu0 %v476
          %509 = vmatprep.subr.mxu0 0.0
          %510 = vmatpush1.msra.mxu0 %v477
          %511 = vmatprep.subr.mxu0 0.0
          %512 = vmatpush1.msra.mxu0 %v478
          %513 = vmatprep.subr.mxu0 0.0
          %514 = vmatpush1.msra.mxu0 %v479
          %515 = vmatprep.subr.mxu0 0.0
          %516 = vmatpush1.msra.mxu0 %v480
          %517 = vmatprep.subr.mxu0 0.0
          %518 = vmatpush1.msra.mxu0 %v481
          %519 = vmatprep.subr.mxu0 0.0
          %520 = vmatpush1.msra.mxu0 %v482
          %521 = vmatprep.subr.mxu0 0.0
          %522 = vmatpush1.msra.mxu0 %v483
          %523 = vmatprep.subr.mxu0 0.0
          %524 = vmatpush1.msra.mxu0 0.0
          %525 = vmatprep.subr.mxu0 0.0
          %526 = vmatpush1.msra.mxu0 0.0
          %527 = vmatprep.subr.mxu0 0.0
          %528 = vmatpush1.msra.mxu0 0.0
          %529 = vmatprep.subr.mxu0 0.0
          %530 = vmatpush1.msra.mxu0 0.0
          %531 = vmatprep.subr.mxu0 0.0
          %532 = vmatpush1.msra.mxu0 0.0
          %533 = vmatprep.subr.mxu0 0.0
          %534 = vmatpush1.msra.mxu0 0.0
          %535 = vmatprep.subr.mxu0 0.0
          %536 = vmatpush1.msra.mxu0 0.0
          %537 = vmatprep.subr.mxu0 0.0
          %538 = vmatpush1.msra.mxu0 0.0
          %539 = vmatprep.subr.mxu0 0.0
          %540 = vmatpush1.msra.mxu0 0.0
          %541 = vmatprep.subr.mxu0 0.0
          %542 = vmatpush1.msra.mxu0 0.0
          %543 = vmatprep.subr.mxu0 0.0
          %544 = vmatpush1.msra.mxu0 0.0
          %545 = vmatprep.subr.mxu0 0.0
          %546 = vmatpush1.msra.mxu0 0.0
          %547 = vmatprep.subr.mxu0 0.0
          %548 = vmatpush1.msra.mxu0 0.0
          %549 = vmatprep.subr.mxu0 0.0
          %550 = vmatpush1.msra.mxu0 0.0
          %551 = vmatprep.subr.mxu0 0.0
          %552 = vmatpush1.msra.mxu0 0.0
          %553 = vmatprep.subr.mxu0 0.0
          %554 = vmatpush1.msra.mxu0 0.0
          %555 = vmatprep.mubr.f32.mxu0 0.0
          %556 = vmatmul.mubr.f32.gmra.mrb[0].mxu0 %v452
          %v557 = vpop.f32.mrb[0].mxu0
          %v558 = vadd.f32 %v489, %v557
          %v559 = vpop.f32.mrb[0].mxu0
          %560 = vmatprep.mubr.f32.mxu0 0.0
          %561 = vmatmul.mubr.f32.gmra.mrb[0].mxu0 %v453
          %v562 = vpop.f32.mrb[0].mxu0
          %v563 = vadd.f32 %v489, %v562
          %v564 = vpop.f32.mrb[0].mxu0
          %565 = vmatprep.mubr.f32.mxu0 0.0
          %566 = vmatmul.mubr.f32.gmra.mrb[0].mxu0 %v454
          %v567 = vpop.f32.mrb[0].mxu0
          %v568 = vadd.f32 %v489, %v567
          %v569 = vpop.f32.mrb[0].mxu0
          %570 = vmatprep.mubr.f32.mxu0 0.0
          %571 = vmatmul.mubr.f32.gmra.mrb[0].mxu0 %v455
          %v572 = vpop.f32.mrb[0].mxu0
          %v573 = vadd.f32 %v489, %v572
          %v574 = vpop.f32.mrb[0].mxu0
          %575 = vmatprep.mubr.f32.mxu0 0.0
          %576 = vmatmul.mubr.f32.gmra.mrb[0].mxu0 %v456
          %v577 = vpop.f32.mrb[0].mxu0
          %v578 = vadd.f32 %v489, %v577
          %v579 = vpop.f32.mrb[0].mxu0
          %580 = vmatprep.mubr.f32.mxu0 0.0
          %581 = vmatmul.mubr.f32.gmra.mrb[0].mxu0 %v457
          %v582 = vpop.f32.mrb[0].mxu0
          %v583 = vadd.f32 %v489, %v582
          %v584 = vpop.f32.mrb[0].mxu0
          %585 = vmatprep.mubr.f32.mxu0 0.0
          %586 = vmatmul.mubr.f32.gmra.mrb[0].mxu0 %v458
          %v587 = vpop.f32.mrb[0].mxu0
          %v588 = vadd.f32 %v489, %v587
          %v589 = vpop.f32.mrb[0].mxu0
          %590 = vmatprep.mubr.f32.mxu0 0.0
          %591 = vmatmul.mubr.f32.gmra.mrb[0].mxu0 %v459
          %v592 = vpop.f32.mrb[0].mxu0
          %v593 = vadd.f32 %v489, %v592
          %v594 = vpop.f32.mrb[0].mxu0
          %595 = vmatprep.mubr.f32.mxu0 0.0
          %596 = vmatmul.mubr.f32.gmra.mrb[0].mxu0 %v460
          %v597 = vpop.f32.mrb[0].mxu0
          %v598 = vadd.f32 %v489, %v597
          %v599 = vpop.f32.mrb[0].mxu0
          %600 = vmatprep.mubr.f32.mxu0 0.0
          %601 = vmatmul.mubr.f32.gmra.mrb[0].mxu0 %v461
          %v602 = vpop.f32.mrb[0].mxu0
          %v603 = vadd.f32 %v489, %v602
          %v604 = vpop.f32.mrb[0].mxu0
          %605 = vmatprep.mubr.f32.mxu0 0.0
          %606 = vmatmul.mubr.f32.gmra.mrb[0].mxu0 %v462
          %v607 = vpop.f32.mrb[0].mxu0
          %v608 = vadd.f32 %v489, %v607
          %v609 = vpop.f32.mrb[0].mxu0
          %610 = vmatprep.mubr.f32.mxu0 0.0
          %611 = vmatmul.mubr.f32.gmra.mrb[0].mxu0 %v463
          %v612 = vpop.f32.mrb[0].mxu0
          %v613 = vadd.f32 %v489, %v612
          %v614 = vpop.f32.mrb[0].mxu0
          %615 = vmatprep.mubr.f32.mxu0 0.0
          %616 = vmatmul.mubr.f32.gmra.mrb[0].mxu0 %v464
          %v617 = vpop.f32.mrb[0].mxu0
          %v618 = vadd.f32 %v489, %v617
          %v619 = vpop.f32.mrb[0].mxu0
          %620 = vmatprep.mubr.f32.mxu0 0.0
          %621 = vmatmul.mubr.f32.gmra.mrb[0].mxu0 %v465
          %v622 = vpop.f32.mrb[0].mxu0
          %v623 = vadd.f32 %v489, %v622
          %v624 = vpop.f32.mrb[0].mxu0
          %625 = vmatprep.mubr.f32.mxu0 0.0
          %626 = vmatmul.mubr.f32.gmra.mrb[0].mxu0 %v466
          %v627 = vpop.f32.mrb[0].mxu0
          %v628 = vadd.f32 %v489, %v627
          %v629 = vpop.f32.mrb[0].mxu0
          %630 = vmatprep.mubr.f32.mxu0 0.0
          %631 = vmatmul.mubr.f32.gmra.mrb[0].mxu0 %v467
          %v632 = vpop.f32.mrb[0].mxu0
          %v633 = vadd.f32 %v489, %v632
          %v634 = vpop.f32.mrb[0].mxu0
          %635 = vdwg.mxu0
          %v636 = vmul.f32 %v558, 0.125
          %v637 = vmul.f32 %v563, 0.125
          %v638 = vmul.f32 %v568, 0.125
          %v639 = vmul.f32 %v573, 0.125
          %v640 = vmul.f32 %v578, 0.125
          %v641 = vmul.f32 %v583, 0.125
          %v642 = vmul.f32 %v588, 0.125
          %v643 = vmul.f32 %v593, 0.125
          %v644 = vmul.f32 %v598, 0.125
          %v645 = vmul.f32 %v603, 0.125
          %v646 = vmul.f32 %v608, 0.125
          %v647 = vmul.f32 %v613, 0.125
          %v648 = vmul.f32 %v618, 0.125
          %v649 = vmul.f32 %v623, 0.125
          %v650 = vmul.f32 %v628, 0.125
          %v651 = vmul.f32 %v633, 0.125
          %668 = vrot.lane.b32.xlu0 %v636, 64
          %v669 = vpop.permute.xlu0 %668
          %670 = vrot.lane.b32.xlu0 %v637, 64
          %v671 = vpop.permute.xlu0 %670
          %672 = vrot.lane.b32.xlu0 %v638, 64
          %v673 = vpop.permute.xlu0 %672
          %674 = vrot.lane.b32.xlu0 %v639, 64
          %v675 = vpop.permute.xlu0 %674
          %676 = vrot.lane.b32.xlu0 %v640, 64
          %v677 = vpop.permute.xlu0 %676
          %678 = vrot.lane.b32.xlu0 %v641, 64
          %v679 = vpop.permute.xlu0 %678
          %680 = vrot.lane.b32.xlu0 %v642, 64
          %v681 = vpop.permute.xlu0 %680
          %682 = vrot.lane.b32.xlu0 %v643, 64
          %v683 = vpop.permute.xlu0 %682
          %684 = vrot.lane.b32.xlu0 %v644, 64
          %v685 = vpop.permute.xlu0 %684
          %686 = vrot.lane.b32.xlu0 %v645, 64
          %v687 = vpop.permute.xlu0 %686
          %688 = vrot.lane.b32.xlu0 %v646, 64
          %v689 = vpop.permute.xlu0 %688
          %690 = vrot.lane.b32.xlu0 %v647, 64
          %v691 = vpop.permute.xlu0 %690
          %692 = vrot.lane.b32.xlu0 %v648, 64
          %v693 = vpop.permute.xlu0 %692
          %694 = vrot.lane.b32.xlu0 %v649, 64
          %v695 = vpop.permute.xlu0 %694
          %696 = vrot.lane.b32.xlu0 %v650, 64
          %v697 = vpop.permute.xlu0 %696
          %698 = vrot.lane.b32.xlu0 %v651, 64
          %v699 = vpop.permute.xlu0 %698
          %vm716 = vcmask 523264
          %717 = vst.msk [vmem:[#allocation2] sm:$0xff] %vm716, %v636
          %718 = vst.msk [vmem:[#allocation2 + $0x8] sm:$0xff] %vm716, %v637
          %719 = vst.msk [vmem:[#allocation2 + $0x10] sm:$0xff] %vm716, %v638
          %720 = vst.msk [vmem:[#allocation2 + $0x18] sm:$0xff] %vm716, %v639
          %721 = vst.msk [vmem:[#allocation2 + $0x20] sm:$0xff] %vm716, %v640
          %722 = vst.msk [vmem:[#allocation2 + $0x28] sm:$0xff] %vm716, %v641
          %723 = vst.msk [vmem:[#allocation2 + $0x30] sm:$0xff] %vm716, %v642
          %724 = vst.msk [vmem:[#allocation2 + $0x38] sm:$0xff] %vm716, %v643
          %725 = vst.msk [vmem:[#allocation2 + $0x40] sm:$0xff] %vm716, %v644
          %726 = vst.msk [vmem:[#allocation2 + $0x48] sm:$0xff] %vm716, %v645
          %727 = vst.msk [vmem:[#allocation2 + $0x50] sm:$0xff] %vm716, %v646
          %728 = vst.msk [vmem:[#allocation2 + $0x58] sm:$0xff] %vm716, %v647
          %729 = vst.msk [vmem:[#allocation2 + $0x60] sm:$0xff] %vm716, %v648
          %730 = vst.msk [vmem:[#allocation2 + $0x68] sm:$0xff] %vm716, %v649
          %731 = vst.msk [vmem:[#allocation2 + $0x70] sm:$0xff] %vm716, %v650
          %732 = vst.msk [vmem:[#allocation2 + $0x78] sm:$0xff] %vm716, %v651
          %733 = vst.msk [vmem:[#allocation2 + $0x80] sm:$0xff] %vm716, %v669
          %734 = vst.msk [vmem:[#allocation2 + $0x88] sm:$0xff] %vm716, %v671
          %735 = vst.msk [vmem:[#allocation2 + $0x90] sm:$0xff] %vm716, %v673
          %736 = vst.msk [vmem:[#allocation2 + $0x98] sm:$0xff] %vm716, %v675
          %737 = vst.msk [vmem:[#allocation2 + $0xa0] sm:$0xff] %vm716, %v677
          %738 = vst.msk [vmem:[#allocation2 + $0xa8] sm:$0xff] %vm716, %v679
          %739 = vst.msk [vmem:[#allocation2 + $0xb0] sm:$0xff] %vm716, %v681
          %740 = vst.msk [vmem:[#allocation2 + $0xb8] sm:$0xff] %vm716, %v683
          %741 = vst.msk [vmem:[#allocation2 + $0xc0] sm:$0xff] %vm716, %v685
          %742 = vst.msk [vmem:[#allocation2 + $0xc8] sm:$0xff] %vm716, %v687
          %743 = vst.msk [vmem:[#allocation2 + $0xd0] sm:$0xff] %vm716, %v689
          %744 = vst.msk [vmem:[#allocation2 + $0xd8] sm:$0xff] %vm716, %v691
          %745 = vst.msk [vmem:[#allocation2 + $0xe0] sm:$0xff] %vm716, %v693
          %746 = vst.msk [vmem:[#allocation2 + $0xe8] sm:$0xff] %vm716, %v695
          %747 = vst.msk [vmem:[#allocation2 + $0xf0] sm:$0xff] %vm716, %v697
          %748 = vst.msk [vmem:[#allocation2 + $0xf8] sm:$0xff] %vm716, %v699
          %vm749 = vcmask 7168
          %750 = vst.msk [vmem:[#allocation6] sm:$0xff] %vm749, -1e+30
          %751 = vst.msk [vmem:[#allocation6 + $0x8] sm:$0xff] %vm749, -1e+30
          %752 = vst.msk [vmem:[#allocation6 + $0x10] sm:$0xff] %vm749, -1e+30
          %753 = vst.msk [vmem:[#allocation6 + $0x18] sm:$0xff] %vm749, -1e+30
          %754 = vst.msk [vmem:[#allocation6 + $0x20] sm:$0xff] %vm749, -1e+30
          %755 = vst.msk [vmem:[#allocation6 + $0x28] sm:$0xff] %vm749, -1e+30
          %756 = vst.msk [vmem:[#allocation6 + $0x30] sm:$0xff] %vm749, -1e+30
          %757 = vst.msk [vmem:[#allocation6 + $0x38] sm:$0xff] %vm749, -1e+30
          %758 = vst.msk [vmem:[#allocation6 + $0x40] sm:$0xff] %vm749, -1e+30
          %759 = vst.msk [vmem:[#allocation6 + $0x48] sm:$0xff] %vm749, -1e+30
          %760 = vst.msk [vmem:[#allocation6 + $0x50] sm:$0xff] %vm749, -1e+30
          %761 = vst.msk [vmem:[#allocation6 + $0x58] sm:$0xff] %vm749, -1e+30
          %762 = vst.msk [vmem:[#allocation6 + $0x60] sm:$0xff] %vm749, -1e+30
          %763 = vst.msk [vmem:[#allocation6 + $0x68] sm:$0xff] %vm749, -1e+30
          %764 = vst.msk [vmem:[#allocation6 + $0x70] sm:$0xff] %vm749, -1e+30
          %765 = vst.msk [vmem:[#allocation6 + $0x78] sm:$0xff] %vm749, -1e+30
          %766 = vst.msk [vmem:[#allocation6 + $0x80] sm:$0xff] %vm749, -1e+30
          %767 = vst.msk [vmem:[#allocation6 + $0x88] sm:$0xff] %vm749, -1e+30
          %768 = vst.msk [vmem:[#allocation6 + $0x90] sm:$0xff] %vm749, -1e+30
          %769 = vst.msk [vmem:[#allocation6 + $0x98] sm:$0xff] %vm749, -1e+30
          %770 = vst.msk [vmem:[#allocation6 + $0xa0] sm:$0xff] %vm749, -1e+30
          %771 = vst.msk [vmem:[#allocation6 + $0xa8] sm:$0xff] %vm749, -1e+30
          %772 = vst.msk [vmem:[#allocation6 + $0xb0] sm:$0xff] %vm749, -1e+30
          %773 = vst.msk [vmem:[#allocation6 + $0xb8] sm:$0xff] %vm749, -1e+30
          %774 = vst.msk [vmem:[#allocation6 + $0xc0] sm:$0xff] %vm749, -1e+30
          %775 = vst.msk [vmem:[#allocation6 + $0xc8] sm:$0xff] %vm749, -1e+30
          %776 = vst.msk [vmem:[#allocation6 + $0xd0] sm:$0xff] %vm749, -1e+30
          %777 = vst.msk [vmem:[#allocation6 + $0xd8] sm:$0xff] %vm749, -1e+30
          %778 = vst.msk [vmem:[#allocation6 + $0xe0] sm:$0xff] %vm749, -1e+30
          %779 = vst.msk [vmem:[#allocation6 + $0xe8] sm:$0xff] %vm749, -1e+30
          %780 = vst.msk [vmem:[#allocation6 + $0xf0] sm:$0xff] %vm749, -1e+30
          %781 = vst.msk [vmem:[#allocation6 + $0xf8] sm:$0xff] %vm749, -1e+30
          %782 = vst.msk [vmem:[#allocation7] sm:$0xff] %vm749, 0.0
          %783 = vst.msk [vmem:[#allocation7 + $0x8] sm:$0xff] %vm749, 0.0
          %784 = vst.msk [vmem:[#allocation7 + $0x10] sm:$0xff] %vm749, 0.0
          %785 = vst.msk [vmem:[#allocation7 + $0x18] sm:$0xff] %vm749, 0.0
          %786 = vst.msk [vmem:[#allocation7 + $0x20] sm:$0xff] %vm749, 0.0
          %787 = vst.msk [vmem:[#allocation7 + $0x28] sm:$0xff] %vm749, 0.0
          %788 = vst.msk [vmem:[#allocation7 + $0x30] sm:$0xff] %vm749, 0.0
          %789 = vst.msk [vmem:[#allocation7 + $0x38] sm:$0xff] %vm749, 0.0
          %790 = vst.msk [vmem:[#allocation7 + $0x40] sm:$0xff] %vm749, 0.0
          %791 = vst.msk [vmem:[#allocation7 + $0x48] sm:$0xff] %vm749, 0.0
          %792 = vst.msk [vmem:[#allocation7 + $0x50] sm:$0xff] %vm749, 0.0
          %793 = vst.msk [vmem:[#allocation7 + $0x58] sm:$0xff] %vm749, 0.0
          %794 = vst.msk [vmem:[#allocation7 + $0x60] sm:$0xff] %vm749, 0.0
          %795 = vst.msk [vmem:[#allocation7 + $0x68] sm:$0xff] %vm749, 0.0
          %796 = vst.msk [vmem:[#allocation7 + $0x70] sm:$0xff] %vm749, 0.0
          %797 = vst.msk [vmem:[#allocation7 + $0x78] sm:$0xff] %vm749, 0.0
          %798 = vst.msk [vmem:[#allocation7 + $0x80] sm:$0xff] %vm749, 0.0
          %799 = vst.msk [vmem:[#allocation7 + $0x88] sm:$0xff] %vm749, 0.0
          %800 = vst.msk [vmem:[#allocation7 + $0x90] sm:$0xff] %vm749, 0.0
          %801 = vst.msk [vmem:[#allocation7 + $0x98] sm:$0xff] %vm749, 0.0
          %802 = vst.msk [vmem:[#allocation7 + $0xa0] sm:$0xff] %vm749, 0.0
          %803 = vst.msk [vmem:[#allocation7 + $0xa8] sm:$0xff] %vm749, 0.0
          %804 = vst.msk [vmem:[#allocation7 + $0xb0] sm:$0xff] %vm749, 0.0
          %805 = vst.msk [vmem:[#allocation7 + $0xb8] sm:$0xff] %vm749, 0.0
          %806 = vst.msk [vmem:[#allocation7 + $0xc0] sm:$0xff] %vm749, 0.0
          %807 = vst.msk [vmem:[#allocation7 + $0xc8] sm:$0xff] %vm749, 0.0
          %808 = vst.msk [vmem:[#allocation7 + $0xd0] sm:$0xff] %vm749, 0.0
          %809 = vst.msk [vmem:[#allocation7 + $0xd8] sm:$0xff] %vm749, 0.0
          %810 = vst.msk [vmem:[#allocation7 + $0xe0] sm:$0xff] %vm749, 0.0
          %811 = vst.msk [vmem:[#allocation7 + $0xe8] sm:$0xff] %vm749, 0.0
          %812 = vst.msk [vmem:[#allocation7 + $0xf0] sm:$0xff] %vm749, 0.0
          %813 = vst.msk [vmem:[#allocation7 + $0xf8] sm:$0xff] %vm749, 0.0
          %814 = vst.msk [vmem:[#allocation5] sm:$0xff] %vm716, 0.0
          %815 = vst.msk [vmem:[#allocation5 + $0x8] sm:$0xff] %vm716, 0.0
          %816 = vst.msk [vmem:[#allocation5 + $0x10] sm:$0xff] %vm716, 0.0
          %817 = vst.msk [vmem:[#allocation5 + $0x18] sm:$0xff] %vm716, 0.0
          %818 = vst.msk [vmem:[#allocation5 + $0x20] sm:$0xff] %vm716, 0.0
          %819 = vst.msk [vmem:[#allocation5 + $0x28] sm:$0xff] %vm716, 0.0
          %820 = vst.msk [vmem:[#allocation5 + $0x30] sm:$0xff] %vm716, 0.0
          %821 = vst.msk [vmem:[#allocation5 + $0x38] sm:$0xff] %vm716, 0.0
          %822 = vst.msk [vmem:[#allocation5 + $0x40] sm:$0xff] %vm716, 0.0
          %823 = vst.msk [vmem:[#allocation5 + $0x48] sm:$0xff] %vm716, 0.0
          %824 = vst.msk [vmem:[#allocation5 + $0x50] sm:$0xff] %vm716, 0.0
          %825 = vst.msk [vmem:[#allocation5 + $0x58] sm:$0xff] %vm716, 0.0
          %826 = vst.msk [vmem:[#allocation5 + $0x60] sm:$0xff] %vm716, 0.0
          %827 = vst.msk [vmem:[#allocation5 + $0x68] sm:$0xff] %vm716, 0.0
          %828 = vst.msk [vmem:[#allocation5 + $0x70] sm:$0xff] %vm716, 0.0
          %829 = vst.msk [vmem:[#allocation5 + $0x78] sm:$0xff] %vm716, 0.0
          %830 = vst.msk [vmem:[#allocation5 + $0x80] sm:$0xff] %vm716, 0.0
          %831 = vst.msk [vmem:[#allocation5 + $0x88] sm:$0xff] %vm716, 0.0
          %832 = vst.msk [vmem:[#allocation5 + $0x90] sm:$0xff] %vm716, 0.0
          %833 = vst.msk [vmem:[#allocation5 + $0x98] sm:$0xff] %vm716, 0.0
          %834 = vst.msk [vmem:[#allocation5 + $0xa0] sm:$0xff] %vm716, 0.0
          %835 = vst.msk [vmem:[#allocation5 + $0xa8] sm:$0xff] %vm716, 0.0
          %836 = vst.msk [vmem:[#allocation5 + $0xb0] sm:$0xff] %vm716, 0.0
          %837 = vst.msk [vmem:[#allocation5 + $0xb8] sm:$0xff] %vm716, 0.0
          %838 = vst.msk [vmem:[#allocation5 + $0xc0] sm:$0xff] %vm716, 0.0
          %839 = vst.msk [vmem:[#allocation5 + $0xc8] sm:$0xff] %vm716, 0.0
          %840 = vst.msk [vmem:[#allocation5 + $0xd0] sm:$0xff] %vm716, 0.0
          %841 = vst.msk [vmem:[#allocation5 + $0xd8] sm:$0xff] %vm716, 0.0
          %842 = vst.msk [vmem:[#allocation5 + $0xe0] sm:$0xff] %vm716, 0.0
          %843 = vst.msk [vmem:[#allocation5 + $0xe8] sm:$0xff] %vm716, 0.0
          %844 = vst.msk [vmem:[#allocation5 + $0xf0] sm:$0xff] %vm716, 0.0
          %845 = vst.msk [vmem:[#allocation5 + $0xf8] sm:$0xff] %vm716, 0.0
        $region80: #{tpu_custom_call.1} parent=55 // pred_fallthru
          _
        %p846 = scmp.lt.s32.totalorder %s447, %s446
        // Predicated region
        $region81: #{tpu_custom_call.1} parent=55 // pred_check
          %p847 = pneg %p846
        $region82: #{tpu_custom_call.1} parent=55 // pred_check_branch
          %849 = sbr.rel (%p847) target = $region84
        $region83: #{tpu_custom_call.1} parent=55 // pred_region
          %s850 = smul.u32 %s447, 256
          %s851 = scalar_lea.vmem [#allocation3], %s850
          %v852 = vld [vmem:[%s851] sm:$0xff]
          %v853 = vld [vmem:[%s851 + $0x8] sm:$0xff]
          %v854 = vld [vmem:[%s851 + $0x10] sm:$0xff]
          %v855 = vld [vmem:[%s851 + $0x18] sm:$0xff]
          %v856 = vld [vmem:[%s851 + $0x20] sm:$0xff]
          %v857 = vld [vmem:[%s851 + $0x28] sm:$0xff]
          %v858 = vld [vmem:[%s851 + $0x30] sm:$0xff]
          %v859 = vld [vmem:[%s851 + $0x38] sm:$0xff]
          %v860 = vld [vmem:[%s851 + $0x40] sm:$0xff]
          %v861 = vld [vmem:[%s851 + $0x48] sm:$0xff]
          %v862 = vld [vmem:[%s851 + $0x50] sm:$0xff]
          %v863 = vld [vmem:[%s851 + $0x58] sm:$0xff]
          %v864 = vld [vmem:[%s851 + $0x60] sm:$0xff]
          %v865 = vld [vmem:[%s851 + $0x68] sm:$0xff]
          %v866 = vld [vmem:[%s851 + $0x70] sm:$0xff]
          %v867 = vld [vmem:[%s851 + $0x78] sm:$0xff]
          %v868 = vld [vmem:[%s851 + $0x80] sm:$0xff]
          %v869 = vld [vmem:[%s851 + $0x88] sm:$0xff]
          %v870 = vld [vmem:[%s851 + $0x90] sm:$0xff]
          %v871 = vld [vmem:[%s851 + $0x98] sm:$0xff]
          %v872 = vld [vmem:[%s851 + $0xa0] sm:$0xff]
          %v873 = vld [vmem:[%s851 + $0xa8] sm:$0xff]
          %v874 = vld [vmem:[%s851 + $0xb0] sm:$0xff]
          %v875 = vld [vmem:[%s851 + $0xb8] sm:$0xff]
          %v876 = vld [vmem:[%s851 + $0xc0] sm:$0xff]
          %v877 = vld [vmem:[%s851 + $0xc8] sm:$0xff]
          %v878 = vld [vmem:[%s851 + $0xd0] sm:$0xff]
          %v879 = vld [vmem:[%s851 + $0xd8] sm:$0xff]
          %v880 = vld [vmem:[%s851 + $0xe0] sm:$0xff]
          %v881 = vld [vmem:[%s851 + $0xe8] sm:$0xff]
          %v882 = vld [vmem:[%s851 + $0xf0] sm:$0xff]
          %v883 = vld [vmem:[%s851 + $0xf8] sm:$0xff]
          %s884 = scalar_lea.vmem [#allocation4], %s850
          %v885 = vld [vmem:[%s884] sm:$0xff]
          %v886 = vld [vmem:[%s884 + $0x8] sm:$0xff]
          %v887 = vld [vmem:[%s884 + $0x10] sm:$0xff]
          %v888 = vld [vmem:[%s884 + $0x18] sm:$0xff]
          %v889 = vld [vmem:[%s884 + $0x20] sm:$0xff]
          %v890 = vld [vmem:[%s884 + $0x28] sm:$0xff]
          %v891 = vld [vmem:[%s884 + $0x30] sm:$0xff]
          %v892 = vld [vmem:[%s884 + $0x38] sm:$0xff]
          %v893 = vld [vmem:[%s884 + $0x40] sm:$0xff]
          %v894 = vld [vmem:[%s884 + $0x48] sm:$0xff]
          %v895 = vld [vmem:[%s884 + $0x50] sm:$0xff]
          %v896 = vld [vmem:[%s884 + $0x58] sm:$0xff]
          %v897 = vld [vmem:[%s884 + $0x60] sm:$0xff]
          %v898 = vld [vmem:[%s884 + $0x68] sm:$0xff]
          %v899 = vld [vmem:[%s884 + $0x70] sm:$0xff]
          %v900 = vld [vmem:[%s884 + $0x78] sm:$0xff]
          %v901 = vld [vmem:[%s884 + $0x80] sm:$0xff]
          %v902 = vld [vmem:[%s884 + $0x88] sm:$0xff]
          %v903 = vld [vmem:[%s884 + $0x90] sm:$0xff]
          %v904 = vld [vmem:[%s884 + $0x98] sm:$0xff]
          %v905 = vld [vmem:[%s884 + $0xa0] sm:$0xff]
          %v906 = vld [vmem:[%s884 + $0xa8] sm:$0xff]
          %v907 = vld [vmem:[%s884 + $0xb0] sm:$0xff]
          %v908 = vld [vmem:[%s884 + $0xb8] sm:$0xff]
          %v909 = vld [vmem:[%s884 + $0xc0] sm:$0xff]
          %v910 = vld [vmem:[%s884 + $0xc8] sm:$0xff]
          %v911 = vld [vmem:[%s884 + $0xd0] sm:$0xff]
          %v912 = vld [vmem:[%s884 + $0xd8] sm:$0xff]
          %v913 = vld [vmem:[%s884 + $0xe0] sm:$0xff]
          %v914 = vld [vmem:[%s884 + $0xe8] sm:$0xff]
          %v915 = vld [vmem:[%s884 + $0xf0] sm:$0xff]
          %v916 = vld [vmem:[%s884 + $0xf8] sm:$0xff]
          %v917 = vld [vmem:[#allocation2] sm:$0xff]
          %v918 = vld [vmem:[#allocation2 + $0x8] sm:$0xff]
          %v919 = vld [vmem:[#allocation2 + $0x10] sm:$0xff]
          %v920 = vld [vmem:[#allocation2 + $0x18] sm:$0xff]
          %v921 = vld [vmem:[#allocation2 + $0x20] sm:$0xff]
          %v922 = vld [vmem:[#allocation2 + $0x28] sm:$0xff]
          %v923 = vld [vmem:[#allocation2 + $0x30] sm:$0xff]
          %v924 = vld [vmem:[#allocation2 + $0x38] sm:$0xff]
          %v925 = vld [vmem:[#allocation2 + $0x40] sm:$0xff]
          %v926 = vld [vmem:[#allocation2 + $0x48] sm:$0xff]
          %v927 = vld [vmem:[#allocation2 + $0x50] sm:$0xff]
          %v928 = vld [vmem:[#allocation2 + $0x58] sm:$0xff]
          %v929 = vld [vmem:[#allocation2 + $0x60] sm:$0xff]
          %v930 = vld [vmem:[#allocation2 + $0x68] sm:$0xff]
          %v931 = vld [vmem:[#allocation2 + $0x70] sm:$0xff]
          %v932 = vld [vmem:[#allocation2 + $0x78] sm:$0xff]
          %v933 = vld [vmem:[#allocation2 + $0x80] sm:$0xff]
          %v934 = vld [vmem:[#allocation2 + $0x88] sm:$0xff]
          %v935 = vld [vmem:[#allocation2 + $0x90] sm:$0xff]
          %v936 = vld [vmem:[#allocation2 + $0x98] sm:$0xff]
          %v937 = vld [vmem:[#allocation2 + $0xa0] sm:$0xff]
          %v938 = vld [vmem:[#allocation2 + $0xa8] sm:$0xff]
          %v939 = vld [vmem:[#allocation2 + $0xb0] sm:$0xff]
          %v940 = vld [vmem:[#allocation2 + $0xb8] sm:$0xff]
          %v941 = vld [vmem:[#allocation2 + $0xc0] sm:$0xff]
          %v942 = vld [vmem:[#allocation2 + $0xc8] sm:$0xff]
          %v943 = vld [vmem:[#allocation2 + $0xd0] sm:$0xff]
          %v944 = vld [vmem:[#allocation2 + $0xd8] sm:$0xff]
          %v945 = vld [vmem:[#allocation2 + $0xe0] sm:$0xff]
          %v946 = vld [vmem:[#allocation2 + $0xe8] sm:$0xff]
          %v947 = vld [vmem:[#allocation2 + $0xf0] sm:$0xff]
          %v948 = vld [vmem:[#allocation2 + $0xf8] sm:$0xff]
          %vm949 = vcmask 523264
          %v951 = vsel %vm949, %v917, 0
          %v954 = vsel %vm949, %v918, 0
          %v957 = vsel %vm949, %v919, 0
          %v960 = vsel %vm949, %v920, 0
          %v963 = vsel %vm949, %v921, 0
          %v966 = vsel %vm949, %v922, 0
          %v969 = vsel %vm949, %v923, 0
          %v972 = vsel %vm949, %v924, 0
          %v975 = vsel %vm949, %v925, 0
          %v978 = vsel %vm949, %v926, 0
          %v981 = vsel %vm949, %v927, 0
          %v984 = vsel %vm949, %v928, 0
          %v987 = vsel %vm949, %v929, 0
          %v990 = vsel %vm949, %v930, 0
          %v993 = vsel %vm949, %v931, 0
          %v996 = vsel %vm949, %v932, 0
          %v999 = vsel %vm949, %v852, 0
          %v1002 = vsel %vm949, %v853, 0
          %v1005 = vsel %vm949, %v854, 0
          %v1008 = vsel %vm949, %v855, 0
          %v1011 = vsel %vm949, %v856, 0
          %v1014 = vsel %vm949, %v857, 0
          %v1017 = vsel %vm949, %v858, 0
          %v1020 = vsel %vm949, %v859, 0
          %v1023 = vsel %vm949, %v860, 0
          %v1026 = vsel %vm949, %v861, 0
          %v1029 = vsel %vm949, %v862, 0
          %v1032 = vsel %vm949, %v863, 0
          %v1035 = vsel %vm949, %v864, 0
          %v1038 = vsel %vm949, %v865, 0
          %v1041 = vsel %vm949, %v866, 0
          %v1044 = vsel %vm949, %v867, 0
          %1046 = vmatprep.subr.mxu0 0.0
          %1047 = vmatpush1.xpose.msra.mxu0 %v999
          %1048 = vmatprep.subr.mxu0 0.0
          %1049 = vmatpush1.xpose.msra.mxu0 %v1002
          %1050 = vmatprep.subr.mxu0 0.0
          %1051 = vmatpush1.xpose.msra.mxu0 %v1005
          %1052 = vmatprep.subr.mxu0 0.0
          %1053 = vmatpush1.xpose.msra.mxu0 %v1008
          %1054 = vmatprep.subr.mxu0 0.0
          %1055 = vmatpush1.xpose.msra.mxu0 %v1011
          %1056 = vmatprep.subr.mxu0 0.0
          %1057 = vmatpush1.xpose.msra.mxu0 %v1014
          %1058 = vmatprep.subr.mxu0 0.0
          %1059 = vmatpush1.xpose.msra.mxu0 %v1017
          %1060 = vmatprep.subr.mxu0 0.0
          %1061 = vmatpush1.xpose.msra.mxu0 %v1020
          %1062 = vmatprep.subr.mxu0 0.0
          %1063 = vmatpush1.xpose.msra.mxu0 %v1023
          %1064 = vmatprep.subr.mxu0 0.0
          %1065 = vmatpush1.xpose.msra.mxu0 %v1026
          %1066 = vmatprep.subr.mxu0 0.0
          %1067 = vmatpush1.xpose.msra.mxu0 %v1029
          %1068 = vmatprep.subr.mxu0 0.0
          %1069 = vmatpush1.xpose.msra.mxu0 %v1032
          %1070 = vmatprep.subr.mxu0 0.0
          %1071 = vmatpush1.xpose.msra.mxu0 %v1035
          %1072 = vmatprep.subr.mxu0 0.0
          %1073 = vmatpush1.xpose.msra.mxu0 %v1038
          %1074 = vmatprep.subr.mxu0 0.0
          %1075 = vmatpush1.xpose.msra.mxu0 %v1041
          %1076 = vmatprep.subr.mxu0 0.0
          %1077 = vmatpush1.xpose.msra.mxu0 %v1044
          %1078 = vmatprep.subr.mxu0 0.0
          %1079 = vmatpush1.xpose.msra.mxu0 0.0
          %1080 = vmatprep.subr.mxu0 0.0
          %1081 = vmatpush1.xpose.msra.mxu0 0.0
          %1082 = vmatprep.subr.mxu0 0.0
          %1083 = vmatpush1.xpose.msra.mxu0 0.0
          %1084 = vmatprep.subr.mxu0 0.0
          %1085 = vmatpush1.xpose.msra.mxu0 0.0
          %1086 = vmatprep.subr.mxu0 0.0
          %1087 = vmatpush1.xpose.msra.mxu0 0.0
          %1088 = vmatprep.subr.mxu0 0.0
          %1089 = vmatpush1.xpose.msra.mxu0 0.0
          %1090 = vmatprep.subr.mxu0 0.0
          %1091 = vmatpush1.xpose.msra.mxu0 0.0
          %1092 = vmatprep.subr.mxu0 0.0
          %1093 = vmatpush1.xpose.msra.mxu0 0.0
          %1094 = vmatprep.subr.mxu0 0.0
          %1095 = vmatpush1.xpose.msra.mxu0 0.0
          %1096 = vmatprep.subr.mxu0 0.0
          %1097 = vmatpush1.xpose.msra.mxu0 0.0
          %1098 = vmatprep.subr.mxu0 0.0
          %1099 = vmatpush1.xpose.msra.mxu0 0.0
          %1100 = vmatprep.subr.mxu0 0.0
          %1101 = vmatpush1.xpose.msra.mxu0 0.0
          %1102 = vmatprep.subr.mxu0 0.0
          %1103 = vmatpush1.xpose.msra.mxu0 0.0
          %1104 = vmatprep.subr.mxu0 0.0
          %1105 = vmatpush1.xpose.msra.mxu0 0.0
          %1106 = vmatprep.subr.mxu0 0.0
          %1107 = vmatpush1.xpose.msra.mxu0 0.0
          %1108 = vmatprep.subr.mxu0 0.0
          %1109 = vmatpush1.xpose.msra.mxu0 0.0
          %1110 = vmatprep.mubr.f32.mxu0 0.0
          %1111 = vmatmul.mubr.f32.gmra.mrb[0].mxu0 %v951
          %v1112 = vpop.f32.mrb[0].mxu0
          %v1113 = vadd.f32 0.0, %v1112
          %v1114 = vpop.f32.mrb[0].mxu0
          %1115 = vmatprep.mubr.f32.mxu0 0.0
          %1116 = vmatmul.mubr.f32.gmra.mrb[0].mxu0 %v954
          %v1117 = vpop.f32.mrb[0].mxu0
          %v1118 = vadd.f32 0.0, %v1117
          %v1119 = vpop.f32.mrb[0].mxu0
          %1120 = vmatprep.mubr.f32.mxu0 0.0
          %1121 = vmatmul.mubr.f32.gmra.mrb[0].mxu0 %v957
          %v1122 = vpop.f32.mrb[0].mxu0
          %v1123 = vadd.f32 0.0, %v1122
          %v1124 = vpop.f32.mrb[0].mxu0
          %1125 = vmatprep.mubr.f32.mxu0 0.0
          %1126 = vmatmul.mubr.f32.gmra.mrb[0].mxu0 %v960
          %v1127 = vpop.f32.mrb[0].mxu0
          %v1128 = vadd.f32 0.0, %v1127
          %v1129 = vpop.f32.mrb[0].mxu0
          %1130 = vmatprep.mubr.f32.mxu0 0.0
          %1131 = vmatmul.mubr.f32.gmra.mrb[0].mxu0 %v963
          %v1132 = vpop.f32.mrb[0].mxu0
          %v1133 = vadd.f32 0.0, %v1132
          %v1134 = vpop.f32.mrb[0].mxu0
          %1135 = vmatprep.mubr.f32.mxu0 0.0
          %1136 = vmatmul.mubr.f32.gmra.mrb[0].mxu0 %v966
          %v1137 = vpop.f32.mrb[0].mxu0
          %v1138 = vadd.f32 0.0, %v1137
          %v1139 = vpop.f32.mrb[0].mxu0
          %1140 = vmatprep.mubr.f32.mxu0 0.0
          %1141 = vmatmul.mubr.f32.gmra.mrb[0].mxu0 %v969
          %v1142 = vpop.f32.mrb[0].mxu0
          %v1143 = vadd.f32 0.0, %v1142
          %v1144 = vpop.f32.mrb[0].mxu0
          %1145 = vmatprep.mubr.f32.mxu0 0.0
          %1146 = vmatmul.mubr.f32.gmra.mrb[0].mxu0 %v972
          %v1147 = vpop.f32.mrb[0].mxu0
          %v1148 = vadd.f32 0.0, %v1147
          %v1149 = vpop.f32.mrb[0].mxu0
          %1150 = vmatprep.mubr.f32.mxu0 0.0
          %1151 = vmatmul.mubr.f32.gmra.mrb[0].mxu0 %v975
          %v1152 = vpop.f32.mrb[0].mxu0
          %v1153 = vadd.f32 0.0, %v1152
          %v1154 = vpop.f32.mrb[0].mxu0
          %1155 = vmatprep.mubr.f32.mxu0 0.0
          %1156 = vmatmul.mubr.f32.gmra.mrb[0].mxu0 %v978
          %v1157 = vpop.f32.mrb[0].mxu0
          %v1158 = vadd.f32 0.0, %v1157
          %v1159 = vpop.f32.mrb[0].mxu0
          %1160 = vmatprep.mubr.f32.mxu0 0.0
          %1161 = vmatmul.mubr.f32.gmra.mrb[0].mxu0 %v981
          %v1162 = vpop.f32.mrb[0].mxu0
          %v1163 = vadd.f32 0.0, %v1162
          %v1164 = vpop.f32.mrb[0].mxu0
          %1165 = vmatprep.mubr.f32.mxu0 0.0
          %1166 = vmatmul.mubr.f32.gmra.mrb[0].mxu0 %v984
          %v1167 = vpop.f32.mrb[0].mxu0
          %v1168 = vadd.f32 0.0, %v1167
          %v1169 = vpop.f32.mrb[0].mxu0
          %1170 = vmatprep.mubr.f32.mxu0 0.0
          %1171 = vmatmul.mubr.f32.gmra.mrb[0].mxu0 %v987
          %v1172 = vpop.f32.mrb[0].mxu0
          %v1173 = vadd.f32 0.0, %v1172
          %v1174 = vpop.f32.mrb[0].mxu0
          %1175 = vmatprep.mubr.f32.mxu0 0.0
          %1176 = vmatmul.mubr.f32.gmra.mrb[0].mxu0 %v990
          %v1177 = vpop.f32.mrb[0].mxu0
          %v1178 = vadd.f32 0.0, %v1177
          %v1179 = vpop.f32.mrb[0].mxu0
          %1180 = vmatprep.mubr.f32.mxu0 0.0
          %1181 = vmatmul.mubr.f32.gmra.mrb[0].mxu0 %v993
          %v1182 = vpop.f32.mrb[0].mxu0
          %v1183 = vadd.f32 0.0, %v1182
          %v1184 = vpop.f32.mrb[0].mxu0
          %1185 = vmatprep.mubr.f32.mxu0 0.0
          %1186 = vmatmul.mubr.f32.gmra.mrb[0].mxu0 %v996
          %v1187 = vpop.f32.mrb[0].mxu0
          %v1188 = vadd.f32 0.0, %v1187
          %v1189 = vpop.f32.mrb[0].mxu0
          %1190 = vdwg.mxu0
          %v1192 = vsel %vm949, %v933, 0
          %v1195 = vsel %vm949, %v934, 0
          %v1198 = vsel %vm949, %v935, 0
          %v1201 = vsel %vm949, %v936, 0
          %v1204 = vsel %vm949, %v937, 0
          %v1207 = vsel %vm949, %v938, 0
          %v1210 = vsel %vm949, %v939, 0
          %v1213 = vsel %vm949, %v940, 0
          %v1216 = vsel %vm949, %v941, 0
          %v1219 = vsel %vm949, %v942, 0
          %v1222 = vsel %vm949, %v943, 0
          %v1225 = vsel %vm949, %v944, 0
          %v1228 = vsel %vm949, %v945, 0
          %v1231 = vsel %vm949, %v946, 0
          %v1234 = vsel %vm949, %v947, 0
          %v1237 = vsel %vm949, %v948, 0
          %v1240 = vsel %vm949, %v868, 0
          %v1243 = vsel %vm949, %v869, 0
          %v1246 = vsel %vm949, %v870, 0
          %v1249 = vsel %vm949, %v871, 0
          %v1252 = vsel %vm949, %v872, 0
          %v1255 = vsel %vm949, %v873, 0
          %v1258 = vsel %vm949, %v874, 0
          %v1261 = vsel %vm949, %v875, 0
          %v1264 = vsel %vm949, %v876, 0
          %v1267 = vsel %vm949, %v877, 0
          %v1270 = vsel %vm949, %v878, 0
          %v1273 = vsel %vm949, %v879, 0
          %v1276 = vsel %vm949, %v880, 0
          %v1279 = vsel %vm949, %v881, 0
          %v1282 = vsel %vm949, %v882, 0
          %v1285 = vsel %vm949, %v883, 0
          %1287 = vmatprep.subr.mxu0 0.0
          %1288 = vmatpush1.xpose.msra.mxu0 %v1240
          %1289 = vmatprep.subr.mxu0 0.0
          %1290 = vmatpush1.xpose.msra.mxu0 %v1243
          %1291 = vmatprep.subr.mxu0 0.0
          %1292 = vmatpush1.xpose.msra.mxu0 %v1246
          %1293 = vmatprep.subr.mxu0 0.0
          %1294 = vmatpush1.xpose.msra.mxu0 %v1249
          %1295 = vmatprep.subr.mxu0 0.0
          %1296 = vmatpush1.xpose.msra.mxu0 %v1252
          %1297 = vmatprep.subr.mxu0 0.0
          %1298 = vmatpush1.xpose.msra.mxu0 %v1255
          %1299 = vmatprep.subr.mxu0 0.0
          %1300 = vmatpush1.xpose.msra.mxu0 %v1258
          %1301 = vmatprep.subr.mxu0 0.0
          %1302 = vmatpush1.xpose.msra.mxu0 %v1261
          %1303 = vmatprep.subr.mxu0 0.0
          %1304 = vmatpush1.xpose.msra.mxu0 %v1264
          %1305 = vmatprep.subr.mxu0 0.0
          %1306 = vmatpush1.xpose.msra.mxu0 %v1267
          %1307 = vmatprep.subr.mxu0 0.0
          %1308 = vmatpush1.xpose.msra.mxu0 %v1270
          %1309 = vmatprep.subr.mxu0 0.0
          %1310 = vmatpush1.xpose.msra.mxu0 %v1273
          %1311 = vmatprep.subr.mxu0 0.0
          %1312 = vmatpush1.xpose.msra.mxu0 %v1276
          %1313 = vmatprep.subr.mxu0 0.0
          %1314 = vmatpush1.xpose.msra.mxu0 %v1279
          %1315 = vmatprep.subr.mxu0 0.0
          %1316 = vmatpush1.xpose.msra.mxu0 %v1282
          %1317 = vmatprep.subr.mxu0 0.0
          %1318 = vmatpush1.xpose.msra.mxu0 %v1285
          %1319 = vmatprep.subr.mxu0 0.0
          %1320 = vmatpush1.xpose.msra.mxu0 0.0
          %1321 = vmatprep.subr.mxu0 0.0
          %1322 = vmatpush1.xpose.msra.mxu0 0.0
          %1323 = vmatprep.subr.mxu0 0.0
          %1324 = vmatpush1.xpose.msra.mxu0 0.0
          %1325 = vmatprep.subr.mxu0 0.0
          %1326 = vmatpush1.xpose.msra.mxu0 0.0
          %1327 = vmatprep.subr.mxu0 0.0
          %1328 = vmatpush1.xpose.msra.mxu0 0.0
          %1329 = vmatprep.subr.mxu0 0.0
          %1330 = vmatpush1.xpose.msra.mxu0 0.0
          %1331 = vmatprep.subr.mxu0 0.0
          %1332 = vmatpush1.xpose.msra.mxu0 0.0
          %1333 = vmatprep.subr.mxu0 0.0
          %1334 = vmatpush1.xpose.msra.mxu0 0.0
          %1335 = vmatprep.subr.mxu0 0.0
          %1336 = vmatpush1.xpose.msra.mxu0 0.0
          %1337 = vmatprep.subr.mxu0 0.0
          %1338 = vmatpush1.xpose.msra.mxu0 0.0
          %1339 = vmatprep.subr.mxu0 0.0
          %1340 = vmatpush1.xpose.msra.mxu0 0.0
          %1341 = vmatprep.subr.mxu0 0.0
          %1342 = vmatpush1.xpose.msra.mxu0 0.0
          %1343 = vmatprep.subr.mxu0 0.0
          %1344 = vmatpush1.xpose.msra.mxu0 0.0
          %1345 = vmatprep.subr.mxu0 0.0
          %1346 = vmatpush1.xpose.msra.mxu0 0.0
          %1347 = vmatprep.subr.mxu0 0.0
          %1348 = vmatpush1.xpose.msra.mxu0 0.0
          %1349 = vmatprep.subr.mxu0 0.0
          %1350 = vmatpush1.xpose.msra.mxu0 0.0
          %1351 = vmatprep.mubr.f32.mxu0 0.0
          %1352 = vmatmul.mubr.f32.gmra.mrb[0].mxu0 %v1192
          %v1353 = vpop.f32.mrb[0].mxu0
          %v1354 = vadd.f32 0.0, %v1353
          %v1355 = vpop.f32.mrb[0].mxu0
          %1356 = vmatprep.mubr.f32.mxu0 0.0
          %1357 = vmatmul.mubr.f32.gmra.mrb[0].mxu0 %v1195
          %v1358 = vpop.f32.mrb[0].mxu0
          %v1359 = vadd.f32 0.0, %v1358
          %v1360 = vpop.f32.mrb[0].mxu0
          %1361 = vmatprep.mubr.f32.mxu0 0.0
          %1362 = vmatmul.mubr.f32.gmra.mrb[0].mxu0 %v1198
          %v1363 = vpop.f32.mrb[0].mxu0
          %v1364 = vadd.f32 0.0, %v1363
          %v1365 = vpop.f32.mrb[0].mxu0
          %1366 = vmatprep.mubr.f32.mxu0 0.0
          %1367 = vmatmul.mubr.f32.gmra.mrb[0].mxu0 %v1201
          %v1368 = vpop.f32.mrb[0].mxu0
          %v1369 = vadd.f32 0.0, %v1368
          %v1370 = vpop.f32.mrb[0].mxu0
          %1371 = vmatprep.mubr.f32.mxu0 0.0
          %1372 = vmatmul.mubr.f32.gmra.mrb[0].mxu0 %v1204
          %v1373 = vpop.f32.mrb[0].mxu0
          %v1374 = vadd.f32 0.0, %v1373
          %v1375 = vpop.f32.mrb[0].mxu0
          %1376 = vmatprep.mubr.f32.mxu0 0.0
          %1377 = vmatmul.mubr.f32.gmra.mrb[0].mxu0 %v1207
          %v1378 = vpop.f32.mrb[0].mxu0
          %v1379 = vadd.f32 0.0, %v1378
          %v1380 = vpop.f32.mrb[0].mxu0
          %1381 = vmatprep.mubr.f32.mxu0 0.0
          %1382 = vmatmul.mubr.f32.gmra.mrb[0].mxu0 %v1210
          %v1383 = vpop.f32.mrb[0].mxu0
          %v1384 = vadd.f32 0.0, %v1383
          %v1385 = vpop.f32.mrb[0].mxu0
          %1386 = vmatprep.mubr.f32.mxu0 0.0
          %1387 = vmatmul.mubr.f32.gmra.mrb[0].mxu0 %v1213
          %v1388 = vpop.f32.mrb[0].mxu0
          %v1389 = vadd.f32 0.0, %v1388
          %v1390 = vpop.f32.mrb[0].mxu0
          %1391 = vmatprep.mubr.f32.mxu0 0.0
          %1392 = vmatmul.mubr.f32.gmra.mrb[0].mxu0 %v1216
          %v1393 = vpop.f32.mrb[0].mxu0
          %v1394 = vadd.f32 0.0, %v1393
          %v1395 = vpop.f32.mrb[0].mxu0
          %1396 = vmatprep.mubr.f32.mxu0 0.0
          %1397 = vmatmul.mubr.f32.gmra.mrb[0].mxu0 %v1219
          %v1398 = vpop.f32.mrb[0].mxu0
          %v1399 = vadd.f32 0.0, %v1398
          %v1400 = vpop.f32.mrb[0].mxu0
          %1401 = vmatprep.mubr.f32.mxu0 0.0
          %1402 = vmatmul.mubr.f32.gmra.mrb[0].mxu0 %v1222
          %v1403 = vpop.f32.mrb[0].mxu0
          %v1404 = vadd.f32 0.0, %v1403
          %v1405 = vpop.f32.mrb[0].mxu0
          %1406 = vmatprep.mubr.f32.mxu0 0.0
          %1407 = vmatmul.mubr.f32.gmra.mrb[0].mxu0 %v1225
          %v1408 = vpop.f32.mrb[0].mxu0
          %v1409 = vadd.f32 0.0, %v1408
          %v1410 = vpop.f32.mrb[0].mxu0
          %1411 = vmatprep.mubr.f32.mxu0 0.0
          %1412 = vmatmul.mubr.f32.gmra.mrb[0].mxu0 %v1228
          %v1413 = vpop.f32.mrb[0].mxu0
          %v1414 = vadd.f32 0.0, %v1413
          %v1415 = vpop.f32.mrb[0].mxu0
          %1416 = vmatprep.mubr.f32.mxu0 0.0
          %1417 = vmatmul.mubr.f32.gmra.mrb[0].mxu0 %v1231
          %v1418 = vpop.f32.mrb[0].mxu0
          %v1419 = vadd.f32 0.0, %v1418
          %v1420 = vpop.f32.mrb[0].mxu0
          %1421 = vmatprep.mubr.f32.mxu0 0.0
          %1422 = vmatmul.mubr.f32.gmra.mrb[0].mxu0 %v1234
          %v1423 = vpop.f32.mrb[0].mxu0
          %v1424 = vadd.f32 0.0, %v1423
          %v1425 = vpop.f32.mrb[0].mxu0
          %1426 = vmatprep.mubr.f32.mxu0 0.0
          %1427 = vmatmul.mubr.f32.gmra.mrb[0].mxu0 %v1237
          %v1428 = vpop.f32.mrb[0].mxu0
          %v1429 = vadd.f32 0.0, %v1428
          %v1430 = vpop.f32.mrb[0].mxu0
          %1431 = vdwg.mxu0
          %v1432 = vld [vmem:[#allocation6] sm:$0xff]
          %v1433 = vld [vmem:[#allocation6 + $0x8] sm:$0xff]
          %v1434 = vld [vmem:[#allocation6 + $0x10] sm:$0xff]
          %v1435 = vld [vmem:[#allocation6 + $0x18] sm:$0xff]
          %v1436 = vld [vmem:[#allocation6 + $0x20] sm:$0xff]
          %v1437 = vld [vmem:[#allocation6 + $0x28] sm:$0xff]
          %v1438 = vld [vmem:[#allocation6 + $0x30] sm:$0xff]
          %v1439 = vld [vmem:[#allocation6 + $0x38] sm:$0xff]
          %v1440 = vld [vmem:[#allocation6 + $0x40] sm:$0xff]
          %v1441 = vld [vmem:[#allocation6 + $0x48] sm:$0xff]
          %v1442 = vld [vmem:[#allocation6 + $0x50] sm:$0xff]
          %v1443 = vld [vmem:[#allocation6 + $0x58] sm:$0xff]
          %v1444 = vld [vmem:[#allocation6 + $0x60] sm:$0xff]
          %v1445 = vld [vmem:[#allocation6 + $0x68] sm:$0xff]
          %v1446 = vld [vmem:[#allocation6 + $0x70] sm:$0xff]
          %v1447 = vld [vmem:[#allocation6 + $0x78] sm:$0xff]
          %v1448 = vld [vmem:[#allocation6 + $0x80] sm:$0xff]
          %v1449 = vld [vmem:[#allocation6 + $0x88] sm:$0xff]
          %v1450 = vld [vmem:[#allocation6 + $0x90] sm:$0xff]
          %v1451 = vld [vmem:[#allocation6 + $0x98] sm:$0xff]
          %v1452 = vld [vmem:[#allocation6 + $0xa0] sm:$0xff]
          %v1453 = vld [vmem:[#allocation6 + $0xa8] sm:$0xff]
          %v1454 = vld [vmem:[#allocation6 + $0xb0] sm:$0xff]
          %v1455 = vld [vmem:[#allocation6 + $0xb8] sm:$0xff]
          %v1456 = vld [vmem:[#allocation6 + $0xc0] sm:$0xff]
          %v1457 = vld [vmem:[#allocation6 + $0xc8] sm:$0xff]
          %v1458 = vld [vmem:[#allocation6 + $0xd0] sm:$0xff]
          %v1459 = vld [vmem:[#allocation6 + $0xd8] sm:$0xff]
          %v1460 = vld [vmem:[#allocation6 + $0xe0] sm:$0xff]
          %v1461 = vld [vmem:[#allocation6 + $0xe8] sm:$0xff]
          %v1462 = vld [vmem:[#allocation6 + $0xf0] sm:$0xff]
          %v1463 = vld [vmem:[#allocation6 + $0xf8] sm:$0xff]
          %1464 = vmax.xlane.f32.xlu0 %v1113
          %v1465 = vpop.xlane.xlu0 %1464
          %1466 = vmax.xlane.f32.xlu0 %v1118
          %v1467 = vpop.xlane.xlu0 %1466
          %1468 = vmax.xlane.f32.xlu0 %v1123
          %v1469 = vpop.xlane.xlu0 %1468
          %1470 = vmax.xlane.f32.xlu0 %v1128
          %v1471 = vpop.xlane.xlu0 %1470
          %1472 = vmax.xlane.f32.xlu0 %v1133
          %v1473 = vpop.xlane.xlu0 %1472
          %1474 = vmax.xlane.f32.xlu0 %v1138
          %v1475 = vpop.xlane.xlu0 %1474
          %1476 = vmax.xlane.f32.xlu0 %v1143
          %v1477 = vpop.xlane.xlu0 %1476
          %1478 = vmax.xlane.f32.xlu0 %v1148
          %v1479 = vpop.xlane.xlu0 %1478
          %1480 = vmax.xlane.f32.xlu0 %v1153
          %v1481 = vpop.xlane.xlu0 %1480
          %1482 = vmax.xlane.f32.xlu0 %v1158
          %v1483 = vpop.xlane.xlu0 %1482
          %1484 = vmax.xlane.f32.xlu0 %v1163
          %v1485 = vpop.xlane.xlu0 %1484
          %1486 = vmax.xlane.f32.xlu0 %v1168
          %v1487 = vpop.xlane.xlu0 %1486
          %1488 = vmax.xlane.f32.xlu0 %v1173
          %v1489 = vpop.xlane.xlu0 %1488
          %1490 = vmax.xlane.f32.xlu0 %v1178
          %v1491 = vpop.xlane.xlu0 %1490
          %1492 = vmax.xlane.f32.xlu0 %v1183
          %v1493 = vpop.xlane.xlu0 %1492
          %1494 = vmax.xlane.f32.xlu0 %v1188
          %v1495 = vpop.xlane.xlu0 %1494
          %1496 = vmax.xlane.f32.xlu0 %v1354
          %v1497 = vpop.xlane.xlu0 %1496
          %1498 = vmax.xlane.f32.xlu0 %v1359
          %v1499 = vpop.xlane.xlu0 %1498
          %1500 = vmax.xlane.f32.xlu0 %v1364
          %v1501 = vpop.xlane.xlu0 %1500
          %1502 = vmax.xlane.f32.xlu0 %v1369
          %v1503 = vpop.xlane.xlu0 %1502
          %1504 = vmax.xlane.f32.xlu0 %v1374
          %v1505 = vpop.xlane.xlu0 %1504
          %1506 = vmax.xlane.f32.xlu0 %v1379
          %v1507 = vpop.xlane.xlu0 %1506
          %1508 = vmax.xlane.f32.xlu0 %v1384
          %v1509 = vpop.xlane.xlu0 %1508
          %1510 = vmax.xlane.f32.xlu0 %v1389
          %v1511 = vpop.xlane.xlu0 %1510
          %1512 = vmax.xlane.f32.xlu0 %v1394
          %v1513 = vpop.xlane.xlu0 %1512
          %1514 = vmax.xlane.f32.xlu0 %v1399
          %v1515 = vpop.xlane.xlu0 %1514
          %1516 = vmax.xlane.f32.xlu0 %v1404
          %v1517 = vpop.xlane.xlu0 %1516
          %1518 = vmax.xlane.f32.xlu0 %v1409
          %v1519 = vpop.xlane.xlu0 %1518
          %1520 = vmax.xlane.f32.xlu0 %v1414
          %v1521 = vpop.xlane.xlu0 %1520
          %1522 = vmax.xlane.f32.xlu0 %v1419
          %v1523 = vpop.xlane.xlu0 %1522
          %1524 = vmax.xlane.f32.xlu0 %v1424
          %v1525 = vpop.xlane.xlu0 %1524
          %1526 = vmax.xlane.f32.xlu0 %v1429
          %v1527 = vpop.xlane.xlu0 %1526
          %v1528 = vmax.f32 %v1432, %v1465
          %v1529 = vmax.f32 %v1433, %v1467
          %v1530 = vmax.f32 %v1434, %v1469
          %v1531 = vmax.f32 %v1435, %v1471
          %v1532 = vmax.f32 %v1436, %v1473
          %v1533 = vmax.f32 %v1437, %v1475
          %v1534 = vmax.f32 %v1438, %v1477
          %v1535 = vmax.f32 %v1439, %v1479
          %v1536 = vmax.f32 %v1440, %v1481
          %v1537 = vmax.f32 %v1441, %v1483
          %v1538 = vmax.f32 %v1442, %v1485
          %v1539 = vmax.f32 %v1443, %v1487
          %v1540 = vmax.f32 %v1444, %v1489
          %v1541 = vmax.f32 %v1445, %v1491
          %v1542 = vmax.f32 %v1446, %v1493
          %v1543 = vmax.f32 %v1447, %v1495
          %v1544 = vmax.f32 %v1448, %v1497
          %v1545 = vmax.f32 %v1449, %v1499
          %v1546 = vmax.f32 %v1450, %v1501
          %v1547 = vmax.f32 %v1451, %v1503
          %v1548 = vmax.f32 %v1452, %v1505
          %v1549 = vmax.f32 %v1453, %v1507
          %v1550 = vmax.f32 %v1454, %v1509
          %v1551 = vmax.f32 %v1455, %v1511
          %v1552 = vmax.f32 %v1456, %v1513
          %v1553 = vmax.f32 %v1457, %v1515
          %v1554 = vmax.f32 %v1458, %v1517
          %v1555 = vmax.f32 %v1459, %v1519
          %v1556 = vmax.f32 %v1460, %v1521
          %v1557 = vmax.f32 %v1461, %v1523
          %v1558 = vmax.f32 %v1462, %v1525
          %v1559 = vmax.f32 %v1463, %v1527
          %v1560 = vsub.f32 %v1432, %v1528
          %v1561 = vsub.f32 %v1433, %v1529
          %v1562 = vsub.f32 %v1434, %v1530
          %v1563 = vsub.f32 %v1435, %v1531
          %v1564 = vsub.f32 %v1436, %v1532
          %v1565 = vsub.f32 %v1437, %v1533
          %v1566 = vsub.f32 %v1438, %v1534
          %v1567 = vsub.f32 %v1439, %v1535
          %v1568 = vsub.f32 %v1440, %v1536
          %v1569 = vsub.f32 %v1441, %v1537
          %v1570 = vsub.f32 %v1442, %v1538
          %v1571 = vsub.f32 %v1443, %v1539
          %v1572 = vsub.f32 %v1444, %v1540
          %v1573 = vsub.f32 %v1445, %v1541
          %v1574 = vsub.f32 %v1446, %v1542
          %v1575 = vsub.f32 %v1447, %v1543
          %v1576 = vsub.f32 %v1448, %v1544
          %v1577 = vsub.f32 %v1449, %v1545
          %v1578 = vsub.f32 %v1450, %v1546
          %v1579 = vsub.f32 %v1451, %v1547
          %v1580 = vsub.f32 %v1452, %v1548
          %v1581 = vsub.f32 %v1453, %v1549
          %v1582 = vsub.f32 %v1454, %v1550
          %v1583 = vsub.f32 %v1455, %v1551
          %v1584 = vsub.f32 %v1456, %v1552
          %v1585 = vsub.f32 %v1457, %v1553
          %v1586 = vsub.f32 %v1458, %v1554
          %v1587 = vsub.f32 %v1459, %v1555
          %v1588 = vsub.f32 %v1460, %v1556
          %v1589 = vsub.f32 %v1461, %v1557
          %v1590 = vsub.f32 %v1462, %v1558
          %v1591 = vsub.f32 %v1463, %v1559
          %v1592 = vmul.f32 %v1560, 1.442695
          %v1593 = vpow.pop %v1592
          %v1594 = vmul.f32 %v1561, 1.442695
          %v1595 = vpow.pop %v1594
          %v1596 = vmul.f32 %v1562, 1.442695
          %v1597 = vpow.pop %v1596
          %v1598 = vmul.f32 %v1563, 1.442695
          %v1599 = vpow.pop %v1598
          %v1600 = vmul.f32 %v1564, 1.442695
          %v1601 = vpow.pop %v1600
          %v1602 = vmul.f32 %v1565, 1.442695
          %v1603 = vpow.pop %v1602
          %v1604 = vmul.f32 %v1566, 1.442695
          %v1605 = vpow.pop %v1604
          %v1606 = vmul.f32 %v1567, 1.442695
          %v1607 = vpow.pop %v1606
          %v1608 = vmul.f32 %v1568, 1.442695
          %v1609 = vpow.pop %v1608
          %v1610 = vmul.f32 %v1569, 1.442695
          %v1611 = vpow.pop %v1610
          %v1612 = vmul.f32 %v1570, 1.442695
          %v1613 = vpow.pop %v1612
          %v1614 = vmul.f32 %v1571, 1.442695
          %v1615 = vpow.pop %v1614
          %v1616 = vmul.f32 %v1572, 1.442695
          %v1617 = vpow.pop %v1616
          %v1618 = vmul.f32 %v1573, 1.442695
          %v1619 = vpow.pop %v1618
          %v1620 = vmul.f32 %v1574, 1.442695
          %v1621 = vpow.pop %v1620
          %v1622 = vmul.f32 %v1575, 1.442695
          %v1623 = vpow.pop %v1622
          %v1624 = vmul.f32 %v1576, 1.442695
          %v1625 = vpow.pop %v1624
          %v1626 = vmul.f32 %v1577, 1.442695
          %v1627 = vpow.pop %v1626
          %v1628 = vmul.f32 %v1578, 1.442695
          %v1629 = vpow.pop %v1628
          %v1630 = vmul.f32 %v1579, 1.442695
          %v1631 = vpow.pop %v1630
          %v1632 = vmul.f32 %v1580, 1.442695
          %v1633 = vpow.pop %v1632
          %v1634 = vmul.f32 %v1581, 1.442695
          %v1635 = vpow.pop %v1634
          %v1636 = vmul.f32 %v1582, 1.442695
          %v1637 = vpow.pop %v1636
          %v1638 = vmul.f32 %v1583, 1.442695
          %v1639 = vpow.pop %v1638
          %v1640 = vmul.f32 %v1584, 1.442695
          %v1641 = vpow.pop %v1640
          %v1642 = vmul.f32 %v1585, 1.442695
          %v1643 = vpow.pop %v1642
          %v1644 = vmul.f32 %v1586, 1.442695
          %v1645 = vpow.pop %v1644
          %v1646 = vmul.f32 %v1587, 1.442695
          %v1647 = vpow.pop %v1646
          %v1648 = vmul.f32 %v1588, 1.442695
          %v1649 = vpow.pop %v1648
          %v1650 = vmul.f32 %v1589, 1.442695
          %v1651 = vpow.pop %v1650
          %v1652 = vmul.f32 %v1590, 1.442695
          %v1653 = vpow.pop %v1652
          %v1654 = vmul.f32 %v1591, 1.442695
          %v1655 = vpow.pop %v1654
          %1657 = vset.pattern.permute.xlu0 0
          %1658 = vperm.xlu0 %1657, %v1528
          %v1659 = vpop.permute.xlu0 %1658
          %1662 = vset.pattern.permute.xlu0 0
          %1663 = vperm.xlu0 %1662, %v1529
          %v1664 = vpop.permute.xlu0 %1663
          %1667 = vset.pattern.permute.xlu0 0
          %1668 = vperm.xlu0 %1667, %v1530
          %v1669 = vpop.permute.xlu0 %1668
          %1672 = vset.pattern.permute.xlu0 0
          %1673 = vperm.xlu0 %1672, %v1531
          %v1674 = vpop.permute.xlu0 %1673
          %1677 = vset.pattern.permute.xlu0 0
          %1678 = vperm.xlu0 %1677, %v1532
          %v1679 = vpop.permute.xlu0 %1678
          %1682 = vset.pattern.permute.xlu0 0
          %1683 = vperm.xlu0 %1682, %v1533
          %v1684 = vpop.permute.xlu0 %1683
          %1687 = vset.pattern.permute.xlu0 0
          %1688 = vperm.xlu0 %1687, %v1534
          %v1689 = vpop.permute.xlu0 %1688
          %1692 = vset.pattern.permute.xlu0 0
          %1693 = vperm.xlu0 %1692, %v1535
          %v1694 = vpop.permute.xlu0 %1693
          %1697 = vset.pattern.permute.xlu0 0
          %1698 = vperm.xlu0 %1697, %v1536
          %v1699 = vpop.permute.xlu0 %1698
          %1702 = vset.pattern.permute.xlu0 0
          %1703 = vperm.xlu0 %1702, %v1537
          %v1704 = vpop.permute.xlu0 %1703
          %1707 = vset.pattern.permute.xlu0 0
          %1708 = vperm.xlu0 %1707, %v1538
          %v1709 = vpop.permute.xlu0 %1708
          %1712 = vset.pattern.permute.xlu0 0
          %1713 = vperm.xlu0 %1712, %v1539
          %v1714 = vpop.permute.xlu0 %1713
          %1717 = vset.pattern.permute.xlu0 0
          %1718 = vperm.xlu0 %1717, %v1540
          %v1719 = vpop.permute.xlu0 %1718
          %1722 = vset.pattern.permute.xlu0 0
          %1723 = vperm.xlu0 %1722, %v1541
          %v1724 = vpop.permute.xlu0 %1723
          %1727 = vset.pattern.permute.xlu0 0
          %1728 = vperm.xlu0 %1727, %v1542
          %v1729 = vpop.permute.xlu0 %1728
          %1732 = vset.pattern.permute.xlu0 0
          %1733 = vperm.xlu0 %1732, %v1543
          %v1734 = vpop.permute.xlu0 %1733
          %1737 = vset.pattern.permute.xlu0 0
          %1738 = vperm.xlu0 %1737, %v1544
          %v1739 = vpop.permute.xlu0 %1738
          %1742 = vset.pattern.permute.xlu0 0
          %1743 = vperm.xlu0 %1742, %v1545
          %v1744 = vpop.permute.xlu0 %1743
          %1747 = vset.pattern.permute.xlu0 0
          %1748 = vperm.xlu0 %1747, %v1546
          %v1749 = vpop.permute.xlu0 %1748
          %1752 = vset.pattern.permute.xlu0 0
          %1753 = vperm.xlu0 %1752, %v1547
          %v1754 = vpop.permute.xlu0 %1753
          %1757 = vset.pattern.permute.xlu0 0
          %1758 = vperm.xlu0 %1757, %v1548
          %v1759 = vpop.permute.xlu0 %1758
          %1762 = vset.pattern.permute.xlu0 0
          %1763 = vperm.xlu0 %1762, %v1549
          %v1764 = vpop.permute.xlu0 %1763
          %1767 = vset.pattern.permute.xlu0 0
          %1768 = vperm.xlu0 %1767, %v1550
          %v1769 = vpop.permute.xlu0 %1768
          %1772 = vset.pattern.permute.xlu0 0
          %1773 = vperm.xlu0 %1772, %v1551
          %v1774 = vpop.permute.xlu0 %1773
          %1777 = vset.pattern.permute.xlu0 0
          %1778 = vperm.xlu0 %1777, %v1552
          %v1779 = vpop.permute.xlu0 %1778
          %1782 = vset.pattern.permute.xlu0 0
          %1783 = vperm.xlu0 %1782, %v1553
          %v1784 = vpop.permute.xlu0 %1783
          %1787 = vset.pattern.permute.xlu0 0
          %1788 = vperm.xlu0 %1787, %v1554
          %v1789 = vpop.permute.xlu0 %1788
          %1792 = vset.pattern.permute.xlu0 0
          %1793 = vperm.xlu0 %1792, %v1555
          %v1794 = vpop.permute.xlu0 %1793
          %1797 = vset.pattern.permute.xlu0 0
          %1798 = vperm.xlu0 %1797, %v1556
          %v1799 = vpop.permute.xlu0 %1798
          %1802 = vset.pattern.permute.xlu0 0
          %1803 = vperm.xlu0 %1802, %v1557
          %v1804 = vpop.permute.xlu0 %1803
          %1807 = vset.pattern.permute.xlu0 0
          %1808 = vperm.xlu0 %1807, %v1558
          %v1809 = vpop.permute.xlu0 %1808
          %1812 = vset.pattern.permute.xlu0 0
          %1813 = vperm.xlu0 %1812, %v1559
          %v1814 = vpop.permute.xlu0 %1813
          %v1816 = vsub.f32 %v1113, %v1659
          %v1817 = vsub.f32 %v1118, %v1664
          %v1818 = vsub.f32 %v1123, %v1669
          %v1819 = vsub.f32 %v1128, %v1674
          %v1820 = vsub.f32 %v1133, %v1679
          %v1821 = vsub.f32 %v1138, %v1684
          %v1822 = vsub.f32 %v1143, %v1689
          %v1823 = vsub.f32 %v1148, %v1694
          %v1824 = vsub.f32 %v1153, %v1699
          %v1825 = vsub.f32 %v1158, %v1704
          %v1826 = vsub.f32 %v1163, %v1709
          %v1827 = vsub.f32 %v1168, %v1714
          %v1828 = vsub.f32 %v1173, %v1719
          %v1829 = vsub.f32 %v1178, %v1724
          %v1830 = vsub.f32 %v1183, %v1729
          %v1831 = vsub.f32 %v1188, %v1734
          %v1832 = vsub.f32 %v1354, %v1739
          %v1833 = vsub.f32 %v1359, %v1744
          %v1834 = vsub.f32 %v1364, %v1749
          %v1835 = vsub.f32 %v1369, %v1754
          %v1836 = vsub.f32 %v1374, %v1759
          %v1837 = vsub.f32 %v1379, %v1764
          %v1838 = vsub.f32 %v1384, %v1769
          %v1839 = vsub.f32 %v1389, %v1774
          %v1840 = vsub.f32 %v1394, %v1779
          %v1841 = vsub.f32 %v1399, %v1784
          %v1842 = vsub.f32 %v1404, %v1789
          %v1843 = vsub.f32 %v1409, %v1794
          %v1844 = vsub.f32 %v1414, %v1799
          %v1845 = vsub.f32 %v1419, %v1804
          %v1846 = vsub.f32 %v1424, %v1809
          %v1847 = vsub.f32 %v1429, %v1814
          %v1848 = vmul.f32 %v1816, 1.442695
          %v1849 = vpow.pop %v1848
          %v1850 = vmul.f32 %v1817, 1.442695
          %v1851 = vpow.pop %v1850
          %v1852 = vmul.f32 %v1818, 1.442695
          %v1853 = vpow.pop %v1852
          %v1854 = vmul.f32 %v1819, 1.442695
          %v1855 = vpow.pop %v1854
          %v1856 = vmul.f32 %v1820, 1.442695
          %v1857 = vpow.pop %v1856
          %v1858 = vmul.f32 %v1821, 1.442695
          %v1859 = vpow.pop %v1858
          %v1860 = vmul.f32 %v1822, 1.442695
          %v1861 = vpow.pop %v1860
          %v1862 = vmul.f32 %v1823, 1.442695
          %v1863 = vpow.pop %v1862
          %v1864 = vmul.f32 %v1824, 1.442695
          %v1865 = vpow.pop %v1864
          %v1866 = vmul.f32 %v1825, 1.442695
          %v1867 = vpow.pop %v1866
          %v1868 = vmul.f32 %v1826, 1.442695
          %v1869 = vpow.pop %v1868
          %v1870 = vmul.f32 %v1827, 1.442695
          %v1871 = vpow.pop %v1870
          %v1872 = vmul.f32 %v1828, 1.442695
          %v1873 = vpow.pop %v1872
          %v1874 = vmul.f32 %v1829, 1.442695
          %v1875 = vpow.pop %v1874
          %v1876 = vmul.f32 %v1830, 1.442695
          %v1877 = vpow.pop %v1876
          %v1878 = vmul.f32 %v1831, 1.442695
          %v1879 = vpow.pop %v1878
          %v1880 = vmul.f32 %v1832, 1.442695
          %v1881 = vpow.pop %v1880
          %v1882 = vmul.f32 %v1833, 1.442695
          %v1883 = vpow.pop %v1882
          %v1884 = vmul.f32 %v1834, 1.442695
          %v1885 = vpow.pop %v1884
          %v1886 = vmul.f32 %v1835, 1.442695
          %v1887 = vpow.pop %v1886
          %v1888 = vmul.f32 %v1836, 1.442695
          %v1889 = vpow.pop %v1888
          %v1890 = vmul.f32 %v1837, 1.442695
          %v1891 = vpow.pop %v1890
          %v1892 = vmul.f32 %v1838, 1.442695
          %v1893 = vpow.pop %v1892
          %v1894 = vmul.f32 %v1839, 1.442695
          %v1895 = vpow.pop %v1894
          %v1896 = vmul.f32 %v1840, 1.442695
          %v1897 = vpow.pop %v1896
          %v1898 = vmul.f32 %v1841, 1.442695
          %v1899 = vpow.pop %v1898
          %v1900 = vmul.f32 %v1842, 1.442695
          %v1901 = vpow.pop %v1900
          %v1902 = vmul.f32 %v1843, 1.442695
          %v1903 = vpow.pop %v1902
          %v1904 = vmul.f32 %v1844, 1.442695
          %v1905 = vpow.pop %v1904
          %v1906 = vmul.f32 %v1845, 1.442695
          %v1907 = vpow.pop %v1906
          %v1908 = vmul.f32 %v1846, 1.442695
          %v1909 = vpow.pop %v1908
          %v1910 = vmul.f32 %v1847, 1.442695
          %v1911 = vpow.pop %v1910
          %v1912 = vld [vmem:[#allocation7] sm:$0xff]
          %v1913 = vld [vmem:[#allocation7 + $0x8] sm:$0xff]
          %v1914 = vld [vmem:[#allocation7 + $0x10] sm:$0xff]
          %v1915 = vld [vmem:[#allocation7 + $0x18] sm:$0xff]
          %v1916 = vld [vmem:[#allocation7 + $0x20] sm:$0xff]
          %v1917 = vld [vmem:[#allocation7 + $0x28] sm:$0xff]
          %v1918 = vld [vmem:[#allocation7 + $0x30] sm:$0xff]
          %v1919 = vld [vmem:[#allocation7 + $0x38] sm:$0xff]
          %v1920 = vld [vmem:[#allocation7 + $0x40] sm:$0xff]
          %v1921 = vld [vmem:[#allocation7 + $0x48] sm:$0xff]
          %v1922 = vld [vmem:[#allocation7 + $0x50] sm:$0xff]
          %v1923 = vld [vmem:[#allocation7 + $0x58] sm:$0xff]
          %v1924 = vld [vmem:[#allocation7 + $0x60] sm:$0xff]
          %v1925 = vld [vmem:[#allocation7 + $0x68] sm:$0xff]
          %v1926 = vld [vmem:[#allocation7 + $0x70] sm:$0xff]
          %v1927 = vld [vmem:[#allocation7 + $0x78] sm:$0xff]
          %v1928 = vld [vmem:[#allocation7 + $0x80] sm:$0xff]
          %v1929 = vld [vmem:[#allocation7 + $0x88] sm:$0xff]
          %v1930 = vld [vmem:[#allocation7 + $0x90] sm:$0xff]
          %v1931 = vld [vmem:[#allocation7 + $0x98] sm:$0xff]
          %v1932 = vld [vmem:[#allocation7 + $0xa0] sm:$0xff]
          %v1933 = vld [vmem:[#allocation7 + $0xa8] sm:$0xff]
          %v1934 = vld [vmem:[#allocation7 + $0xb0] sm:$0xff]
          %v1935 = vld [vmem:[#allocation7 + $0xb8] sm:$0xff]
          %v1936 = vld [vmem:[#allocation7 + $0xc0] sm:$0xff]
          %v1937 = vld [vmem:[#allocation7 + $0xc8] sm:$0xff]
          %v1938 = vld [vmem:[#allocation7 + $0xd0] sm:$0xff]
          %v1939 = vld [vmem:[#allocation7 + $0xd8] sm:$0xff]
          %v1940 = vld [vmem:[#allocation7 + $0xe0] sm:$0xff]
          %v1941 = vld [vmem:[#allocation7 + $0xe8] sm:$0xff]
          %v1942 = vld [vmem:[#allocation7 + $0xf0] sm:$0xff]
          %v1943 = vld [vmem:[#allocation7 + $0xf8] sm:$0xff]
          %v1944 = vmul.f32 %v1593, %v1912
          %v1945 = vmul.f32 %v1595, %v1913
          %v1946 = vmul.f32 %v1597, %v1914
          %v1947 = vmul.f32 %v1599, %v1915
          %v1948 = vmul.f32 %v1601, %v1916
          %v1949 = vmul.f32 %v1603, %v1917
          %v1950 = vmul.f32 %v1605, %v1918
          %v1951 = vmul.f32 %v1607, %v1919
          %v1952 = vmul.f32 %v1609, %v1920
          %v1953 = vmul.f32 %v1611, %v1921
          %v1954 = vmul.f32 %v1613, %v1922
          %v1955 = vmul.f32 %v1615, %v1923
          %v1956 = vmul.f32 %v1617, %v1924
          %v1957 = vmul.f32 %v1619, %v1925
          %v1958 = vmul.f32 %v1621, %v1926
          %v1959 = vmul.f32 %v1623, %v1927
          %v1960 = vmul.f32 %v1625, %v1928
          %v1961 = vmul.f32 %v1627, %v1929
          %v1962 = vmul.f32 %v1629, %v1930
          %v1963 = vmul.f32 %v1631, %v1931
          %v1964 = vmul.f32 %v1633, %v1932
          %v1965 = vmul.f32 %v1635, %v1933
          %v1966 = vmul.f32 %v1637, %v1934
          %v1967 = vmul.f32 %v1639, %v1935
          %v1968 = vmul.f32 %v1641, %v1936
          %v1969 = vmul.f32 %v1643, %v1937
          %v1970 = vmul.f32 %v1645, %v1938
          %v1971 = vmul.f32 %v1647, %v1939
          %v1972 = vmul.f32 %v1649, %v1940
          %v1973 = vmul.f32 %v1651, %v1941
          %v1974 = vmul.f32 %v1653, %v1942
          %v1975 = vmul.f32 %v1655, %v1943
          %1976 = vadd.xlane.f32.xlu0 %v1849
          %v1977 = vpop.xlane.xlu0 %1976
          %1978 = vadd.xlane.f32.xlu0 %v1851
          %v1979 = vpop.xlane.xlu0 %1978
          %1980 = vadd.xlane.f32.xlu0 %v1853
          %v1981 = vpop.xlane.xlu0 %1980
          %1982 = vadd.xlane.f32.xlu0 %v1855
          %v1983 = vpop.xlane.xlu0 %1982
          %1984 = vadd.xlane.f32.xlu0 %v1857
          %v1985 = vpop.xlane.xlu0 %1984
          %1986 = vadd.xlane.f32.xlu0 %v1859
          %v1987 = vpop.xlane.xlu0 %1986
          %1988 = vadd.xlane.f32.xlu0 %v1861
          %v1989 = vpop.xlane.xlu0 %1988
          %1990 = vadd.xlane.f32.xlu0 %v1863
          %v1991 = vpop.xlane.xlu0 %1990
          %1992 = vadd.xlane.f32.xlu0 %v1865
          %v1993 = vpop.xlane.xlu0 %1992
          %1994 = vadd.xlane.f32.xlu0 %v1867
          %v1995 = vpop.xlane.xlu0 %1994
          %1996 = vadd.xlane.f32.xlu0 %v1869
          %v1997 = vpop.xlane.xlu0 %1996
          %1998 = vadd.xlane.f32.xlu0 %v1871
          %v1999 = vpop.xlane.xlu0 %1998
          %2000 = vadd.xlane.f32.xlu0 %v1873
          %v2001 = vpop.xlane.xlu0 %2000
          %2002 = vadd.xlane.f32.xlu0 %v1875
          %v2003 = vpop.xlane.xlu0 %2002
          %2004 = vadd.xlane.f32.xlu0 %v1877
          %v2005 = vpop.xlane.xlu0 %2004
          %2006 = vadd.xlane.f32.xlu0 %v1879
          %v2007 = vpop.xlane.xlu0 %2006
          %2008 = vadd.xlane.f32.xlu0 %v1881
          %v2009 = vpop.xlane.xlu0 %2008
          %2010 = vadd.xlane.f32.xlu0 %v1883
          %v2011 = vpop.xlane.xlu0 %2010
          %2012 = vadd.xlane.f32.xlu0 %v1885
          %v2013 = vpop.xlane.xlu0 %2012
          %2014 = vadd.xlane.f32.xlu0 %v1887
          %v2015 = vpop.xlane.xlu0 %2014
          %2016 = vadd.xlane.f32.xlu0 %v1889
          %v2017 = vpop.xlane.xlu0 %2016
          %2018 = vadd.xlane.f32.xlu0 %v1891
          %v2019 = vpop.xlane.xlu0 %2018
          %2020 = vadd.xlane.f32.xlu0 %v1893
          %v2021 = vpop.xlane.xlu0 %2020
          %2022 = vadd.xlane.f32.xlu0 %v1895
          %v2023 = vpop.xlane.xlu0 %2022
          %2024 = vadd.xlane.f32.xlu0 %v1897
          %v2025 = vpop.xlane.xlu0 %2024
          %2026 = vadd.xlane.f32.xlu0 %v1899
          %v2027 = vpop.xlane.xlu0 %2026
          %2028 = vadd.xlane.f32.xlu0 %v1901
          %v2029 = vpop.xlane.xlu0 %2028
          %2030 = vadd.xlane.f32.xlu0 %v1903
          %v2031 = vpop.xlane.xlu0 %2030
          %2032 = vadd.xlane.f32.xlu0 %v1905
          %v2033 = vpop.xlane.xlu0 %2032
          %2034 = vadd.xlane.f32.xlu0 %v1907
          %v2035 = vpop.xlane.xlu0 %2034
          %2036 = vadd.xlane.f32.xlu0 %v1909
          %v2037 = vpop.xlane.xlu0 %2036
          %2038 = vadd.xlane.f32.xlu0 %v1911
          %v2039 = vpop.xlane.xlu0 %2038
          %v2040 = vadd.f32 %v1944, %v1977
          %v2041 = vadd.f32 %v1945, %v1979
          %v2042 = vadd.f32 %v1946, %v1981
          %v2043 = vadd.f32 %v1947, %v1983
          %v2044 = vadd.f32 %v1948, %v1985
          %v2045 = vadd.f32 %v1949, %v1987
          %v2046 = vadd.f32 %v1950, %v1989
          %v2047 = vadd.f32 %v1951, %v1991
          %v2048 = vadd.f32 %v1952, %v1993
          %v2049 = vadd.f32 %v1953, %v1995
          %v2050 = vadd.f32 %v1954, %v1997
          %v2051 = vadd.f32 %v1955, %v1999
          %v2052 = vadd.f32 %v1956, %v2001
          %v2053 = vadd.f32 %v1957, %v2003
          %v2054 = vadd.f32 %v1958, %v2005
          %v2055 = vadd.f32 %v1959, %v2007
          %v2056 = vadd.f32 %v1960, %v2009
          %v2057 = vadd.f32 %v1961, %v2011
          %v2058 = vadd.f32 %v1962, %v2013
          %v2059 = vadd.f32 %v1963, %v2015
          %v2060 = vadd.f32 %v1964, %v2017
          %v2061 = vadd.f32 %v1965, %v2019
          %v2062 = vadd.f32 %v1966, %v2021
          %v2063 = vadd.f32 %v1967, %v2023
          %v2064 = vadd.f32 %v1968, %v2025
          %v2065 = vadd.f32 %v1969, %v2027
          %v2066 = vadd.f32 %v1970, %v2029
          %v2067 = vadd.f32 %v1971, %v2031
          %v2068 = vadd.f32 %v1972, %v2033
          %v2069 = vadd.f32 %v1973, %v2035
          %v2070 = vadd.f32 %v1974, %v2037
          %v2071 = vadd.f32 %v1975, %v2039
          %vm2072 = vcmask 7168
          %2073 = vst.msk [vmem:[#allocation7] sm:$0xff] %vm2072, %v2040
          %2074 = vst.msk [vmem:[#allocation7 + $0x8] sm:$0xff] %vm2072, %v2041
          %2075 = vst.msk [vmem:[#allocation7 + $0x10] sm:$0xff] %vm2072, %v2042
          %2076 = vst.msk [vmem:[#allocation7 + $0x18] sm:$0xff] %vm2072, %v2043
          %2077 = vst.msk [vmem:[#allocation7 + $0x20] sm:$0xff] %vm2072, %v2044
          %2078 = vst.msk [vmem:[#allocation7 + $0x28] sm:$0xff] %vm2072, %v2045
          %2079 = vst.msk [vmem:[#allocation7 + $0x30] sm:$0xff] %vm2072, %v2046
          %2080 = vst.msk [vmem:[#allocation7 + $0x38] sm:$0xff] %vm2072, %v2047
          %2081 = vst.msk [vmem:[#allocation7 + $0x40] sm:$0xff] %vm2072, %v2048
          %2082 = vst.msk [vmem:[#allocation7 + $0x48] sm:$0xff] %vm2072, %v2049
          %2083 = vst.msk [vmem:[#allocation7 + $0x50] sm:$0xff] %vm2072, %v2050
          %2084 = vst.msk [vmem:[#allocation7 + $0x58] sm:$0xff] %vm2072, %v2051
          %2085 = vst.msk [vmem:[#allocation7 + $0x60] sm:$0xff] %vm2072, %v2052
          %2086 = vst.msk [vmem:[#allocation7 + $0x68] sm:$0xff] %vm2072, %v2053
          %2087 = vst.msk [vmem:[#allocation7 + $0x70] sm:$0xff] %vm2072, %v2054
          %2088 = vst.msk [vmem:[#allocation7 + $0x78] sm:$0xff] %vm2072, %v2055
          %2089 = vst.msk [vmem:[#allocation7 + $0x80] sm:$0xff] %vm2072, %v2056
          %2090 = vst.msk [vmem:[#allocation7 + $0x88] sm:$0xff] %vm2072, %v2057
          %2091 = vst.msk [vmem:[#allocation7 + $0x90] sm:$0xff] %vm2072, %v2058
          %2092 = vst.msk [vmem:[#allocation7 + $0x98] sm:$0xff] %vm2072, %v2059
          %2093 = vst.msk [vmem:[#allocation7 + $0xa0] sm:$0xff] %vm2072, %v2060
          %2094 = vst.msk [vmem:[#allocation7 + $0xa8] sm:$0xff] %vm2072, %v2061
          %2095 = vst.msk [vmem:[#allocation7 + $0xb0] sm:$0xff] %vm2072, %v2062
          %2096 = vst.msk [vmem:[#allocation7 + $0xb8] sm:$0xff] %vm2072, %v2063
          %2097 = vst.msk [vmem:[#allocation7 + $0xc0] sm:$0xff] %vm2072, %v2064
          %2098 = vst.msk [vmem:[#allocation7 + $0xc8] sm:$0xff] %vm2072, %v2065
          %2099 = vst.msk [vmem:[#allocation7 + $0xd0] sm:$0xff] %vm2072, %v2066
          %2100 = vst.msk [vmem:[#allocation7 + $0xd8] sm:$0xff] %vm2072, %v2067
          %2101 = vst.msk [vmem:[#allocation7 + $0xe0] sm:$0xff] %vm2072, %v2068
          %2102 = vst.msk [vmem:[#allocation7 + $0xe8] sm:$0xff] %vm2072, %v2069
          %2103 = vst.msk [vmem:[#allocation7 + $0xf0] sm:$0xff] %vm2072, %v2070
          %2104 = vst.msk [vmem:[#allocation7 + $0xf8] sm:$0xff] %vm2072, %v2071
          %v2105 = vld [vmem:[#allocation5] sm:$0xff]
          %v2106 = vld [vmem:[#allocation5 + $0x8] sm:$0xff]
          %v2107 = vld [vmem:[#allocation5 + $0x10] sm:$0xff]
          %v2108 = vld [vmem:[#allocation5 + $0x18] sm:$0xff]
          %v2109 = vld [vmem:[#allocation5 + $0x20] sm:$0xff]
          %v2110 = vld [vmem:[#allocation5 + $0x28] sm:$0xff]
          %v2111 = vld [vmem:[#allocation5 + $0x30] sm:$0xff]
          %v2112 = vld [vmem:[#allocation5 + $0x38] sm:$0xff]
          %v2113 = vld [vmem:[#allocation5 + $0x40] sm:$0xff]
          %v2114 = vld [vmem:[#allocation5 + $0x48] sm:$0xff]
          %v2115 = vld [vmem:[#allocation5 + $0x50] sm:$0xff]
          %v2116 = vld [vmem:[#allocation5 + $0x58] sm:$0xff]
          %v2117 = vld [vmem:[#allocation5 + $0x60] sm:$0xff]
          %v2118 = vld [vmem:[#allocation5 + $0x68] sm:$0xff]
          %v2119 = vld [vmem:[#allocation5 + $0x70] sm:$0xff]
          %v2120 = vld [vmem:[#allocation5 + $0x78] sm:$0xff]
          %v2121 = vld [vmem:[#allocation5 + $0x80] sm:$0xff]
          %v2122 = vld [vmem:[#allocation5 + $0x88] sm:$0xff]
          %v2123 = vld [vmem:[#allocation5 + $0x90] sm:$0xff]
          %v2124 = vld [vmem:[#allocation5 + $0x98] sm:$0xff]
          %v2125 = vld [vmem:[#allocation5 + $0xa0] sm:$0xff]
          %v2126 = vld [vmem:[#allocation5 + $0xa8] sm:$0xff]
          %v2127 = vld [vmem:[#allocation5 + $0xb0] sm:$0xff]
          %v2128 = vld [vmem:[#allocation5 + $0xb8] sm:$0xff]
          %v2129 = vld [vmem:[#allocation5 + $0xc0] sm:$0xff]
          %v2130 = vld [vmem:[#allocation5 + $0xc8] sm:$0xff]
          %v2131 = vld [vmem:[#allocation5 + $0xd0] sm:$0xff]
          %v2132 = vld [vmem:[#allocation5 + $0xd8] sm:$0xff]
          %v2133 = vld [vmem:[#allocation5 + $0xe0] sm:$0xff]
          %v2134 = vld [vmem:[#allocation5 + $0xe8] sm:$0xff]
          %v2135 = vld [vmem:[#allocation5 + $0xf0] sm:$0xff]
          %v2136 = vld [vmem:[#allocation5 + $0xf8] sm:$0xff]
          %2138 = vset.pattern.permute.xlu0 0
          %2139 = vperm.xlu0 %2138, %v1593
          %v2140 = vpop.permute.xlu0 %2139
          %2143 = vset.pattern.permute.xlu0 0
          %2144 = vperm.xlu0 %2143, %v1595
          %v2145 = vpop.permute.xlu0 %2144
          %2148 = vset.pattern.permute.xlu0 0
          %2149 = vperm.xlu0 %2148, %v1597
          %v2150 = vpop.permute.xlu0 %2149
          %2153 = vset.pattern.permute.xlu0 0
          %2154 = vperm.xlu0 %2153, %v1599
          %v2155 = vpop.permute.xlu0 %2154
          %2158 = vset.pattern.permute.xlu0 0
          %2159 = vperm.xlu0 %2158, %v1601
          %v2160 = vpop.permute.xlu0 %2159
          %2163 = vset.pattern.permute.xlu0 0
          %2164 = vperm.xlu0 %2163, %v1603
          %v2165 = vpop.permute.xlu0 %2164
          %2168 = vset.pattern.permute.xlu0 0
          %2169 = vperm.xlu0 %2168, %v1605
          %v2170 = vpop.permute.xlu0 %2169
          %2173 = vset.pattern.permute.xlu0 0
          %2174 = vperm.xlu0 %2173, %v1607
          %v2175 = vpop.permute.xlu0 %2174
          %2178 = vset.pattern.permute.xlu0 0
          %2179 = vperm.xlu0 %2178, %v1609
          %v2180 = vpop.permute.xlu0 %2179
          %2183 = vset.pattern.permute.xlu0 0
          %2184 = vperm.xlu0 %2183, %v1611
          %v2185 = vpop.permute.xlu0 %2184
          %2188 = vset.pattern.permute.xlu0 0
          %2189 = vperm.xlu0 %2188, %v1613
          %v2190 = vpop.permute.xlu0 %2189
          %2193 = vset.pattern.permute.xlu0 0
          %2194 = vperm.xlu0 %2193, %v1615
          %v2195 = vpop.permute.xlu0 %2194
          %2198 = vset.pattern.permute.xlu0 0
          %2199 = vperm.xlu0 %2198, %v1617
          %v2200 = vpop.permute.xlu0 %2199
          %2203 = vset.pattern.permute.xlu0 0
          %2204 = vperm.xlu0 %2203, %v1619
          %v2205 = vpop.permute.xlu0 %2204
          %2208 = vset.pattern.permute.xlu0 0
          %2209 = vperm.xlu0 %2208, %v1621
          %v2210 = vpop.permute.xlu0 %2209
          %2213 = vset.pattern.permute.xlu0 0
          %2214 = vperm.xlu0 %2213, %v1623
          %v2215 = vpop.permute.xlu0 %2214
          %2218 = vset.pattern.permute.xlu0 0
          %2219 = vperm.xlu0 %2218, %v1625
          %v2220 = vpop.permute.xlu0 %2219
          %2223 = vset.pattern.permute.xlu0 0
          %2224 = vperm.xlu0 %2223, %v1627
          %v2225 = vpop.permute.xlu0 %2224
          %2228 = vset.pattern.permute.xlu0 0
          %2229 = vperm.xlu0 %2228, %v1629
          %v2230 = vpop.permute.xlu0 %2229
          %2233 = vset.pattern.permute.xlu0 0
          %2234 = vperm.xlu0 %2233, %v1631
          %v2235 = vpop.permute.xlu0 %2234
          %2238 = vset.pattern.permute.xlu0 0
          %2239 = vperm.xlu0 %2238, %v1633
          %v2240 = vpop.permute.xlu0 %2239
          %2243 = vset.pattern.permute.xlu0 0
          %2244 = vperm.xlu0 %2243, %v1635
          %v2245 = vpop.permute.xlu0 %2244
          %2248 = vset.pattern.permute.xlu0 0
          %2249 = vperm.xlu0 %2248, %v1637
          %v2250 = vpop.permute.xlu0 %2249
          %2253 = vset.pattern.permute.xlu0 0
          %2254 = vperm.xlu0 %2253, %v1639
          %v2255 = vpop.permute.xlu0 %2254
          %2258 = vset.pattern.permute.xlu0 0
          %2259 = vperm.xlu0 %2258, %v1641
          %v2260 = vpop.permute.xlu0 %2259
          %2263 = vset.pattern.permute.xlu0 0
          %2264 = vperm.xlu0 %2263, %v1643
          %v2265 = vpop.permute.xlu0 %2264
          %2268 = vset.pattern.permute.xlu0 0
          %2269 = vperm.xlu0 %2268, %v1645
          %v2270 = vpop.permute.xlu0 %2269
          %2273 = vset.pattern.permute.xlu0 0
          %2274 = vperm.xlu0 %2273, %v1647
          %v2275 = vpop.permute.xlu0 %2274
          %2278 = vset.pattern.permute.xlu0 0
          %2279 = vperm.xlu0 %2278, %v1649
          %v2280 = vpop.permute.xlu0 %2279
          %2283 = vset.pattern.permute.xlu0 0
          %2284 = vperm.xlu0 %2283, %v1651
          %v2285 = vpop.permute.xlu0 %2284
          %2288 = vset.pattern.permute.xlu0 0
          %2289 = vperm.xlu0 %2288, %v1653
          %v2290 = vpop.permute.xlu0 %2289
          %2293 = vset.pattern.permute.xlu0 0
          %2294 = vperm.xlu0 %2293, %v1655
          %v2295 = vpop.permute.xlu0 %2294
          %v2297 = vmul.f32 %v2140, %v2105
          %v2298 = vmul.f32 %v2145, %v2106
          %v2299 = vmul.f32 %v2150, %v2107
          %v2300 = vmul.f32 %v2155, %v2108
          %v2301 = vmul.f32 %v2160, %v2109
          %v2302 = vmul.f32 %v2165, %v2110
          %v2303 = vmul.f32 %v2170, %v2111
          %v2304 = vmul.f32 %v2175, %v2112
          %v2305 = vmul.f32 %v2180, %v2113
          %v2306 = vmul.f32 %v2185, %v2114
          %v2307 = vmul.f32 %v2190, %v2115
          %v2308 = vmul.f32 %v2195, %v2116
          %v2309 = vmul.f32 %v2200, %v2117
          %v2310 = vmul.f32 %v2205, %v2118
          %v2311 = vmul.f32 %v2210, %v2119
          %v2312 = vmul.f32 %v2215, %v2120
          %v2313 = vmul.f32 %v2220, %v2121
          %v2314 = vmul.f32 %v2225, %v2122
          %v2315 = vmul.f32 %v2230, %v2123
          %v2316 = vmul.f32 %v2235, %v2124
          %v2317 = vmul.f32 %v2240, %v2125
          %v2318 = vmul.f32 %v2245, %v2126
          %v2319 = vmul.f32 %v2250, %v2127
          %v2320 = vmul.f32 %v2255, %v2128
          %v2321 = vmul.f32 %v2260, %v2129
          %v2322 = vmul.f32 %v2265, %v2130
          %v2323 = vmul.f32 %v2270, %v2131
          %v2324 = vmul.f32 %v2275, %v2132
          %v2325 = vmul.f32 %v2280, %v2133
          %v2326 = vmul.f32 %v2285, %v2134
          %v2327 = vmul.f32 %v2290, %v2135
          %v2328 = vmul.f32 %v2295, %v2136
          %2329 = vmatprep.subr.mxu0 0.0
          %2330 = vmatpush1.msra.mxu0 %v885
          %2331 = vmatprep.subr.mxu0 0.0
          %2332 = vmatpush1.msra.mxu0 %v886
          %2333 = vmatprep.subr.mxu0 0.0
          %2334 = vmatpush1.msra.mxu0 %v887
          %2335 = vmatprep.subr.mxu0 0.0
          %2336 = vmatpush1.msra.mxu0 %v888
          %2337 = vmatprep.subr.mxu0 0.0
          %2338 = vmatpush1.msra.mxu0 %v889
          %2339 = vmatprep.subr.mxu0 0.0
          %2340 = vmatpush1.msra.mxu0 %v890
          %2341 = vmatprep.subr.mxu0 0.0
          %2342 = vmatpush1.msra.mxu0 %v891
          %2343 = vmatprep.subr.mxu0 0.0
          %2344 = vmatpush1.msra.mxu0 %v892
          %2345 = vmatprep.subr.mxu0 0.0
          %2346 = vmatpush1.msra.mxu0 %v893
          %2347 = vmatprep.subr.mxu0 0.0
          %2348 = vmatpush1.msra.mxu0 %v894
          %2349 = vmatprep.subr.mxu0 0.0
          %2350 = vmatpush1.msra.mxu0 %v895
          %2351 = vmatprep.subr.mxu0 0.0
          %2352 = vmatpush1.msra.mxu0 %v896
          %2353 = vmatprep.subr.mxu0 0.0
          %2354 = vmatpush1.msra.mxu0 %v897
          %2355 = vmatprep.subr.mxu0 0.0
          %2356 = vmatpush1.msra.mxu0 %v898
          %2357 = vmatprep.subr.mxu0 0.0
          %2358 = vmatpush1.msra.mxu0 %v899
          %2359 = vmatprep.subr.mxu0 0.0
          %2360 = vmatpush1.msra.mxu0 %v900
          %2361 = vmatprep.subr.mxu0 0.0
          %2362 = vmatpush1.msra.mxu0 0.0
          %2363 = vmatprep.subr.mxu0 0.0
          %2364 = vmatpush1.msra.mxu0 0.0
          %2365 = vmatprep.subr.mxu0 0.0
          %2366 = vmatpush1.msra.mxu0 0.0
          %2367 = vmatprep.subr.mxu0 0.0
          %2368 = vmatpush1.msra.mxu0 0.0
          %2369 = vmatprep.subr.mxu0 0.0
          %2370 = vmatpush1.msra.mxu0 0.0
          %2371 = vmatprep.subr.mxu0 0.0
          %2372 = vmatpush1.msra.mxu0 0.0
          %2373 = vmatprep.subr.mxu0 0.0
          %2374 = vmatpush1.msra.mxu0 0.0
          %2375 = vmatprep.subr.mxu0 0.0
          %2376 = vmatpush1.msra.mxu0 0.0
          %2377 = vmatprep.subr.mxu0 0.0
          %2378 = vmatpush1.msra.mxu0 0.0
          %2379 = vmatprep.subr.mxu0 0.0
          %2380 = vmatpush1.msra.mxu0 0.0
          %2381 = vmatprep.subr.mxu0 0.0
          %2382 = vmatpush1.msra.mxu0 0.0
          %2383 = vmatprep.subr.mxu0 0.0
          %2384 = vmatpush1.msra.mxu0 0.0
          %2385 = vmatprep.subr.mxu0 0.0
          %2386 = vmatpush1.msra.mxu0 0.0
          %2387 = vmatprep.subr.mxu0 0.0
          %2388 = vmatpush1.msra.mxu0 0.0
          %2389 = vmatprep.subr.mxu0 0.0
          %2390 = vmatpush1.msra.mxu0 0.0
          %2391 = vmatprep.subr.mxu0 0.0
          %2392 = vmatpush1.msra.mxu0 0.0
          %2393 = vmatprep.mubr.f32.mxu0 0.0
          %2394 = vmatmul.mubr.f32.gmra.mrb[0].mxu0 %v1849
          %v2395 = vpop.f32.mrb[0].mxu0
          %v2396 = vadd.f32 0.0, %v2395
          %v2397 = vpop.f32.mrb[0].mxu0
          %2398 = vmatprep.mubr.f32.mxu0 0.0
          %2399 = vmatmul.mubr.f32.gmra.mrb[0].mxu0 %v1851
          %v2400 = vpop.f32.mrb[0].mxu0
          %v2401 = vadd.f32 0.0, %v2400
          %v2402 = vpop.f32.mrb[0].mxu0
          %2403 = vmatprep.mubr.f32.mxu0 0.0
          %2404 = vmatmul.mubr.f32.gmra.mrb[0].mxu0 %v1853
          %v2405 = vpop.f32.mrb[0].mxu0
          %v2406 = vadd.f32 0.0, %v2405
          %v2407 = vpop.f32.mrb[0].mxu0
          %2408 = vmatprep.mubr.f32.mxu0 0.0
          %2409 = vmatmul.mubr.f32.gmra.mrb[0].mxu0 %v1855
          %v2410 = vpop.f32.mrb[0].mxu0
          %v2411 = vadd.f32 0.0, %v2410
          %v2412 = vpop.f32.mrb[0].mxu0
          %2413 = vmatprep.mubr.f32.mxu0 0.0
          %2414 = vmatmul.mubr.f32.gmra.mrb[0].mxu0 %v1857
          %v2415 = vpop.f32.mrb[0].mxu0
          %v2416 = vadd.f32 0.0, %v2415
          %v2417 = vpop.f32.mrb[0].mxu0
          %2418 = vmatprep.mubr.f32.mxu0 0.0
          %2419 = vmatmul.mubr.f32.gmra.mrb[0].mxu0 %v1859
          %v2420 = vpop.f32.mrb[0].mxu0
          %v2421 = vadd.f32 0.0, %v2420
          %v2422 = vpop.f32.mrb[0].mxu0
          %2423 = vmatprep.mubr.f32.mxu0 0.0
          %2424 = vmatmul.mubr.f32.gmra.mrb[0].mxu0 %v1861
          %v2425 = vpop.f32.mrb[0].mxu0
          %v2426 = vadd.f32 0.0, %v2425
          %v2427 = vpop.f32.mrb[0].mxu0
          %2428 = vmatprep.mubr.f32.mxu0 0.0
          %2429 = vmatmul.mubr.f32.gmra.mrb[0].mxu0 %v1863
          %v2430 = vpop.f32.mrb[0].mxu0
          %v2431 = vadd.f32 0.0, %v2430
          %v2432 = vpop.f32.mrb[0].mxu0
          %2433 = vmatprep.mubr.f32.mxu0 0.0
          %2434 = vmatmul.mubr.f32.gmra.mrb[0].mxu0 %v1865
          %v2435 = vpop.f32.mrb[0].mxu0
          %v2436 = vadd.f32 0.0, %v2435
          %v2437 = vpop.f32.mrb[0].mxu0
          %2438 = vmatprep.mubr.f32.mxu0 0.0
          %2439 = vmatmul.mubr.f32.gmra.mrb[0].mxu0 %v1867
          %v2440 = vpop.f32.mrb[0].mxu0
          %v2441 = vadd.f32 0.0, %v2440
          %v2442 = vpop.f32.mrb[0].mxu0
          %2443 = vmatprep.mubr.f32.mxu0 0.0
          %2444 = vmatmul.mubr.f32.gmra.mrb[0].mxu0 %v1869
          %v2445 = vpop.f32.mrb[0].mxu0
          %v2446 = vadd.f32 0.0, %v2445
          %v2447 = vpop.f32.mrb[0].mxu0
          %2448 = vmatprep.mubr.f32.mxu0 0.0
          %2449 = vmatmul.mubr.f32.gmra.mrb[0].mxu0 %v1871
          %v2450 = vpop.f32.mrb[0].mxu0
          %v2451 = vadd.f32 0.0, %v2450
          %v2452 = vpop.f32.mrb[0].mxu0
          %2453 = vmatprep.mubr.f32.mxu0 0.0
          %2454 = vmatmul.mubr.f32.gmra.mrb[0].mxu0 %v1873
          %v2455 = vpop.f32.mrb[0].mxu0
          %v2456 = vadd.f32 0.0, %v2455
          %v2457 = vpop.f32.mrb[0].mxu0
          %2458 = vmatprep.mubr.f32.mxu0 0.0
          %2459 = vmatmul.mubr.f32.gmra.mrb[0].mxu0 %v1875
          %v2460 = vpop.f32.mrb[0].mxu0
          %v2461 = vadd.f32 0.0, %v2460
          %v2462 = vpop.f32.mrb[0].mxu0
          %2463 = vmatprep.mubr.f32.mxu0 0.0
          %2464 = vmatmul.mubr.f32.gmra.mrb[0].mxu0 %v1877
          %v2465 = vpop.f32.mrb[0].mxu0
          %v2466 = vadd.f32 0.0, %v2465
          %v2467 = vpop.f32.mrb[0].mxu0
          %2468 = vmatprep.mubr.f32.mxu0 0.0
          %2469 = vmatmul.mubr.f32.gmra.mrb[0].mxu0 %v1879
          %v2470 = vpop.f32.mrb[0].mxu0
          %v2471 = vadd.f32 0.0, %v2470
          %v2472 = vpop.f32.mrb[0].mxu0
          %2473 = vdwg.mxu0
          %2474 = vmatprep.subr.mxu0 0.0
          %2475 = vmatpush1.msra.mxu0 %v901
          %2476 = vmatprep.subr.mxu0 0.0
          %2477 = vmatpush1.msra.mxu0 %v902
          %2478 = vmatprep.subr.mxu0 0.0
          %2479 = vmatpush1.msra.mxu0 %v903
          %2480 = vmatprep.subr.mxu0 0.0
          %2481 = vmatpush1.msra.mxu0 %v904
          %2482 = vmatprep.subr.mxu0 0.0
          %2483 = vmatpush1.msra.mxu0 %v905
          %2484 = vmatprep.subr.mxu0 0.0
          %2485 = vmatpush1.msra.mxu0 %v906
          %2486 = vmatprep.subr.mxu0 0.0
          %2487 = vmatpush1.msra.mxu0 %v907
          %2488 = vmatprep.subr.mxu0 0.0
          %2489 = vmatpush1.msra.mxu0 %v908
          %2490 = vmatprep.subr.mxu0 0.0
          %2491 = vmatpush1.msra.mxu0 %v909
          %2492 = vmatprep.subr.mxu0 0.0
          %2493 = vmatpush1.msra.mxu0 %v910
          %2494 = vmatprep.subr.mxu0 0.0
          %2495 = vmatpush1.msra.mxu0 %v911
          %2496 = vmatprep.subr.mxu0 0.0
          %2497 = vmatpush1.msra.mxu0 %v912
          %2498 = vmatprep.subr.mxu0 0.0
          %2499 = vmatpush1.msra.mxu0 %v913
          %2500 = vmatprep.subr.mxu0 0.0
          %2501 = vmatpush1.msra.mxu0 %v914
          %2502 = vmatprep.subr.mxu0 0.0
          %2503 = vmatpush1.msra.mxu0 %v915
          %2504 = vmatprep.subr.mxu0 0.0
          %2505 = vmatpush1.msra.mxu0 %v916
          %2506 = vmatprep.subr.mxu0 0.0
          %2507 = vmatpush1.msra.mxu0 0.0
          %2508 = vmatprep.subr.mxu0 0.0
          %2509 = vmatpush1.msra.mxu0 0.0
          %2510 = vmatprep.subr.mxu0 0.0
          %2511 = vmatpush1.msra.mxu0 0.0
          %2512 = vmatprep.subr.mxu0 0.0
          %2513 = vmatpush1.msra.mxu0 0.0
          %2514 = vmatprep.subr.mxu0 0.0
          %2515 = vmatpush1.msra.mxu0 0.0
          %2516 = vmatprep.subr.mxu0 0.0
          %2517 = vmatpush1.msra.mxu0 0.0
          %2518 = vmatprep.subr.mxu0 0.0
          %2519 = vmatpush1.msra.mxu0 0.0
          %2520 = vmatprep.subr.mxu0 0.0
          %2521 = vmatpush1.msra.mxu0 0.0
          %2522 = vmatprep.subr.mxu0 0.0
          %2523 = vmatpush1.msra.mxu0 0.0
          %2524 = vmatprep.subr.mxu0 0.0
          %2525 = vmatpush1.msra.mxu0 0.0
          %2526 = vmatprep.subr.mxu0 0.0
          %2527 = vmatpush1.msra.mxu0 0.0
          %2528 = vmatprep.subr.mxu0 0.0
          %2529 = vmatpush1.msra.mxu0 0.0
          %2530 = vmatprep.subr.mxu0 0.0
          %2531 = vmatpush1.msra.mxu0 0.0
          %2532 = vmatprep.subr.mxu0 0.0
          %2533 = vmatpush1.msra.mxu0 0.0
          %2534 = vmatprep.subr.mxu0 0.0
          %2535 = vmatpush1.msra.mxu0 0.0
          %2536 = vmatprep.subr.mxu0 0.0
          %2537 = vmatpush1.msra.mxu0 0.0
          %2538 = vmatprep.mubr.f32.mxu0 0.0
          %2539 = vmatmul.mubr.f32.gmra.mrb[0].mxu0 %v1881
          %v2540 = vpop.f32.mrb[0].mxu0
          %v2541 = vadd.f32 0.0, %v2540
          %v2542 = vpop.f32.mrb[0].mxu0
          %2543 = vmatprep.mubr.f32.mxu0 0.0
          %2544 = vmatmul.mubr.f32.gmra.mrb[0].mxu0 %v1883
          %v2545 = vpop.f32.mrb[0].mxu0
          %v2546 = vadd.f32 0.0, %v2545
          %v2547 = vpop.f32.mrb[0].mxu0
          %2548 = vmatprep.mubr.f32.mxu0 0.0
          %2549 = vmatmul.mubr.f32.gmra.mrb[0].mxu0 %v1885
          %v2550 = vpop.f32.mrb[0].mxu0
          %v2551 = vadd.f32 0.0, %v2550
          %v2552 = vpop.f32.mrb[0].mxu0
          %2553 = vmatprep.mubr.f32.mxu0 0.0
          %2554 = vmatmul.mubr.f32.gmra.mrb[0].mxu0 %v1887
          %v2555 = vpop.f32.mrb[0].mxu0
          %v2556 = vadd.f32 0.0, %v2555
          %v2557 = vpop.f32.mrb[0].mxu0
          %2558 = vmatprep.mubr.f32.mxu0 0.0
          %2559 = vmatmul.mubr.f32.gmra.mrb[0].mxu0 %v1889
          %v2560 = vpop.f32.mrb[0].mxu0
          %v2561 = vadd.f32 0.0, %v2560
          %v2562 = vpop.f32.mrb[0].mxu0
          %2563 = vmatprep.mubr.f32.mxu0 0.0
          %2564 = vmatmul.mubr.f32.gmra.mrb[0].mxu0 %v1891
          %v2565 = vpop.f32.mrb[0].mxu0
          %v2566 = vadd.f32 0.0, %v2565
          %v2567 = vpop.f32.mrb[0].mxu0
          %2568 = vmatprep.mubr.f32.mxu0 0.0
          %2569 = vmatmul.mubr.f32.gmra.mrb[0].mxu0 %v1893
          %v2570 = vpop.f32.mrb[0].mxu0
          %v2571 = vadd.f32 0.0, %v2570
          %v2572 = vpop.f32.mrb[0].mxu0
          %2573 = vmatprep.mubr.f32.mxu0 0.0
          %2574 = vmatmul.mubr.f32.gmra.mrb[0].mxu0 %v1895
          %v2575 = vpop.f32.mrb[0].mxu0
          %v2576 = vadd.f32 0.0, %v2575
          %v2577 = vpop.f32.mrb[0].mxu0
          %2578 = vmatprep.mubr.f32.mxu0 0.0
          %2579 = vmatmul.mubr.f32.gmra.mrb[0].mxu0 %v1897
          %v2580 = vpop.f32.mrb[0].mxu0
          %v2581 = vadd.f32 0.0, %v2580
          %v2582 = vpop.f32.mrb[0].mxu0
          %2583 = vmatprep.mubr.f32.mxu0 0.0
          %2584 = vmatmul.mubr.f32.gmra.mrb[0].mxu0 %v1899
          %v2585 = vpop.f32.mrb[0].mxu0
          %v2586 = vadd.f32 0.0, %v2585
          %v2587 = vpop.f32.mrb[0].mxu0
          %2588 = vmatprep.mubr.f32.mxu0 0.0
          %2589 = vmatmul.mubr.f32.gmra.mrb[0].mxu0 %v1901
          %v2590 = vpop.f32.mrb[0].mxu0
          %v2591 = vadd.f32 0.0, %v2590
          %v2592 = vpop.f32.mrb[0].mxu0
          %2593 = vmatprep.mubr.f32.mxu0 0.0
          %2594 = vmatmul.mubr.f32.gmra.mrb[0].mxu0 %v1903
          %v2595 = vpop.f32.mrb[0].mxu0
          %v2596 = vadd.f32 0.0, %v2595
          %v2597 = vpop.f32.mrb[0].mxu0
          %2598 = vmatprep.mubr.f32.mxu0 0.0
          %2599 = vmatmul.mubr.f32.gmra.mrb[0].mxu0 %v1905
          %v2600 = vpop.f32.mrb[0].mxu0
          %v2601 = vadd.f32 0.0, %v2600
          %v2602 = vpop.f32.mrb[0].mxu0
          %2603 = vmatprep.mubr.f32.mxu0 0.0
          %2604 = vmatmul.mubr.f32.gmra.mrb[0].mxu0 %v1907
          %v2605 = vpop.f32.mrb[0].mxu0
          %v2606 = vadd.f32 0.0, %v2605
          %v2607 = vpop.f32.mrb[0].mxu0
          %2608 = vmatprep.mubr.f32.mxu0 0.0
          %2609 = vmatmul.mubr.f32.gmra.mrb[0].mxu0 %v1909
          %v2610 = vpop.f32.mrb[0].mxu0
          %v2611 = vadd.f32 0.0, %v2610
          %v2612 = vpop.f32.mrb[0].mxu0
          %2613 = vmatprep.mubr.f32.mxu0 0.0
          %2614 = vmatmul.mubr.f32.gmra.mrb[0].mxu0 %v1911
          %v2615 = vpop.f32.mrb[0].mxu0
          %v2616 = vadd.f32 0.0, %v2615
          %v2617 = vpop.f32.mrb[0].mxu0
          %2618 = vdwg.mxu0
          %v2619 = vadd.f32 %v2297, %v2396
          %v2620 = vadd.f32 %v2298, %v2401
          %v2621 = vadd.f32 %v2299, %v2406
          %v2622 = vadd.f32 %v2300, %v2411
          %v2623 = vadd.f32 %v2301, %v2416
          %v2624 = vadd.f32 %v2302, %v2421
          %v2625 = vadd.f32 %v2303, %v2426
          %v2626 = vadd.f32 %v2304, %v2431
          %v2627 = vadd.f32 %v2305, %v2436
          %v2628 = vadd.f32 %v2306, %v2441
          %v2629 = vadd.f32 %v2307, %v2446
          %v2630 = vadd.f32 %v2308, %v2451
          %v2631 = vadd.f32 %v2309, %v2456
          %v2632 = vadd.f32 %v2310, %v2461
          %v2633 = vadd.f32 %v2311, %v2466
          %v2634 = vadd.f32 %v2312, %v2471
          %v2635 = vadd.f32 %v2313, %v2541
          %v2636 = vadd.f32 %v2314, %v2546
          %v2637 = vadd.f32 %v2315, %v2551
          %v2638 = vadd.f32 %v2316, %v2556
          %v2639 = vadd.f32 %v2317, %v2561
          %v2640 = vadd.f32 %v2318, %v2566
          %v2641 = vadd.f32 %v2319, %v2571
          %v2642 = vadd.f32 %v2320, %v2576
          %v2643 = vadd.f32 %v2321, %v2581
          %v2644 = vadd.f32 %v2322, %v2586
          %v2645 = vadd.f32 %v2323, %v2591
          %v2646 = vadd.f32 %v2324, %v2596
          %v2647 = vadd.f32 %v2325, %v2601
          %v2648 = vadd.f32 %v2326, %v2606
          %v2649 = vadd.f32 %v2327, %v2611
          %v2650 = vadd.f32 %v2328, %v2616
          %2651 = vst.msk [vmem:[#allocation5] sm:$0xff] %vm949, %v2619
          %2652 = vst.msk [vmem:[#allocation5 + $0x8] sm:$0xff] %vm949, %v2620
          %2653 = vst.msk [vmem:[#allocation5 + $0x10] sm:$0xff] %vm949, %v2621
          %2654 = vst.msk [vmem:[#allocation5 + $0x18] sm:$0xff] %vm949, %v2622
          %2655 = vst.msk [vmem:[#allocation5 + $0x20] sm:$0xff] %vm949, %v2623
          %2656 = vst.msk [vmem:[#allocation5 + $0x28] sm:$0xff] %vm949, %v2624
          %2657 = vst.msk [vmem:[#allocation5 + $0x30] sm:$0xff] %vm949, %v2625
          %2658 = vst.msk [vmem:[#allocation5 + $0x38] sm:$0xff] %vm949, %v2626
          %2659 = vst.msk [vmem:[#allocation5 + $0x40] sm:$0xff] %vm949, %v2627
          %2660 = vst.msk [vmem:[#allocation5 + $0x48] sm:$0xff] %vm949, %v2628
          %2661 = vst.msk [vmem:[#allocation5 + $0x50] sm:$0xff] %vm949, %v2629
          %2662 = vst.msk [vmem:[#allocation5 + $0x58] sm:$0xff] %vm949, %v2630
          %2663 = vst.msk [vmem:[#allocation5 + $0x60] sm:$0xff] %vm949, %v2631
          %2664 = vst.msk [vmem:[#allocation5 + $0x68] sm:$0xff] %vm949, %v2632
          %2665 = vst.msk [vmem:[#allocation5 + $0x70] sm:$0xff] %vm949, %v2633
          %2666 = vst.msk [vmem:[#allocation5 + $0x78] sm:$0xff] %vm949, %v2634
          %2667 = vst.msk [vmem:[#allocation5 + $0x80] sm:$0xff] %vm949, %v2635
          %2668 = vst.msk [vmem:[#allocation5 + $0x88] sm:$0xff] %vm949, %v2636
          %2669 = vst.msk [vmem:[#allocation5 + $0x90] sm:$0xff] %vm949, %v2637
          %2670 = vst.msk [vmem:[#allocation5 + $0x98] sm:$0xff] %vm949, %v2638
          %2671 = vst.msk [vmem:[#allocation5 + $0xa0] sm:$0xff] %vm949, %v2639
          %2672 = vst.msk [vmem:[#allocation5 + $0xa8] sm:$0xff] %vm949, %v2640
          %2673 = vst.msk [vmem:[#allocation5 + $0xb0] sm:$0xff] %vm949, %v2641
          %2674 = vst.msk [vmem:[#allocation5 + $0xb8] sm:$0xff] %vm949, %v2642
          %2675 = vst.msk [vmem:[#allocation5 + $0xc0] sm:$0xff] %vm949, %v2643
          %2676 = vst.msk [vmem:[#allocation5 + $0xc8] sm:$0xff] %vm949, %v2644
          %2677 = vst.msk [vmem:[#allocation5 + $0xd0] sm:$0xff] %vm949, %v2645
          %2678 = vst.msk [vmem:[#allocation5 + $0xd8] sm:$0xff] %vm949, %v2646
          %2679 = vst.msk [vmem:[#allocation5 + $0xe0] sm:$0xff] %vm949, %v2647
          %2680 = vst.msk [vmem:[#allocation5 + $0xe8] sm:$0xff] %vm949, %v2648
          %2681 = vst.msk [vmem:[#allocation5 + $0xf0] sm:$0xff] %vm949, %v2649
          %2682 = vst.msk [vmem:[#allocation5 + $0xf8] sm:$0xff] %vm949, %v2650
          %2683 = vst.msk [vmem:[#allocation6] sm:$0xff] %vm2072, %v1528
          %2684 = vst.msk [vmem:[#allocation6 + $0x8] sm:$0xff] %vm2072, %v1529
          %2685 = vst.msk [vmem:[#allocation6 + $0x10] sm:$0xff] %vm2072, %v1530
          %2686 = vst.msk [vmem:[#allocation6 + $0x18] sm:$0xff] %vm2072, %v1531
          %2687 = vst.msk [vmem:[#allocation6 + $0x20] sm:$0xff] %vm2072, %v1532
          %2688 = vst.msk [vmem:[#allocation6 + $0x28] sm:$0xff] %vm2072, %v1533
          %2689 = vst.msk [vmem:[#allocation6 + $0x30] sm:$0xff] %vm2072, %v1534
          %2690 = vst.msk [vmem:[#allocation6 + $0x38] sm:$0xff] %vm2072, %v1535
          %2691 = vst.msk [vmem:[#allocation6 + $0x40] sm:$0xff] %vm2072, %v1536
          %2692 = vst.msk [vmem:[#allocation6 + $0x48] sm:$0xff] %vm2072, %v1537
          %2693 = vst.msk [vmem:[#allocation6 + $0x50] sm:$0xff] %vm2072, %v1538
          %2694 = vst.msk [vmem:[#allocation6 + $0x58] sm:$0xff] %vm2072, %v1539
          %2695 = vst.msk [vmem:[#allocation6 + $0x60] sm:$0xff] %vm2072, %v1540
          %2696 = vst.msk [vmem:[#allocation6 + $0x68] sm:$0xff] %vm2072, %v1541
          %2697 = vst.msk [vmem:[#allocation6 + $0x70] sm:$0xff] %vm2072, %v1542
          %2698 = vst.msk [vmem:[#allocation6 + $0x78] sm:$0xff] %vm2072, %v1543
          %2699 = vst.msk [vmem:[#allocation6 + $0x80] sm:$0xff] %vm2072, %v1544
          %2700 = vst.msk [vmem:[#allocation6 + $0x88] sm:$0xff] %vm2072, %v1545
          %2701 = vst.msk [vmem:[#allocation6 + $0x90] sm:$0xff] %vm2072, %v1546
          %2702 = vst.msk [vmem:[#allocation6 + $0x98] sm:$0xff] %vm2072, %v1547
          %2703 = vst.msk [vmem:[#allocation6 + $0xa0] sm:$0xff] %vm2072, %v1548
          %2704 = vst.msk [vmem:[#allocation6 + $0xa8] sm:$0xff] %vm2072, %v1549
          %2705 = vst.msk [vmem:[#allocation6 + $0xb0] sm:$0xff] %vm2072, %v1550
          %2706 = vst.msk [vmem:[#allocation6 + $0xb8] sm:$0xff] %vm2072, %v1551
          %2707 = vst.msk [vmem:[#allocation6 + $0xc0] sm:$0xff] %vm2072, %v1552
          %2708 = vst.msk [vmem:[#allocation6 + $0xc8] sm:$0xff] %vm2072, %v1553
          %2709 = vst.msk [vmem:[#allocation6 + $0xd0] sm:$0xff] %vm2072, %v1554
          %2710 = vst.msk [vmem:[#allocation6 + $0xd8] sm:$0xff] %vm2072, %v1555
          %2711 = vst.msk [vmem:[#allocation6 + $0xe0] sm:$0xff] %vm2072, %v1556
          %2712 = vst.msk [vmem:[#allocation6 + $0xe8] sm:$0xff] %vm2072, %v1557
          %2713 = vst.msk [vmem:[#allocation6 + $0xf0] sm:$0xff] %vm2072, %v1558
          %2714 = vst.msk [vmem:[#allocation6 + $0xf8] sm:$0xff] %vm2072, %v1559
        $region84: #{tpu_custom_call.1} parent=55 // pred_fallthru
          _
        %p2715 = scmp.eq.s32.totalorder %s447, %s446
        // Predicated region
        $region85: #{tpu_custom_call.1} parent=55 // pred_check
          %p2716 = pneg %p2715
        $region86: #{tpu_custom_call.1} parent=55 // pred_check_branch
          %2718 = sbr.rel (%p2716) target = $region88
        $region87: #{tpu_custom_call.1} parent=55 // pred_region
          %v2719 = vld [vmem:[%s391] sm:$0xff]
          %v2720 = vld [vmem:[%s391 + $0x8] sm:$0xff]
          %v2721 = vld [vmem:[%s391 + $0x10] sm:$0xff]
          %v2722 = vld [vmem:[%s391 + $0x18] sm:$0xff]
          %v2723 = vld [vmem:[%s391 + $0x20] sm:$0xff]
          %v2724 = vld [vmem:[%s391 + $0x28] sm:$0xff]
          %v2725 = vld [vmem:[%s391 + $0x30] sm:$0xff]
          %v2726 = vld [vmem:[%s391 + $0x38] sm:$0xff]
          %v2727 = vld [vmem:[%s391 + $0x40] sm:$0xff]
          %v2728 = vld [vmem:[%s391 + $0x48] sm:$0xff]
          %v2729 = vld [vmem:[%s391 + $0x50] sm:$0xff]
          %v2730 = vld [vmem:[%s391 + $0x58] sm:$0xff]
          %v2731 = vld [vmem:[%s391 + $0x60] sm:$0xff]
          %v2732 = vld [vmem:[%s391 + $0x68] sm:$0xff]
          %v2733 = vld [vmem:[%s391 + $0x70] sm:$0xff]
          %v2734 = vld [vmem:[%s391 + $0x78] sm:$0xff]
          %v2735 = vld [vmem:[#allocation16] sm:$0xff]
          %v2736 = vld [vmem:[#allocation16 + $0x8] sm:$0xff]
          %v2737 = vld [vmem:[#allocation16 + $0x10] sm:$0xff]
          %v2738 = vld [vmem:[#allocation16 + $0x18] sm:$0xff]
          %v2739 = vld [vmem:[#allocation16 + $0x20] sm:$0xff]
          %v2740 = vld [vmem:[#allocation16 + $0x28] sm:$0xff]
          %v2741 = vld [vmem:[#allocation16 + $0x30] sm:$0xff]
          %v2742 = vld [vmem:[#allocation16 + $0x38] sm:$0xff]
          %v2743 = vld [vmem:[#allocation16 + $0x40] sm:$0xff]
          %v2744 = vld [vmem:[#allocation16 + $0x48] sm:$0xff]
          %v2745 = vld [vmem:[#allocation16 + $0x50] sm:$0xff]
          %v2746 = vld [vmem:[#allocation16 + $0x58] sm:$0xff]
          %v2747 = vld [vmem:[#allocation16 + $0x60] sm:$0xff]
          %v2748 = vld [vmem:[#allocation16 + $0x68] sm:$0xff]
          %v2749 = vld [vmem:[#allocation16 + $0x70] sm:$0xff]
          %v2750 = vld [vmem:[#allocation16 + $0x78] sm:$0xff]
          %v2751 = vld [vmem:[%s8] sm:$0x1]
          %v2753 = vlaneseq
          %v2754 = vshrl.u32 %v2753, 7
          %v2755 = vsub.s32 0, %v2754
          %v2756 = vrot.slane %v2751, %v2755
          %2758 = vmatprep.subr.mxu0 0.0
          %2759 = vmatpush1.msra.mxu0 %v2735
          %2760 = vmatprep.subr.mxu0 0.0
          %2761 = vmatpush1.msra.mxu0 %v2736
          %2762 = vmatprep.subr.mxu0 0.0
          %2763 = vmatpush1.msra.mxu0 %v2737
          %2764 = vmatprep.subr.mxu0 0.0
          %2765 = vmatpush1.msra.mxu0 %v2738
          %2766 = vmatprep.subr.mxu0 0.0
          %2767 = vmatpush1.msra.mxu0 %v2739
          %2768 = vmatprep.subr.mxu0 0.0
          %2769 = vmatpush1.msra.mxu0 %v2740
          %2770 = vmatprep.subr.mxu0 0.0
          %2771 = vmatpush1.msra.mxu0 %v2741
          %2772 = vmatprep.subr.mxu0 0.0
          %2773 = vmatpush1.msra.mxu0 %v2742
          %2774 = vmatprep.subr.mxu0 0.0
          %2775 = vmatpush1.msra.mxu0 %v2743
          %2776 = vmatprep.subr.mxu0 0.0
          %2777 = vmatpush1.msra.mxu0 %v2744
          %2778 = vmatprep.subr.mxu0 0.0
          %2779 = vmatpush1.msra.mxu0 %v2745
          %2780 = vmatprep.subr.mxu0 0.0
          %2781 = vmatpush1.msra.mxu0 %v2746
          %2782 = vmatprep.subr.mxu0 0.0
          %2783 = vmatpush1.msra.mxu0 %v2747
          %2784 = vmatprep.subr.mxu0 0.0
          %2785 = vmatpush1.msra.mxu0 %v2748
          %2786 = vmatprep.subr.mxu0 0.0
          %2787 = vmatpush1.msra.mxu0 %v2749
          %2788 = vmatprep.subr.mxu0 0.0
          %2789 = vmatpush1.msra.mxu0 %v2750
          %2790 = vmatprep.subr.mxu0 0.0
          %2791 = vmatpush1.msra.mxu0 0.0
          %2792 = vmatprep.subr.mxu0 0.0
          %2793 = vmatpush1.msra.mxu0 0.0
          %2794 = vmatprep.subr.mxu0 0.0
          %2795 = vmatpush1.msra.mxu0 0.0
          %2796 = vmatprep.subr.mxu0 0.0
          %2797 = vmatpush1.msra.mxu0 0.0
          %2798 = vmatprep.subr.mxu0 0.0
          %2799 = vmatpush1.msra.mxu0 0.0
          %2800 = vmatprep.subr.mxu0 0.0
          %2801 = vmatpush1.msra.mxu0 0.0
          %2802 = vmatprep.subr.mxu0 0.0
          %2803 = vmatpush1.msra.mxu0 0.0
          %2804 = vmatprep.subr.mxu0 0.0
          %2805 = vmatpush1.msra.mxu0 0.0
          %2806 = vmatprep.subr.mxu0 0.0
          %2807 = vmatpush1.msra.mxu0 0.0
          %2808 = vmatprep.subr.mxu0 0.0
          %2809 = vmatpush1.msra.mxu0 0.0
          %2810 = vmatprep.subr.mxu0 0.0
          %2811 = vmatpush1.msra.mxu0 0.0
          %2812 = vmatprep.subr.mxu0 0.0
          %2813 = vmatpush1.msra.mxu0 0.0
          %2814 = vmatprep.subr.mxu0 0.0
          %2815 = vmatpush1.msra.mxu0 0.0
          %2816 = vmatprep.subr.mxu0 0.0
          %2817 = vmatpush1.msra.mxu0 0.0
          %2818 = vmatprep.subr.mxu0 0.0
          %2819 = vmatpush1.msra.mxu0 0.0
          %2820 = vmatprep.subr.mxu0 0.0
          %2821 = vmatpush1.msra.mxu0 0.0
          %2822 = vmatprep.mubr.f32.mxu0 0.0
          %2823 = vmatmul.mubr.f32.gmra.mrb[0].mxu0 %v2719
          %v2824 = vpop.f32.mrb[0].mxu0
          %v2825 = vadd.f32 %v2756, %v2824
          %v2826 = vpop.f32.mrb[0].mxu0
          %2827 = vmatprep.mubr.f32.mxu0 0.0
          %2828 = vmatmul.mubr.f32.gmra.mrb[0].mxu0 %v2720
          %v2829 = vpop.f32.mrb[0].mxu0
          %v2830 = vadd.f32 %v2756, %v2829
          %v2831 = vpop.f32.mrb[0].mxu0
          %2832 = vmatprep.mubr.f32.mxu0 0.0
          %2833 = vmatmul.mubr.f32.gmra.mrb[0].mxu0 %v2721
          %v2834 = vpop.f32.mrb[0].mxu0
          %v2835 = vadd.f32 %v2756, %v2834
          %v2836 = vpop.f32.mrb[0].mxu0
          %2837 = vmatprep.mubr.f32.mxu0 0.0
          %2838 = vmatmul.mubr.f32.gmra.mrb[0].mxu0 %v2722
          %v2839 = vpop.f32.mrb[0].mxu0
          %v2840 = vadd.f32 %v2756, %v2839
          %v2841 = vpop.f32.mrb[0].mxu0
          %2842 = vmatprep.mubr.f32.mxu0 0.0
          %2843 = vmatmul.mubr.f32.gmra.mrb[0].mxu0 %v2723
          %v2844 = vpop.f32.mrb[0].mxu0
          %v2845 = vadd.f32 %v2756, %v2844
          %v2846 = vpop.f32.mrb[0].mxu0
          %2847 = vmatprep.mubr.f32.mxu0 0.0
          %2848 = vmatmul.mubr.f32.gmra.mrb[0].mxu0 %v2724
          %v2849 = vpop.f32.mrb[0].mxu0
          %v2850 = vadd.f32 %v2756, %v2849
          %v2851 = vpop.f32.mrb[0].mxu0
          %2852 = vmatprep.mubr.f32.mxu0 0.0
          %2853 = vmatmul.mubr.f32.gmra.mrb[0].mxu0 %v2725
          %v2854 = vpop.f32.mrb[0].mxu0
          %v2855 = vadd.f32 %v2756, %v2854
          %v2856 = vpop.f32.mrb[0].mxu0
          %2857 = vmatprep.mubr.f32.mxu0 0.0
          %2858 = vmatmul.mubr.f32.gmra.mrb[0].mxu0 %v2726
          %v2859 = vpop.f32.mrb[0].mxu0
          %v2860 = vadd.f32 %v2756, %v2859
          %v2861 = vpop.f32.mrb[0].mxu0
          %2862 = vmatprep.mubr.f32.mxu0 0.0
          %2863 = vmatmul.mubr.f32.gmra.mrb[0].mxu0 %v2727
          %v2864 = vpop.f32.mrb[0].mxu0
          %v2865 = vadd.f32 %v2756, %v2864
          %v2866 = vpop.f32.mrb[0].mxu0
          %2867 = vmatprep.mubr.f32.mxu0 0.0
          %2868 = vmatmul.mubr.f32.gmra.mrb[0].mxu0 %v2728
          %v2869 = vpop.f32.mrb[0].mxu0
          %v2870 = vadd.f32 %v2756, %v2869
          %v2871 = vpop.f32.mrb[0].mxu0
          %2872 = vmatprep.mubr.f32.mxu0 0.0
          %2873 = vmatmul.mubr.f32.gmra.mrb[0].mxu0 %v2729
          %v2874 = vpop.f32.mrb[0].mxu0
          %v2875 = vadd.f32 %v2756, %v2874
          %v2876 = vpop.f32.mrb[0].mxu0
          %2877 = vmatprep.mubr.f32.mxu0 0.0
          %2878 = vmatmul.mubr.f32.gmra.mrb[0].mxu0 %v2730
          %v2879 = vpop.f32.mrb[0].mxu0
          %v2880 = vadd.f32 %v2756, %v2879
          %v2881 = vpop.f32.mrb[0].mxu0
          %2882 = vmatprep.mubr.f32.mxu0 0.0
          %2883 = vmatmul.mubr.f32.gmra.mrb[0].mxu0 %v2731
          %v2884 = vpop.f32.mrb[0].mxu0
          %v2885 = vadd.f32 %v2756, %v2884
          %v2886 = vpop.f32.mrb[0].mxu0
          %2887 = vmatprep.mubr.f32.mxu0 0.0
          %2888 = vmatmul.mubr.f32.gmra.mrb[0].mxu0 %v2732
          %v2889 = vpop.f32.mrb[0].mxu0
          %v2890 = vadd.f32 %v2756, %v2889
          %v2891 = vpop.f32.mrb[0].mxu0
          %2892 = vmatprep.mubr.f32.mxu0 0.0
          %2893 = vmatmul.mubr.f32.gmra.mrb[0].mxu0 %v2733
          %v2894 = vpop.f32.mrb[0].mxu0
          %v2895 = vadd.f32 %v2756, %v2894
          %v2896 = vpop.f32.mrb[0].mxu0
          %2897 = vmatprep.mubr.f32.mxu0 0.0
          %2898 = vmatmul.mubr.f32.gmra.mrb[0].mxu0 %v2734
          %v2899 = vpop.f32.mrb[0].mxu0
          %v2900 = vadd.f32 %v2756, %v2899
          %v2901 = vpop.f32.mrb[0].mxu0
          %2902 = vdwg.mxu0
          %v2903 = vld [vmem:[#allocation17] sm:$0xff]
          %v2904 = vld [vmem:[#allocation17 + $0x8] sm:$0xff]
          %v2905 = vld [vmem:[#allocation17 + $0x10] sm:$0xff]
          %v2906 = vld [vmem:[#allocation17 + $0x18] sm:$0xff]
          %v2907 = vld [vmem:[#allocation17 + $0x20] sm:$0xff]
          %v2908 = vld [vmem:[#allocation17 + $0x28] sm:$0xff]
          %v2909 = vld [vmem:[#allocation17 + $0x30] sm:$0xff]
          %v2910 = vld [vmem:[#allocation17 + $0x38] sm:$0xff]
          %v2911 = vld [vmem:[#allocation17 + $0x40] sm:$0xff]
          %v2912 = vld [vmem:[#allocation17 + $0x48] sm:$0xff]
          %v2913 = vld [vmem:[#allocation17 + $0x50] sm:$0xff]
          %v2914 = vld [vmem:[#allocation17 + $0x58] sm:$0xff]
          %v2915 = vld [vmem:[#allocation17 + $0x60] sm:$0xff]
          %v2916 = vld [vmem:[#allocation17 + $0x68] sm:$0xff]
          %v2917 = vld [vmem:[#allocation17 + $0x70] sm:$0xff]
          %v2918 = vld [vmem:[#allocation17 + $0x78] sm:$0xff]
          %v2919 = vld [vmem:[%s9] sm:$0x1]
          %v2921 = vlaneseq
          %v2922 = vshrl.u32 %v2921, 7
          %v2923 = vsub.s32 0, %v2922
          %v2924 = vrot.slane %v2919, %v2923
          %2926 = vmatprep.subr.mxu0 0.0
          %2927 = vmatpush1.msra.mxu0 %v2903
          %2928 = vmatprep.subr.mxu0 0.0
          %2929 = vmatpush1.msra.mxu0 %v2904
          %2930 = vmatprep.subr.mxu0 0.0
          %2931 = vmatpush1.msra.mxu0 %v2905
          %2932 = vmatprep.subr.mxu0 0.0
          %2933 = vmatpush1.msra.mxu0 %v2906
          %2934 = vmatprep.subr.mxu0 0.0
          %2935 = vmatpush1.msra.mxu0 %v2907
          %2936 = vmatprep.subr.mxu0 0.0
          %2937 = vmatpush1.msra.mxu0 %v2908
          %2938 = vmatprep.subr.mxu0 0.0
          %2939 = vmatpush1.msra.mxu0 %v2909
          %2940 = vmatprep.subr.mxu0 0.0
          %2941 = vmatpush1.msra.mxu0 %v2910
          %2942 = vmatprep.subr.mxu0 0.0
          %2943 = vmatpush1.msra.mxu0 %v2911
          %2944 = vmatprep.subr.mxu0 0.0
          %2945 = vmatpush1.msra.mxu0 %v2912
          %2946 = vmatprep.subr.mxu0 0.0
          %2947 = vmatpush1.msra.mxu0 %v2913
          %2948 = vmatprep.subr.mxu0 0.0
          %2949 = vmatpush1.msra.mxu0 %v2914
          %2950 = vmatprep.subr.mxu0 0.0
          %2951 = vmatpush1.msra.mxu0 %v2915
          %2952 = vmatprep.subr.mxu0 0.0
          %2953 = vmatpush1.msra.mxu0 %v2916
          %2954 = vmatprep.subr.mxu0 0.0
          %2955 = vmatpush1.msra.mxu0 %v2917
          %2956 = vmatprep.subr.mxu0 0.0
          %2957 = vmatpush1.msra.mxu0 %v2918
          %2958 = vmatprep.subr.mxu0 0.0
          %2959 = vmatpush1.msra.mxu0 0.0
          %2960 = vmatprep.subr.mxu0 0.0
          %2961 = vmatpush1.msra.mxu0 0.0
          %2962 = vmatprep.subr.mxu0 0.0
          %2963 = vmatpush1.msra.mxu0 0.0
          %2964 = vmatprep.subr.mxu0 0.0
          %2965 = vmatpush1.msra.mxu0 0.0
          %2966 = vmatprep.subr.mxu0 0.0
          %2967 = vmatpush1.msra.mxu0 0.0
          %2968 = vmatprep.subr.mxu0 0.0
          %2969 = vmatpush1.msra.mxu0 0.0
          %2970 = vmatprep.subr.mxu0 0.0
          %2971 = vmatpush1.msra.mxu0 0.0
          %2972 = vmatprep.subr.mxu0 0.0
          %2973 = vmatpush1.msra.mxu0 0.0
          %2974 = vmatprep.subr.mxu0 0.0
          %2975 = vmatpush1.msra.mxu0 0.0
          %2976 = vmatprep.subr.mxu0 0.0
          %2977 = vmatpush1.msra.mxu0 0.0
          %2978 = vmatprep.subr.mxu0 0.0
          %2979 = vmatpush1.msra.mxu0 0.0
          %2980 = vmatprep.subr.mxu0 0.0
          %2981 = vmatpush1.msra.mxu0 0.0
          %2982 = vmatprep.subr.mxu0 0.0
          %2983 = vmatpush1.msra.mxu0 0.0
          %2984 = vmatprep.subr.mxu0 0.0
          %2985 = vmatpush1.msra.mxu0 0.0
          %2986 = vmatprep.subr.mxu0 0.0
          %2987 = vmatpush1.msra.mxu0 0.0
          %2988 = vmatprep.subr.mxu0 0.0
          %2989 = vmatpush1.msra.mxu0 0.0
          %2990 = vmatprep.mubr.f32.mxu0 0.0
          %2991 = vmatmul.mubr.f32.gmra.mrb[0].mxu0 %v2719
          %v2992 = vpop.f32.mrb[0].mxu0
          %v2993 = vadd.f32 %v2924, %v2992
          %v2994 = vpop.f32.mrb[0].mxu0
          %2995 = vmatprep.mubr.f32.mxu0 0.0
          %2996 = vmatmul.mubr.f32.gmra.mrb[0].mxu0 %v2720
          %v2997 = vpop.f32.mrb[0].mxu0
          %v2998 = vadd.f32 %v2924, %v2997
          %v2999 = vpop.f32.mrb[0].mxu0
          %3000 = vmatprep.mubr.f32.mxu0 0.0
          %3001 = vmatmul.mubr.f32.gmra.mrb[0].mxu0 %v2721
          %v3002 = vpop.f32.mrb[0].mxu0
          %v3003 = vadd.f32 %v2924, %v3002
          %v3004 = vpop.f32.mrb[0].mxu0
          %3005 = vmatprep.mubr.f32.mxu0 0.0
          %3006 = vmatmul.mubr.f32.gmra.mrb[0].mxu0 %v2722
          %v3007 = vpop.f32.mrb[0].mxu0
          %v3008 = vadd.f32 %v2924, %v3007
          %v3009 = vpop.f32.mrb[0].mxu0
          %3010 = vmatprep.mubr.f32.mxu0 0.0
          %3011 = vmatmul.mubr.f32.gmra.mrb[0].mxu0 %v2723
          %v3012 = vpop.f32.mrb[0].mxu0
          %v3013 = vadd.f32 %v2924, %v3012
          %v3014 = vpop.f32.mrb[0].mxu0
          %3015 = vmatprep.mubr.f32.mxu0 0.0
          %3016 = vmatmul.mubr.f32.gmra.mrb[0].mxu0 %v2724
          %v3017 = vpop.f32.mrb[0].mxu0
          %v3018 = vadd.f32 %v2924, %v3017
          %v3019 = vpop.f32.mrb[0].mxu0
          %3020 = vmatprep.mubr.f32.mxu0 0.0
          %3021 = vmatmul.mubr.f32.gmra.mrb[0].mxu0 %v2725
          %v3022 = vpop.f32.mrb[0].mxu0
          %v3023 = vadd.f32 %v2924, %v3022
          %v3024 = vpop.f32.mrb[0].mxu0
          %3025 = vmatprep.mubr.f32.mxu0 0.0
          %3026 = vmatmul.mubr.f32.gmra.mrb[0].mxu0 %v2726
          %v3027 = vpop.f32.mrb[0].mxu0
          %v3028 = vadd.f32 %v2924, %v3027
          %v3029 = vpop.f32.mrb[0].mxu0
          %3030 = vmatprep.mubr.f32.mxu0 0.0
          %3031 = vmatmul.mubr.f32.gmra.mrb[0].mxu0 %v2727
          %v3032 = vpop.f32.mrb[0].mxu0
          %v3033 = vadd.f32 %v2924, %v3032
          %v3034 = vpop.f32.mrb[0].mxu0
          %3035 = vmatprep.mubr.f32.mxu0 0.0
          %3036 = vmatmul.mubr.f32.gmra.mrb[0].mxu0 %v2728
          %v3037 = vpop.f32.mrb[0].mxu0
          %v3038 = vadd.f32 %v2924, %v3037
          %v3039 = vpop.f32.mrb[0].mxu0
          %3040 = vmatprep.mubr.f32.mxu0 0.0
          %3041 = vmatmul.mubr.f32.gmra.mrb[0].mxu0 %v2729
          %v3042 = vpop.f32.mrb[0].mxu0
          %v3043 = vadd.f32 %v2924, %v3042
          %v3044 = vpop.f32.mrb[0].mxu0
          %3045 = vmatprep.mubr.f32.mxu0 0.0
          %3046 = vmatmul.mubr.f32.gmra.mrb[0].mxu0 %v2730
          %v3047 = vpop.f32.mrb[0].mxu0
          %v3048 = vadd.f32 %v2924, %v3047
          %v3049 = vpop.f32.mrb[0].mxu0
          %3050 = vmatprep.mubr.f32.mxu0 0.0
          %3051 = vmatmul.mubr.f32.gmra.mrb[0].mxu0 %v2731
          %v3052 = vpop.f32.mrb[0].mxu0
          %v3053 = vadd.f32 %v2924, %v3052
          %v3054 = vpop.f32.mrb[0].mxu0
          %3055 = vmatprep.mubr.f32.mxu0 0.0
          %3056 = vmatmul.mubr.f32.gmra.mrb[0].mxu0 %v2732
          %v3057 = vpop.f32.mrb[0].mxu0
          %v3058 = vadd.f32 %v2924, %v3057
          %v3059 = vpop.f32.mrb[0].mxu0
          %3060 = vmatprep.mubr.f32.mxu0 0.0
          %3061 = vmatmul.mubr.f32.gmra.mrb[0].mxu0 %v2733
          %v3062 = vpop.f32.mrb[0].mxu0
          %v3063 = vadd.f32 %v2924, %v3062
          %v3064 = vpop.f32.mrb[0].mxu0
          %3065 = vmatprep.mubr.f32.mxu0 0.0
          %3066 = vmatmul.mubr.f32.gmra.mrb[0].mxu0 %v2734
          %v3067 = vpop.f32.mrb[0].mxu0
          %v3068 = vadd.f32 %v2924, %v3067
          %v3069 = vpop.f32.mrb[0].mxu0
          %3070 = vdwg.mxu0
          %3087 = vrot.lane.b32.xlu0 %v2825, 64
          %v3088 = vpop.permute.xlu0 %3087
          %3089 = vrot.lane.b32.xlu0 %v2830, 64
          %v3090 = vpop.permute.xlu0 %3089
          %3091 = vrot.lane.b32.xlu0 %v2835, 64
          %v3092 = vpop.permute.xlu0 %3091
          %3093 = vrot.lane.b32.xlu0 %v2840, 64
          %v3094 = vpop.permute.xlu0 %3093
          %3095 = vrot.lane.b32.xlu0 %v2845, 64
          %v3096 = vpop.permute.xlu0 %3095
          %3097 = vrot.lane.b32.xlu0 %v2850, 64
          %v3098 = vpop.permute.xlu0 %3097
          %3099 = vrot.lane.b32.xlu0 %v2855, 64
          %v3100 = vpop.permute.xlu0 %3099
          %3101 = vrot.lane.b32.xlu0 %v2860, 64
          %v3102 = vpop.permute.xlu0 %3101
          %3103 = vrot.lane.b32.xlu0 %v2865, 64
          %v3104 = vpop.permute.xlu0 %3103
          %3105 = vrot.lane.b32.xlu0 %v2870, 64
          %v3106 = vpop.permute.xlu0 %3105
          %3107 = vrot.lane.b32.xlu0 %v2875, 64
          %v3108 = vpop.permute.xlu0 %3107
          %3109 = vrot.lane.b32.xlu0 %v2880, 64
          %v3110 = vpop.permute.xlu0 %3109
          %3111 = vrot.lane.b32.xlu0 %v2885, 64
          %v3112 = vpop.permute.xlu0 %3111
          %3113 = vrot.lane.b32.xlu0 %v2890, 64
          %v3114 = vpop.permute.xlu0 %3113
          %3115 = vrot.lane.b32.xlu0 %v2895, 64
          %v3116 = vpop.permute.xlu0 %3115
          %3117 = vrot.lane.b32.xlu0 %v2900, 64
          %v3118 = vpop.permute.xlu0 %3117
          %3151 = vrot.lane.b32.xlu0 %v2993, 64
          %v3152 = vpop.permute.xlu0 %3151
          %3153 = vrot.lane.b32.xlu0 %v2998, 64
          %v3154 = vpop.permute.xlu0 %3153
          %3155 = vrot.lane.b32.xlu0 %v3003, 64
          %v3156 = vpop.permute.xlu0 %3155
          %3157 = vrot.lane.b32.xlu0 %v3008, 64
          %v3158 = vpop.permute.xlu0 %3157
          %3159 = vrot.lane.b32.xlu0 %v3013, 64
          %v3160 = vpop.permute.xlu0 %3159
          %3161 = vrot.lane.b32.xlu0 %v3018, 64
          %v3162 = vpop.permute.xlu0 %3161
          %3163 = vrot.lane.b32.xlu0 %v3023, 64
          %v3164 = vpop.permute.xlu0 %3163
          %3165 = vrot.lane.b32.xlu0 %v3028, 64
          %v3166 = vpop.permute.xlu0 %3165
          %3167 = vrot.lane.b32.xlu0 %v3033, 64
          %v3168 = vpop.permute.xlu0 %3167
          %3169 = vrot.lane.b32.xlu0 %v3038, 64
          %v3170 = vpop.permute.xlu0 %3169
          %3171 = vrot.lane.b32.xlu0 %v3043, 64
          %v3172 = vpop.permute.xlu0 %3171
          %3173 = vrot.lane.b32.xlu0 %v3048, 64
          %v3174 = vpop.permute.xlu0 %3173
          %3175 = vrot.lane.b32.xlu0 %v3053, 64
          %v3176 = vpop.permute.xlu0 %3175
          %3177 = vrot.lane.b32.xlu0 %v3058, 64
          %v3178 = vpop.permute.xlu0 %3177
          %3179 = vrot.lane.b32.xlu0 %v3063, 64
          %v3180 = vpop.permute.xlu0 %3179
          %3181 = vrot.lane.b32.xlu0 %v3068, 64
          %v3182 = vpop.permute.xlu0 %3181
          %s3199 = smul.u32 %s447, 256
          %s3200 = scalar_lea.vmem [#allocation3], %s3199
          %vm3201 = vcmask 523264
          %3202 = vst.msk [vmem:[%s3200] sm:$0xff] %vm3201, %v2825
          %3203 = vst.msk [vmem:[%s3200 + $0x8] sm:$0xff] %vm3201, %v2830
          %3204 = vst.msk [vmem:[%s3200 + $0x10] sm:$0xff] %vm3201, %v2835
          %3205 = vst.msk [vmem:[%s3200 + $0x18] sm:$0xff] %vm3201, %v2840
          %3206 = vst.msk [vmem:[%s3200 + $0x20] sm:$0xff] %vm3201, %v2845
          %3207 = vst.msk [vmem:[%s3200 + $0x28] sm:$0xff] %vm3201, %v2850
          %3208 = vst.msk [vmem:[%s3200 + $0x30] sm:$0xff] %vm3201, %v2855
          %3209 = vst.msk [vmem:[%s3200 + $0x38] sm:$0xff] %vm3201, %v2860
          %3210 = vst.msk [vmem:[%s3200 + $0x40] sm:$0xff] %vm3201, %v2865
          %3211 = vst.msk [vmem:[%s3200 + $0x48] sm:$0xff] %vm3201, %v2870
          %3212 = vst.msk [vmem:[%s3200 + $0x50] sm:$0xff] %vm3201, %v2875
          %3213 = vst.msk [vmem:[%s3200 + $0x58] sm:$0xff] %vm3201, %v2880
          %3214 = vst.msk [vmem:[%s3200 + $0x60] sm:$0xff] %vm3201, %v2885
          %3215 = vst.msk [vmem:[%s3200 + $0x68] sm:$0xff] %vm3201, %v2890
          %3216 = vst.msk [vmem:[%s3200 + $0x70] sm:$0xff] %vm3201, %v2895
          %3217 = vst.msk [vmem:[%s3200 + $0x78] sm:$0xff] %vm3201, %v2900
          %3218 = vst.msk [vmem:[%s3200 + $0x80] sm:$0xff] %vm3201, %v3088
          %3219 = vst.msk [vmem:[%s3200 + $0x88] sm:$0xff] %vm3201, %v3090
          %3220 = vst.msk [vmem:[%s3200 + $0x90] sm:$0xff] %vm3201, %v3092
          %3221 = vst.msk [vmem:[%s3200 + $0x98] sm:$0xff] %vm3201, %v3094
          %3222 = vst.msk [vmem:[%s3200 + $0xa0] sm:$0xff] %vm3201, %v3096
          %3223 = vst.msk [vmem:[%s3200 + $0xa8] sm:$0xff] %vm3201, %v3098
          %3224 = vst.msk [vmem:[%s3200 + $0xb0] sm:$0xff] %vm3201, %v3100
          %3225 = vst.msk [vmem:[%s3200 + $0xb8] sm:$0xff] %vm3201, %v3102
          %3226 = vst.msk [vmem:[%s3200 + $0xc0] sm:$0xff] %vm3201, %v3104
          %3227 = vst.msk [vmem:[%s3200 + $0xc8] sm:$0xff] %vm3201, %v3106
          %3228 = vst.msk [vmem:[%s3200 + $0xd0] sm:$0xff] %vm3201, %v3108
          %3229 = vst.msk [vmem:[%s3200 + $0xd8] sm:$0xff] %vm3201, %v3110
          %3230 = vst.msk [vmem:[%s3200 + $0xe0] sm:$0xff] %vm3201, %v3112
          %3231 = vst.msk [vmem:[%s3200 + $0xe8] sm:$0xff] %vm3201, %v3114
          %3232 = vst.msk [vmem:[%s3200 + $0xf0] sm:$0xff] %vm3201, %v3116
          %3233 = vst.msk [vmem:[%s3200 + $0xf8] sm:$0xff] %vm3201, %v3118
          %s3234 = scalar_lea.vmem [#allocation4], %s3199
          %3235 = vst.msk [vmem:[%s3234] sm:$0xff] %vm3201, %v2993
          %3236 = vst.msk [vmem:[%s3234 + $0x8] sm:$0xff] %vm3201, %v2998
          %3237 = vst.msk [vmem:[%s3234 + $0x10] sm:$0xff] %vm3201, %v3003
          %3238 = vst.msk [vmem:[%s3234 + $0x18] sm:$0xff] %vm3201, %v3008
          %3239 = vst.msk [vmem:[%s3234 + $0x20] sm:$0xff] %vm3201, %v3013
          %3240 = vst.msk [vmem:[%s3234 + $0x28] sm:$0xff] %vm3201, %v3018
          %3241 = vst.msk [vmem:[%s3234 + $0x30] sm:$0xff] %vm3201, %v3023
          %3242 = vst.msk [vmem:[%s3234 + $0x38] sm:$0xff] %vm3201, %v3028
          %3243 = vst.msk [vmem:[%s3234 + $0x40] sm:$0xff] %vm3201, %v3033
          %3244 = vst.msk [vmem:[%s3234 + $0x48] sm:$0xff] %vm3201, %v3038
          %3245 = vst.msk [vmem:[%s3234 + $0x50] sm:$0xff] %vm3201, %v3043
          %3246 = vst.msk [vmem:[%s3234 + $0x58] sm:$0xff] %vm3201, %v3048
          %3247 = vst.msk [vmem:[%s3234 + $0x60] sm:$0xff] %vm3201, %v3053
          %3248 = vst.msk [vmem:[%s3234 + $0x68] sm:$0xff] %vm3201, %v3058
          %3249 = vst.msk [vmem:[%s3234 + $0x70] sm:$0xff] %vm3201, %v3063
          %3250 = vst.msk [vmem:[%s3234 + $0x78] sm:$0xff] %vm3201, %v3068
          %3251 = vst.msk [vmem:[%s3234 + $0x80] sm:$0xff] %vm3201, %v3152
          %3252 = vst.msk [vmem:[%s3234 + $0x88] sm:$0xff] %vm3201, %v3154
          %3253 = vst.msk [vmem:[%s3234 + $0x90] sm:$0xff] %vm3201, %v3156
          %3254 = vst.msk [vmem:[%s3234 + $0x98] sm:$0xff] %vm3201, %v3158
          %3255 = vst.msk [vmem:[%s3234 + $0xa0] sm:$0xff] %vm3201, %v3160
          %3256 = vst.msk [vmem:[%s3234 + $0xa8] sm:$0xff] %vm3201, %v3162
          %3257 = vst.msk [vmem:[%s3234 + $0xb0] sm:$0xff] %vm3201, %v3164
          %3258 = vst.msk [vmem:[%s3234 + $0xb8] sm:$0xff] %vm3201, %v3166
          %3259 = vst.msk [vmem:[%s3234 + $0xc0] sm:$0xff] %vm3201, %v3168
          %3260 = vst.msk [vmem:[%s3234 + $0xc8] sm:$0xff] %vm3201, %v3170
          %3261 = vst.msk [vmem:[%s3234 + $0xd0] sm:$0xff] %vm3201, %v3172
          %3262 = vst.msk [vmem:[%s3234 + $0xd8] sm:$0xff] %vm3201, %v3174
          %3263 = vst.msk [vmem:[%s3234 + $0xe0] sm:$0xff] %vm3201, %v3176
          %3264 = vst.msk [vmem:[%s3234 + $0xe8] sm:$0xff] %vm3201, %v3178
          %3265 = vst.msk [vmem:[%s3234 + $0xf0] sm:$0xff] %vm3201, %v3180
          %3266 = vst.msk [vmem:[%s3234 + $0xf8] sm:$0xff] %vm3201, %v3182
          %v3267 = vld [vmem:[#allocation2] sm:$0xff]
          %v3268 = vld [vmem:[#allocation2 + $0x8] sm:$0xff]
          %v3269 = vld [vmem:[#allocation2 + $0x10] sm:$0xff]
          %v3270 = vld [vmem:[#allocation2 + $0x18] sm:$0xff]
          %v3271 = vld [vmem:[#allocation2 + $0x20] sm:$0xff]
          %v3272 = vld [vmem:[#allocation2 + $0x28] sm:$0xff]
          %v3273 = vld [vmem:[#allocation2 + $0x30] sm:$0xff]
          %v3274 = vld [vmem:[#allocation2 + $0x38] sm:$0xff]
          %v3275 = vld [vmem:[#allocation2 + $0x40] sm:$0xff]
          %v3276 = vld [vmem:[#allocation2 + $0x48] sm:$0xff]
          %v3277 = vld [vmem:[#allocation2 + $0x50] sm:$0xff]
          %v3278 = vld [vmem:[#allocation2 + $0x58] sm:$0xff]
          %v3279 = vld [vmem:[#allocation2 + $0x60] sm:$0xff]
          %v3280 = vld [vmem:[#allocation2 + $0x68] sm:$0xff]
          %v3281 = vld [vmem:[#allocation2 + $0x70] sm:$0xff]
          %v3282 = vld [vmem:[#allocation2 + $0x78] sm:$0xff]
          %v3283 = vld [vmem:[#allocation2 + $0x80] sm:$0xff]
          %v3284 = vld [vmem:[#allocation2 + $0x88] sm:$0xff]
          %v3285 = vld [vmem:[#allocation2 + $0x90] sm:$0xff]
          %v3286 = vld [vmem:[#allocation2 + $0x98] sm:$0xff]
          %v3287 = vld [vmem:[#allocation2 + $0xa0] sm:$0xff]
          %v3288 = vld [vmem:[#allocation2 + $0xa8] sm:$0xff]
          %v3289 = vld [vmem:[#allocation2 + $0xb0] sm:$0xff]
          %v3290 = vld [vmem:[#allocation2 + $0xb8] sm:$0xff]
          %v3291 = vld [vmem:[#allocation2 + $0xc0] sm:$0xff]
          %v3292 = vld [vmem:[#allocation2 + $0xc8] sm:$0xff]
          %v3293 = vld [vmem:[#allocation2 + $0xd0] sm:$0xff]
          %v3294 = vld [vmem:[#allocation2 + $0xd8] sm:$0xff]
          %v3295 = vld [vmem:[#allocation2 + $0xe0] sm:$0xff]
          %v3296 = vld [vmem:[#allocation2 + $0xe8] sm:$0xff]
          %v3297 = vld [vmem:[#allocation2 + $0xf0] sm:$0xff]
          %v3298 = vld [vmem:[#allocation2 + $0xf8] sm:$0xff]
          %v3300 = vsel %vm3201, %v3267, 0
          %v3303 = vsel %vm3201, %v3268, 0
          %v3306 = vsel %vm3201, %v3269, 0
          %v3309 = vsel %vm3201, %v3270, 0
          %v3312 = vsel %vm3201, %v3271, 0
          %v3315 = vsel %vm3201, %v3272, 0
          %v3318 = vsel %vm3201, %v3273, 0
          %v3321 = vsel %vm3201, %v3274, 0
          %v3324 = vsel %vm3201, %v3275, 0
          %v3327 = vsel %vm3201, %v3276, 0
          %v3330 = vsel %vm3201, %v3277, 0
          %v3333 = vsel %vm3201, %v3278, 0
          %v3336 = vsel %vm3201, %v3279, 0
          %v3339 = vsel %vm3201, %v3280, 0
          %v3342 = vsel %vm3201, %v3281, 0
          %v3345 = vsel %vm3201, %v3282, 0
          %v3347 = vsel %vm3201, %v2825, 0
          %v3349 = vsel %vm3201, %v2830, 0
          %v3351 = vsel %vm3201, %v2835, 0
          %v3353 = vsel %vm3201, %v2840, 0
          %v3355 = vsel %vm3201, %v2845, 0
          %v3357 = vsel %vm3201, %v2850, 0
          %v3359 = vsel %vm3201, %v2855, 0
          %v3361 = vsel %vm3201, %v2860, 0
          %v3363 = vsel %vm3201, %v2865, 0
          %v3365 = vsel %vm3201, %v2870, 0
          %v3367 = vsel %vm3201, %v2875, 0
          %v3369 = vsel %vm3201, %v2880, 0
          %v3371 = vsel %vm3201, %v2885, 0
          %v3373 = vsel %vm3201, %v2890, 0
          %v3375 = vsel %vm3201, %v2895, 0
          %v3377 = vsel %vm3201, %v2900, 0
          %3379 = vmatprep.subr.mxu0 0.0
          %3380 = vmatpush1.xpose.msra.mxu0 %v3347
          %3381 = vmatprep.subr.mxu0 0.0
          %3382 = vmatpush1.xpose.msra.mxu0 %v3349
          %3383 = vmatprep.subr.mxu0 0.0
          %3384 = vmatpush1.xpose.msra.mxu0 %v3351
          %3385 = vmatprep.subr.mxu0 0.0
          %3386 = vmatpush1.xpose.msra.mxu0 %v3353
          %3387 = vmatprep.subr.mxu0 0.0
          %3388 = vmatpush1.xpose.msra.mxu0 %v3355
          %3389 = vmatprep.subr.mxu0 0.0
          %3390 = vmatpush1.xpose.msra.mxu0 %v3357
          %3391 = vmatprep.subr.mxu0 0.0
          %3392 = vmatpush1.xpose.msra.mxu0 %v3359
          %3393 = vmatprep.subr.mxu0 0.0
          %3394 = vmatpush1.xpose.msra.mxu0 %v3361
          %3395 = vmatprep.subr.mxu0 0.0
          %3396 = vmatpush1.xpose.msra.mxu0 %v3363
          %3397 = vmatprep.subr.mxu0 0.0
          %3398 = vmatpush1.xpose.msra.mxu0 %v3365
          %3399 = vmatprep.subr.mxu0 0.0
          %3400 = vmatpush1.xpose.msra.mxu0 %v3367
          %3401 = vmatprep.subr.mxu0 0.0
          %3402 = vmatpush1.xpose.msra.mxu0 %v3369
          %3403 = vmatprep.subr.mxu0 0.0
          %3404 = vmatpush1.xpose.msra.mxu0 %v3371
          %3405 = vmatprep.subr.mxu0 0.0
          %3406 = vmatpush1.xpose.msra.mxu0 %v3373
          %3407 = vmatprep.subr.mxu0 0.0
          %3408 = vmatpush1.xpose.msra.mxu0 %v3375
          %3409 = vmatprep.subr.mxu0 0.0
          %3410 = vmatpush1.xpose.msra.mxu0 %v3377
          %3411 = vmatprep.subr.mxu0 0.0
          %3412 = vmatpush1.xpose.msra.mxu0 0.0
          %3413 = vmatprep.subr.mxu0 0.0
          %3414 = vmatpush1.xpose.msra.mxu0 0.0
          %3415 = vmatprep.subr.mxu0 0.0
          %3416 = vmatpush1.xpose.msra.mxu0 0.0
          %3417 = vmatprep.subr.mxu0 0.0
          %3418 = vmatpush1.xpose.msra.mxu0 0.0
          %3419 = vmatprep.subr.mxu0 0.0
          %3420 = vmatpush1.xpose.msra.mxu0 0.0
          %3421 = vmatprep.subr.mxu0 0.0
          %3422 = vmatpush1.xpose.msra.mxu0 0.0
          %3423 = vmatprep.subr.mxu0 0.0
          %3424 = vmatpush1.xpose.msra.mxu0 0.0
          %3425 = vmatprep.subr.mxu0 0.0
          %3426 = vmatpush1.xpose.msra.mxu0 0.0
          %3427 = vmatprep.subr.mxu0 0.0
          %3428 = vmatpush1.xpose.msra.mxu0 0.0
          %3429 = vmatprep.subr.mxu0 0.0
          %3430 = vmatpush1.xpose.msra.mxu0 0.0
          %3431 = vmatprep.subr.mxu0 0.0
          %3432 = vmatpush1.xpose.msra.mxu0 0.0
          %3433 = vmatprep.subr.mxu0 0.0
          %3434 = vmatpush1.xpose.msra.mxu0 0.0
          %3435 = vmatprep.subr.mxu0 0.0
          %3436 = vmatpush1.xpose.msra.mxu0 0.0
          %3437 = vmatprep.subr.mxu0 0.0
          %3438 = vmatpush1.xpose.msra.mxu0 0.0
          %3439 = vmatprep.subr.mxu0 0.0
          %3440 = vmatpush1.xpose.msra.mxu0 0.0
          %3441 = vmatprep.subr.mxu0 0.0
          %3442 = vmatpush1.xpose.msra.mxu0 0.0
          %3443 = vmatprep.mubr.f32.mxu0 0.0
          %3444 = vmatmul.mubr.f32.gmra.mrb[0].mxu0 %v3300
          %v3445 = vpop.f32.mrb[0].mxu0
          %v3446 = vadd.f32 0.0, %v3445
          %v3447 = vpop.f32.mrb[0].mxu0
          %3448 = vmatprep.mubr.f32.mxu0 0.0
          %3449 = vmatmul.mubr.f32.gmra.mrb[0].mxu0 %v3303
          %v3450 = vpop.f32.mrb[0].mxu0
          %v3451 = vadd.f32 0.0, %v3450
          %v3452 = vpop.f32.mrb[0].mxu0
          %3453 = vmatprep.mubr.f32.mxu0 0.0
          %3454 = vmatmul.mubr.f32.gmra.mrb[0].mxu0 %v3306
          %v3455 = vpop.f32.mrb[0].mxu0
          %v3456 = vadd.f32 0.0, %v3455
          %v3457 = vpop.f32.mrb[0].mxu0
          %3458 = vmatprep.mubr.f32.mxu0 0.0
          %3459 = vmatmul.mubr.f32.gmra.mrb[0].mxu0 %v3309
          %v3460 = vpop.f32.mrb[0].mxu0
          %v3461 = vadd.f32 0.0, %v3460
          %v3462 = vpop.f32.mrb[0].mxu0
          %3463 = vmatprep.mubr.f32.mxu0 0.0
          %3464 = vmatmul.mubr.f32.gmra.mrb[0].mxu0 %v3312
          %v3465 = vpop.f32.mrb[0].mxu0
          %v3466 = vadd.f32 0.0, %v3465
          %v3467 = vpop.f32.mrb[0].mxu0
          %3468 = vmatprep.mubr.f32.mxu0 0.0
          %3469 = vmatmul.mubr.f32.gmra.mrb[0].mxu0 %v3315
          %v3470 = vpop.f32.mrb[0].mxu0
          %v3471 = vadd.f32 0.0, %v3470
          %v3472 = vpop.f32.mrb[0].mxu0
          %3473 = vmatprep.mubr.f32.mxu0 0.0
          %3474 = vmatmul.mubr.f32.gmra.mrb[0].mxu0 %v3318
          %v3475 = vpop.f32.mrb[0].mxu0
          %v3476 = vadd.f32 0.0, %v3475
          %v3477 = vpop.f32.mrb[0].mxu0
          %3478 = vmatprep.mubr.f32.mxu0 0.0
          %3479 = vmatmul.mubr.f32.gmra.mrb[0].mxu0 %v3321
          %v3480 = vpop.f32.mrb[0].mxu0
          %v3481 = vadd.f32 0.0, %v3480
          %v3482 = vpop.f32.mrb[0].mxu0
          %3483 = vmatprep.mubr.f32.mxu0 0.0
          %3484 = vmatmul.mubr.f32.gmra.mrb[0].mxu0 %v3324
          %v3485 = vpop.f32.mrb[0].mxu0
          %v3486 = vadd.f32 0.0, %v3485
          %v3487 = vpop.f32.mrb[0].mxu0
          %3488 = vmatprep.mubr.f32.mxu0 0.0
          %3489 = vmatmul.mubr.f32.gmra.mrb[0].mxu0 %v3327
          %v3490 = vpop.f32.mrb[0].mxu0
          %v3491 = vadd.f32 0.0, %v3490
          %v3492 = vpop.f32.mrb[0].mxu0
          %3493 = vmatprep.mubr.f32.mxu0 0.0
          %3494 = vmatmul.mubr.f32.gmra.mrb[0].mxu0 %v3330
          %v3495 = vpop.f32.mrb[0].mxu0
          %v3496 = vadd.f32 0.0, %v3495
          %v3497 = vpop.f32.mrb[0].mxu0
          %3498 = vmatprep.mubr.f32.mxu0 0.0
          %3499 = vmatmul.mubr.f32.gmra.mrb[0].mxu0 %v3333
          %v3500 = vpop.f32.mrb[0].mxu0
          %v3501 = vadd.f32 0.0, %v3500
          %v3502 = vpop.f32.mrb[0].mxu0
          %3503 = vmatprep.mubr.f32.mxu0 0.0
          %3504 = vmatmul.mubr.f32.gmra.mrb[0].mxu0 %v3336
          %v3505 = vpop.f32.mrb[0].mxu0
          %v3506 = vadd.f32 0.0, %v3505
          %v3507 = vpop.f32.mrb[0].mxu0
          %3508 = vmatprep.mubr.f32.mxu0 0.0
          %3509 = vmatmul.mubr.f32.gmra.mrb[0].mxu0 %v3339
          %v3510 = vpop.f32.mrb[0].mxu0
          %v3511 = vadd.f32 0.0, %v3510
          %v3512 = vpop.f32.mrb[0].mxu0
          %3513 = vmatprep.mubr.f32.mxu0 0.0
          %3514 = vmatmul.mubr.f32.gmra.mrb[0].mxu0 %v3342
          %v3515 = vpop.f32.mrb[0].mxu0
          %v3516 = vadd.f32 0.0, %v3515
          %v3517 = vpop.f32.mrb[0].mxu0
          %3518 = vmatprep.mubr.f32.mxu0 0.0
          %3519 = vmatmul.mubr.f32.gmra.mrb[0].mxu0 %v3345
          %v3520 = vpop.f32.mrb[0].mxu0
          %v3521 = vadd.f32 0.0, %v3520
          %v3522 = vpop.f32.mrb[0].mxu0
          %3523 = vdwg.mxu0
          %v3525 = vsel %vm3201, %v3283, 0
          %v3528 = vsel %vm3201, %v3284, 0
          %v3531 = vsel %vm3201, %v3285, 0
          %v3534 = vsel %vm3201, %v3286, 0
          %v3537 = vsel %vm3201, %v3287, 0
          %v3540 = vsel %vm3201, %v3288, 0
          %v3543 = vsel %vm3201, %v3289, 0
          %v3546 = vsel %vm3201, %v3290, 0
          %v3549 = vsel %vm3201, %v3291, 0
          %v3552 = vsel %vm3201, %v3292, 0
          %v3555 = vsel %vm3201, %v3293, 0
          %v3558 = vsel %vm3201, %v3294, 0
          %v3561 = vsel %vm3201, %v3295, 0
          %v3564 = vsel %vm3201, %v3296, 0
          %v3567 = vsel %vm3201, %v3297, 0
          %v3570 = vsel %vm3201, %v3298, 0
          %v3572 = vsel %vm3201, %v3088, 0
          %v3574 = vsel %vm3201, %v3090, 0
          %v3576 = vsel %vm3201, %v3092, 0
          %v3578 = vsel %vm3201, %v3094, 0
          %v3580 = vsel %vm3201, %v3096, 0
          %v3582 = vsel %vm3201, %v3098, 0
          %v3584 = vsel %vm3201, %v3100, 0
          %v3586 = vsel %vm3201, %v3102, 0
          %v3588 = vsel %vm3201, %v3104, 0
          %v3590 = vsel %vm3201, %v3106, 0
          %v3592 = vsel %vm3201, %v3108, 0
          %v3594 = vsel %vm3201, %v3110, 0
          %v3596 = vsel %vm3201, %v3112, 0
          %v3598 = vsel %vm3201, %v3114, 0
          %v3600 = vsel %vm3201, %v3116, 0
          %v3602 = vsel %vm3201, %v3118, 0
          %3604 = vmatprep.subr.mxu0 0.0
          %3605 = vmatpush1.xpose.msra.mxu0 %v3572
          %3606 = vmatprep.subr.mxu0 0.0
          %3607 = vmatpush1.xpose.msra.mxu0 %v3574
          %3608 = vmatprep.subr.mxu0 0.0
          %3609 = vmatpush1.xpose.msra.mxu0 %v3576
          %3610 = vmatprep.subr.mxu0 0.0
          %3611 = vmatpush1.xpose.msra.mxu0 %v3578
          %3612 = vmatprep.subr.mxu0 0.0
          %3613 = vmatpush1.xpose.msra.mxu0 %v3580
          %3614 = vmatprep.subr.mxu0 0.0
          %3615 = vmatpush1.xpose.msra.mxu0 %v3582
          %3616 = vmatprep.subr.mxu0 0.0
          %3617 = vmatpush1.xpose.msra.mxu0 %v3584
          %3618 = vmatprep.subr.mxu0 0.0
          %3619 = vmatpush1.xpose.msra.mxu0 %v3586
          %3620 = vmatprep.subr.mxu0 0.0
          %3621 = vmatpush1.xpose.msra.mxu0 %v3588
          %3622 = vmatprep.subr.mxu0 0.0
          %3623 = vmatpush1.xpose.msra.mxu0 %v3590
          %3624 = vmatprep.subr.mxu0 0.0
          %3625 = vmatpush1.xpose.msra.mxu0 %v3592
          %3626 = vmatprep.subr.mxu0 0.0
          %3627 = vmatpush1.xpose.msra.mxu0 %v3594
          %3628 = vmatprep.subr.mxu0 0.0
          %3629 = vmatpush1.xpose.msra.mxu0 %v3596
          %3630 = vmatprep.subr.mxu0 0.0
          %3631 = vmatpush1.xpose.msra.mxu0 %v3598
          %3632 = vmatprep.subr.mxu0 0.0
          %3633 = vmatpush1.xpose.msra.mxu0 %v3600
          %3634 = vmatprep.subr.mxu0 0.0
          %3635 = vmatpush1.xpose.msra.mxu0 %v3602
          %3636 = vmatprep.subr.mxu0 0.0
          %3637 = vmatpush1.xpose.msra.mxu0 0.0
          %3638 = vmatprep.subr.mxu0 0.0
          %3639 = vmatpush1.xpose.msra.mxu0 0.0
          %3640 = vmatprep.subr.mxu0 0.0
          %3641 = vmatpush1.xpose.msra.mxu0 0.0
          %3642 = vmatprep.subr.mxu0 0.0
          %3643 = vmatpush1.xpose.msra.mxu0 0.0
          %3644 = vmatprep.subr.mxu0 0.0
          %3645 = vmatpush1.xpose.msra.mxu0 0.0
          %3646 = vmatprep.subr.mxu0 0.0
          %3647 = vmatpush1.xpose.msra.mxu0 0.0
          %3648 = vmatprep.subr.mxu0 0.0
          %3649 = vmatpush1.xpose.msra.mxu0 0.0
          %3650 = vmatprep.subr.mxu0 0.0
          %3651 = vmatpush1.xpose.msra.mxu0 0.0
          %3652 = vmatprep.subr.mxu0 0.0
          %3653 = vmatpush1.xpose.msra.mxu0 0.0
          %3654 = vmatprep.subr.mxu0 0.0
          %3655 = vmatpush1.xpose.msra.mxu0 0.0
          %3656 = vmatprep.subr.mxu0 0.0
          %3657 = vmatpush1.xpose.msra.mxu0 0.0
          %3658 = vmatprep.subr.mxu0 0.0
          %3659 = vmatpush1.xpose.msra.mxu0 0.0
          %3660 = vmatprep.subr.mxu0 0.0
          %3661 = vmatpush1.xpose.msra.mxu0 0.0
          %3662 = vmatprep.subr.mxu0 0.0
          %3663 = vmatpush1.xpose.msra.mxu0 0.0
          %3664 = vmatprep.subr.mxu0 0.0
          %3665 = vmatpush1.xpose.msra.mxu0 0.0
          %3666 = vmatprep.subr.mxu0 0.0
          %3667 = vmatpush1.xpose.msra.mxu0 0.0
          %3668 = vmatprep.mubr.f32.mxu0 0.0
          %3669 = vmatmul.mubr.f32.gmra.mrb[0].mxu0 %v3525
          %v3670 = vpop.f32.mrb[0].mxu0
          %v3671 = vadd.f32 0.0, %v3670
          %v3672 = vpop.f32.mrb[0].mxu0
          %3673 = vmatprep.mubr.f32.mxu0 0.0
          %3674 = vmatmul.mubr.f32.gmra.mrb[0].mxu0 %v3528
          %v3675 = vpop.f32.mrb[0].mxu0
          %v3676 = vadd.f32 0.0, %v3675
          %v3677 = vpop.f32.mrb[0].mxu0
          %3678 = vmatprep.mubr.f32.mxu0 0.0
          %3679 = vmatmul.mubr.f32.gmra.mrb[0].mxu0 %v3531
          %v3680 = vpop.f32.mrb[0].mxu0
          %v3681 = vadd.f32 0.0, %v3680
          %v3682 = vpop.f32.mrb[0].mxu0
          %3683 = vmatprep.mubr.f32.mxu0 0.0
          %3684 = vmatmul.mubr.f32.gmra.mrb[0].mxu0 %v3534
          %v3685 = vpop.f32.mrb[0].mxu0
          %v3686 = vadd.f32 0.0, %v3685
          %v3687 = vpop.f32.mrb[0].mxu0
          %3688 = vmatprep.mubr.f32.mxu0 0.0
          %3689 = vmatmul.mubr.f32.gmra.mrb[0].mxu0 %v3537
          %v3690 = vpop.f32.mrb[0].mxu0
          %v3691 = vadd.f32 0.0, %v3690
          %v3692 = vpop.f32.mrb[0].mxu0
          %3693 = vmatprep.mubr.f32.mxu0 0.0
          %3694 = vmatmul.mubr.f32.gmra.mrb[0].mxu0 %v3540
          %v3695 = vpop.f32.mrb[0].mxu0
          %v3696 = vadd.f32 0.0, %v3695
          %v3697 = vpop.f32.mrb[0].mxu0
          %3698 = vmatprep.mubr.f32.mxu0 0.0
          %3699 = vmatmul.mubr.f32.gmra.mrb[0].mxu0 %v3543
          %v3700 = vpop.f32.mrb[0].mxu0
          %v3701 = vadd.f32 0.0, %v3700
          %v3702 = vpop.f32.mrb[0].mxu0
          %3703 = vmatprep.mubr.f32.mxu0 0.0
          %3704 = vmatmul.mubr.f32.gmra.mrb[0].mxu0 %v3546
          %v3705 = vpop.f32.mrb[0].mxu0
          %v3706 = vadd.f32 0.0, %v3705
          %v3707 = vpop.f32.mrb[0].mxu0
          %3708 = vmatprep.mubr.f32.mxu0 0.0
          %3709 = vmatmul.mubr.f32.gmra.mrb[0].mxu0 %v3549
          %v3710 = vpop.f32.mrb[0].mxu0
          %v3711 = vadd.f32 0.0, %v3710
          %v3712 = vpop.f32.mrb[0].mxu0
          %3713 = vmatprep.mubr.f32.mxu0 0.0
          %3714 = vmatmul.mubr.f32.gmra.mrb[0].mxu0 %v3552
          %v3715 = vpop.f32.mrb[0].mxu0
          %v3716 = vadd.f32 0.0, %v3715
          %v3717 = vpop.f32.mrb[0].mxu0
          %3718 = vmatprep.mubr.f32.mxu0 0.0
          %3719 = vmatmul.mubr.f32.gmra.mrb[0].mxu0 %v3555
          %v3720 = vpop.f32.mrb[0].mxu0
          %v3721 = vadd.f32 0.0, %v3720
          %v3722 = vpop.f32.mrb[0].mxu0
          %3723 = vmatprep.mubr.f32.mxu0 0.0
          %3724 = vmatmul.mubr.f32.gmra.mrb[0].mxu0 %v3558
          %v3725 = vpop.f32.mrb[0].mxu0
          %v3726 = vadd.f32 0.0, %v3725
          %v3727 = vpop.f32.mrb[0].mxu0
          %3728 = vmatprep.mubr.f32.mxu0 0.0
          %3729 = vmatmul.mubr.f32.gmra.mrb[0].mxu0 %v3561
          %v3730 = vpop.f32.mrb[0].mxu0
          %v3731 = vadd.f32 0.0, %v3730
          %v3732 = vpop.f32.mrb[0].mxu0
          %3733 = vmatprep.mubr.f32.mxu0 0.0
          %3734 = vmatmul.mubr.f32.gmra.mrb[0].mxu0 %v3564
          %v3735 = vpop.f32.mrb[0].mxu0
          %v3736 = vadd.f32 0.0, %v3735
          %v3737 = vpop.f32.mrb[0].mxu0
          %3738 = vmatprep.mubr.f32.mxu0 0.0
          %3739 = vmatmul.mubr.f32.gmra.mrb[0].mxu0 %v3567
          %v3740 = vpop.f32.mrb[0].mxu0
          %v3741 = vadd.f32 0.0, %v3740
          %v3742 = vpop.f32.mrb[0].mxu0
          %3743 = vmatprep.mubr.f32.mxu0 0.0
          %3744 = vmatmul.mubr.f32.gmra.mrb[0].mxu0 %v3570
          %v3745 = vpop.f32.mrb[0].mxu0
          %v3746 = vadd.f32 0.0, %v3745
          %v3747 = vpop.f32.mrb[0].mxu0
          %3748 = vdwg.mxu0
          %v3749 = vlaneseq
          %v3750 = vshrl.u32 %v3749, 7
          %v3751 = vadd.s32 %v3750, 8
          %v3752 = vadd.s32 %v3750, 16
          %v3753 = vadd.s32 %v3750, 24
          %v3754 = vadd.s32 %v3750, 32
          %v3755 = vadd.s32 %v3750, 40
          %v3756 = vadd.s32 %v3750, 48
          %v3757 = vadd.s32 %v3750, 56
          %v3758 = vadd.s32 %v3750, 64
          %v3759 = vadd.s32 %v3750, 72
          %v3760 = vadd.s32 %v3750, 80
          %v3761 = vadd.s32 %v3750, 88
          %v3762 = vadd.s32 %v3750, 96
          %v3763 = vadd.s32 %v3750, 104
          %v3764 = vadd.s32 %v3750, 112
          %v3765 = vadd.s32 %v3750, 120
          %v3766 = vlaneseq
          %v3767 = vand.u32 %v3766, 127
          %vm3768 = vcmp.le.s32.totalorder %v3767, %v3750
          %vm3769 = vcmp.le.s32.totalorder %v3767, %v3751
          %vm3770 = vcmp.le.s32.totalorder %v3767, %v3752
          %vm3771 = vcmp.le.s32.totalorder %v3767, %v3753
          %vm3772 = vcmp.le.s32.totalorder %v3767, %v3754
          %vm3773 = vcmp.le.s32.totalorder %v3767, %v3755
          %vm3774 = vcmp.le.s32.totalorder %v3767, %v3756
          %vm3775 = vcmp.le.s32.totalorder %v3767, %v3757
          %vm3776 = vcmp.le.s32.totalorder %v3767, %v3758
          %vm3777 = vcmp.le.s32.totalorder %v3767, %v3759
          %vm3778 = vcmp.le.s32.totalorder %v3767, %v3760
          %vm3779 = vcmp.le.s32.totalorder %v3767, %v3761
          %vm3780 = vcmp.le.s32.totalorder %v3767, %v3762
          %vm3781 = vcmp.le.s32.totalorder %v3767, %v3763
          %vm3782 = vcmp.le.s32.totalorder %v3767, %v3764
          %vm3783 = vcmp.le.s32.totalorder %v3767, %v3765
          %v3784 = vsel %vm3768, %v3446, -1e+30
          %v3785 = vsel %vm3769, %v3451, -1e+30
          %v3786 = vsel %vm3770, %v3456, -1e+30
          %v3787 = vsel %vm3771, %v3461, -1e+30
          %v3788 = vsel %vm3772, %v3466, -1e+30
          %v3789 = vsel %vm3773, %v3471, -1e+30
          %v3790 = vsel %vm3774, %v3476, -1e+30
          %v3791 = vsel %vm3775, %v3481, -1e+30
          %v3792 = vsel %vm3776, %v3486, -1e+30
          %v3793 = vsel %vm3777, %v3491, -1e+30
          %v3794 = vsel %vm3778, %v3496, -1e+30
          %v3795 = vsel %vm3779, %v3501, -1e+30
          %v3796 = vsel %vm3780, %v3506, -1e+30
          %v3797 = vsel %vm3781, %v3511, -1e+30
          %v3798 = vsel %vm3782, %v3516, -1e+30
          %v3799 = vsel %vm3783, %v3521, -1e+30
          %v3800 = vsel %vm3768, %v3671, -1e+30
          %v3801 = vsel %vm3769, %v3676, -1e+30
          %v3802 = vsel %vm3770, %v3681, -1e+30
          %v3803 = vsel %vm3771, %v3686, -1e+30
          %v3804 = vsel %vm3772, %v3691, -1e+30
          %v3805 = vsel %vm3773, %v3696, -1e+30
          %v3806 = vsel %vm3774, %v3701, -1e+30
          %v3807 = vsel %vm3775, %v3706, -1e+30
          %v3808 = vsel %vm3776, %v3711, -1e+30
          %v3809 = vsel %vm3777, %v3716, -1e+30
          %v3810 = vsel %vm3778, %v3721, -1e+30
          %v3811 = vsel %vm3779, %v3726, -1e+30
          %v3812 = vsel %vm3780, %v3731, -1e+30
          %v3813 = vsel %vm3781, %v3736, -1e+30
          %v3814 = vsel %vm3782, %v3741, -1e+30
          %v3815 = vsel %vm3783, %v3746, -1e+30
          %v3816 = vld [vmem:[#allocation6] sm:$0xff]
          %v3817 = vld [vmem:[#allocation6 + $0x8] sm:$0xff]
          %v3818 = vld [vmem:[#allocation6 + $0x10] sm:$0xff]
          %v3819 = vld [vmem:[#allocation6 + $0x18] sm:$0xff]
          %v3820 = vld [vmem:[#allocation6 + $0x20] sm:$0xff]
          %v3821 = vld [vmem:[#allocation6 + $0x28] sm:$0xff]
          %v3822 = vld [vmem:[#allocation6 + $0x30] sm:$0xff]
          %v3823 = vld [vmem:[#allocation6 + $0x38] sm:$0xff]
          %v3824 = vld [vmem:[#allocation6 + $0x40] sm:$0xff]
          %v3825 = vld [vmem:[#allocation6 + $0x48] sm:$0xff]
          %v3826 = vld [vmem:[#allocation6 + $0x50] sm:$0xff]
          %v3827 = vld [vmem:[#allocation6 + $0x58] sm:$0xff]
          %v3828 = vld [vmem:[#allocation6 + $0x60] sm:$0xff]
          %v3829 = vld [vmem:[#allocation6 + $0x68] sm:$0xff]
          %v3830 = vld [vmem:[#allocation6 + $0x70] sm:$0xff]
          %v3831 = vld [vmem:[#allocation6 + $0x78] sm:$0xff]
          %v3832 = vld [vmem:[#allocation6 + $0x80] sm:$0xff]
          %v3833 = vld [vmem:[#allocation6 + $0x88] sm:$0xff]
          %v3834 = vld [vmem:[#allocation6 + $0x90] sm:$0xff]
          %v3835 = vld [vmem:[#allocation6 + $0x98] sm:$0xff]
          %v3836 = vld [vmem:[#allocation6 + $0xa0] sm:$0xff]
          %v3837 = vld [vmem:[#allocation6 + $0xa8] sm:$0xff]
          %v3838 = vld [vmem:[#allocation6 + $0xb0] sm:$0xff]
          %v3839 = vld [vmem:[#allocation6 + $0xb8] sm:$0xff]
          %v3840 = vld [vmem:[#allocation6 + $0xc0] sm:$0xff]
          %v3841 = vld [vmem:[#allocation6 + $0xc8] sm:$0xff]
          %v3842 = vld [vmem:[#allocation6 + $0xd0] sm:$0xff]
          %v3843 = vld [vmem:[#allocation6 + $0xd8] sm:$0xff]
          %v3844 = vld [vmem:[#allocation6 + $0xe0] sm:$0xff]
          %v3845 = vld [vmem:[#allocation6 + $0xe8] sm:$0xff]
          %v3846 = vld [vmem:[#allocation6 + $0xf0] sm:$0xff]
          %v3847 = vld [vmem:[#allocation6 + $0xf8] sm:$0xff]
          %3848 = vmax.xlane.f32.xlu0 %v3784
          %v3849 = vpop.xlane.xlu0 %3848
          %3850 = vmax.xlane.f32.xlu0 %v3785
          %v3851 = vpop.xlane.xlu0 %3850
          %3852 = vmax.xlane.f32.xlu0 %v3786
          %v3853 = vpop.xlane.xlu0 %3852
          %3854 = vmax.xlane.f32.xlu0 %v3787
          %v3855 = vpop.xlane.xlu0 %3854
          %3856 = vmax.xlane.f32.xlu0 %v3788
          %v3857 = vpop.xlane.xlu0 %3856
          %3858 = vmax.xlane.f32.xlu0 %v3789
          %v3859 = vpop.xlane.xlu0 %3858
          %3860 = vmax.xlane.f32.xlu0 %v3790
          %v3861 = vpop.xlane.xlu0 %3860
          %3862 = vmax.xlane.f32.xlu0 %v3791
          %v3863 = vpop.xlane.xlu0 %3862
          %3864 = vmax.xlane.f32.xlu0 %v3792
          %v3865 = vpop.xlane.xlu0 %3864
          %3866 = vmax.xlane.f32.xlu0 %v3793
          %v3867 = vpop.xlane.xlu0 %3866
          %3868 = vmax.xlane.f32.xlu0 %v3794
          %v3869 = vpop.xlane.xlu0 %3868
          %3870 = vmax.xlane.f32.xlu0 %v3795
          %v3871 = vpop.xlane.xlu0 %3870
          %3872 = vmax.xlane.f32.xlu0 %v3796
          %v3873 = vpop.xlane.xlu0 %3872
          %3874 = vmax.xlane.f32.xlu0 %v3797
          %v3875 = vpop.xlane.xlu0 %3874
          %3876 = vmax.xlane.f32.xlu0 %v3798
          %v3877 = vpop.xlane.xlu0 %3876
          %3878 = vmax.xlane.f32.xlu0 %v3799
          %v3879 = vpop.xlane.xlu0 %3878
          %3880 = vmax.xlane.f32.xlu0 %v3800
          %v3881 = vpop.xlane.xlu0 %3880
          %3882 = vmax.xlane.f32.xlu0 %v3801
          %v3883 = vpop.xlane.xlu0 %3882
          %3884 = vmax.xlane.f32.xlu0 %v3802
          %v3885 = vpop.xlane.xlu0 %3884
          %3886 = vmax.xlane.f32.xlu0 %v3803
          %v3887 = vpop.xlane.xlu0 %3886
          %3888 = vmax.xlane.f32.xlu0 %v3804
          %v3889 = vpop.xlane.xlu0 %3888
          %3890 = vmax.xlane.f32.xlu0 %v3805
          %v3891 = vpop.xlane.xlu0 %3890
          %3892 = vmax.xlane.f32.xlu0 %v3806
          %v3893 = vpop.xlane.xlu0 %3892
          %3894 = vmax.xlane.f32.xlu0 %v3807
          %v3895 = vpop.xlane.xlu0 %3894
          %3896 = vmax.xlane.f32.xlu0 %v3808
          %v3897 = vpop.xlane.xlu0 %3896
          %3898 = vmax.xlane.f32.xlu0 %v3809
          %v3899 = vpop.xlane.xlu0 %3898
          %3900 = vmax.xlane.f32.xlu0 %v3810
          %v3901 = vpop.xlane.xlu0 %3900
          %3902 = vmax.xlane.f32.xlu0 %v3811
          %v3903 = vpop.xlane.xlu0 %3902
          %3904 = vmax.xlane.f32.xlu0 %v3812
          %v3905 = vpop.xlane.xlu0 %3904
          %3906 = vmax.xlane.f32.xlu0 %v3813
          %v3907 = vpop.xlane.xlu0 %3906
          %3908 = vmax.xlane.f32.xlu0 %v3814
          %v3909 = vpop.xlane.xlu0 %3908
          %3910 = vmax.xlane.f32.xlu0 %v3815
          %v3911 = vpop.xlane.xlu0 %3910
          %v3912 = vmax.f32 %v3816, %v3849
          %v3913 = vmax.f32 %v3817, %v3851
          %v3914 = vmax.f32 %v3818, %v3853
          %v3915 = vmax.f32 %v3819, %v3855
          %v3916 = vmax.f32 %v3820, %v3857
          %v3917 = vmax.f32 %v3821, %v3859
          %v3918 = vmax.f32 %v3822, %v3861
          %v3919 = vmax.f32 %v3823, %v3863
          %v3920 = vmax.f32 %v3824, %v3865
          %v3921 = vmax.f32 %v3825, %v3867
          %v3922 = vmax.f32 %v3826, %v3869
          %v3923 = vmax.f32 %v3827, %v3871
          %v3924 = vmax.f32 %v3828, %v3873
          %v3925 = vmax.f32 %v3829, %v3875
          %v3926 = vmax.f32 %v3830, %v3877
          %v3927 = vmax.f32 %v3831, %v3879
          %v3928 = vmax.f32 %v3832, %v3881
          %v3929 = vmax.f32 %v3833, %v3883
          %v3930 = vmax.f32 %v3834, %v3885
          %v3931 = vmax.f32 %v3835, %v3887
          %v3932 = vmax.f32 %v3836, %v3889
          %v3933 = vmax.f32 %v3837, %v3891
          %v3934 = vmax.f32 %v3838, %v3893
          %v3935 = vmax.f32 %v3839, %v3895
          %v3936 = vmax.f32 %v3840, %v3897
          %v3937 = vmax.f32 %v3841, %v3899
          %v3938 = vmax.f32 %v3842, %v3901
          %v3939 = vmax.f32 %v3843, %v3903
          %v3940 = vmax.f32 %v3844, %v3905
          %v3941 = vmax.f32 %v3845, %v3907
          %v3942 = vmax.f32 %v3846, %v3909
          %v3943 = vmax.f32 %v3847, %v3911
          %v3944 = vsub.f32 %v3816, %v3912
          %v3945 = vsub.f32 %v3817, %v3913
          %v3946 = vsub.f32 %v3818, %v3914
          %v3947 = vsub.f32 %v3819, %v3915
          %v3948 = vsub.f32 %v3820, %v3916
          %v3949 = vsub.f32 %v3821, %v3917
          %v3950 = vsub.f32 %v3822, %v3918
          %v3951 = vsub.f32 %v3823, %v3919
          %v3952 = vsub.f32 %v3824, %v3920
          %v3953 = vsub.f32 %v3825, %v3921
          %v3954 = vsub.f32 %v3826, %v3922
          %v3955 = vsub.f32 %v3827, %v3923
          %v3956 = vsub.f32 %v3828, %v3924
          %v3957 = vsub.f32 %v3829, %v3925
          %v3958 = vsub.f32 %v3830, %v3926
          %v3959 = vsub.f32 %v3831, %v3927
          %v3960 = vsub.f32 %v3832, %v3928
          %v3961 = vsub.f32 %v3833, %v3929
          %v3962 = vsub.f32 %v3834, %v3930
          %v3963 = vsub.f32 %v3835, %v3931
          %v3964 = vsub.f32 %v3836, %v3932
          %v3965 = vsub.f32 %v3837, %v3933
          %v3966 = vsub.f32 %v3838, %v3934
          %v3967 = vsub.f32 %v3839, %v3935
          %v3968 = vsub.f32 %v3840, %v3936
          %v3969 = vsub.f32 %v3841, %v3937
          %v3970 = vsub.f32 %v3842, %v3938
          %v3971 = vsub.f32 %v3843, %v3939
          %v3972 = vsub.f32 %v3844, %v3940
          %v3973 = vsub.f32 %v3845, %v3941
          %v3974 = vsub.f32 %v3846, %v3942
          %v3975 = vsub.f32 %v3847, %v3943
          %v3976 = vmul.f32 %v3944, 1.442695
          %v3977 = vpow.pop %v3976
          %v3978 = vmul.f32 %v3945, 1.442695
          %v3979 = vpow.pop %v3978
          %v3980 = vmul.f32 %v3946, 1.442695
          %v3981 = vpow.pop %v3980
          %v3982 = vmul.f32 %v3947, 1.442695
          %v3983 = vpow.pop %v3982
          %v3984 = vmul.f32 %v3948, 1.442695
          %v3985 = vpow.pop %v3984
          %v3986 = vmul.f32 %v3949, 1.442695
          %v3987 = vpow.pop %v3986
          %v3988 = vmul.f32 %v3950, 1.442695
          %v3989 = vpow.pop %v3988
          %v3990 = vmul.f32 %v3951, 1.442695
          %v3991 = vpow.pop %v3990
          %v3992 = vmul.f32 %v3952, 1.442695
          %v3993 = vpow.pop %v3992
          %v3994 = vmul.f32 %v3953, 1.442695
          %v3995 = vpow.pop %v3994
          %v3996 = vmul.f32 %v3954, 1.442695
          %v3997 = vpow.pop %v3996
          %v3998 = vmul.f32 %v3955, 1.442695
          %v3999 = vpow.pop %v3998
          %v4000 = vmul.f32 %v3956, 1.442695
          %v4001 = vpow.pop %v4000
          %v4002 = vmul.f32 %v3957, 1.442695
          %v4003 = vpow.pop %v4002
          %v4004 = vmul.f32 %v3958, 1.442695
          %v4005 = vpow.pop %v4004
          %v4006 = vmul.f32 %v3959, 1.442695
          %v4007 = vpow.pop %v4006
          %v4008 = vmul.f32 %v3960, 1.442695
          %v4009 = vpow.pop %v4008
          %v4010 = vmul.f32 %v3961, 1.442695
          %v4011 = vpow.pop %v4010
          %v4012 = vmul.f32 %v3962, 1.442695
          %v4013 = vpow.pop %v4012
          %v4014 = vmul.f32 %v3963, 1.442695
          %v4015 = vpow.pop %v4014
          %v4016 = vmul.f32 %v3964, 1.442695
          %v4017 = vpow.pop %v4016
          %v4018 = vmul.f32 %v3965, 1.442695
          %v4019 = vpow.pop %v4018
          %v4020 = vmul.f32 %v3966, 1.442695
          %v4021 = vpow.pop %v4020
          %v4022 = vmul.f32 %v3967, 1.442695
          %v4023 = vpow.pop %v4022
          %v4024 = vmul.f32 %v3968, 1.442695
          %v4025 = vpow.pop %v4024
          %v4026 = vmul.f32 %v3969, 1.442695
          %v4027 = vpow.pop %v4026
          %v4028 = vmul.f32 %v3970, 1.442695
          %v4029 = vpow.pop %v4028
          %v4030 = vmul.f32 %v3971, 1.442695
          %v4031 = vpow.pop %v4030
          %v4032 = vmul.f32 %v3972, 1.442695
          %v4033 = vpow.pop %v4032
          %v4034 = vmul.f32 %v3973, 1.442695
          %v4035 = vpow.pop %v4034
          %v4036 = vmul.f32 %v3974, 1.442695
          %v4037 = vpow.pop %v4036
          %v4038 = vmul.f32 %v3975, 1.442695
          %v4039 = vpow.pop %v4038
          %4041 = vset.pattern.permute.xlu0 0
          %4042 = vperm.xlu0 %4041, %v3912
          %v4043 = vpop.permute.xlu0 %4042
          %4046 = vset.pattern.permute.xlu0 0
          %4047 = vperm.xlu0 %4046, %v3913
          %v4048 = vpop.permute.xlu0 %4047
          %4051 = vset.pattern.permute.xlu0 0
          %4052 = vperm.xlu0 %4051, %v3914
          %v4053 = vpop.permute.xlu0 %4052
          %4056 = vset.pattern.permute.xlu0 0
          %4057 = vperm.xlu0 %4056, %v3915
          %v4058 = vpop.permute.xlu0 %4057
          %4061 = vset.pattern.permute.xlu0 0
          %4062 = vperm.xlu0 %4061, %v3916
          %v4063 = vpop.permute.xlu0 %4062
          %4066 = vset.pattern.permute.xlu0 0
          %4067 = vperm.xlu0 %4066, %v3917
          %v4068 = vpop.permute.xlu0 %4067
          %4071 = vset.pattern.permute.xlu0 0
          %4072 = vperm.xlu0 %4071, %v3918
          %v4073 = vpop.permute.xlu0 %4072
          %4076 = vset.pattern.permute.xlu0 0
          %4077 = vperm.xlu0 %4076, %v3919
          %v4078 = vpop.permute.xlu0 %4077
          %4081 = vset.pattern.permute.xlu0 0
          %4082 = vperm.xlu0 %4081, %v3920
          %v4083 = vpop.permute.xlu0 %4082
          %4086 = vset.pattern.permute.xlu0 0
          %4087 = vperm.xlu0 %4086, %v3921
          %v4088 = vpop.permute.xlu0 %4087
          %4091 = vset.pattern.permute.xlu0 0
          %4092 = vperm.xlu0 %4091, %v3922
          %v4093 = vpop.permute.xlu0 %4092
          %4096 = vset.pattern.permute.xlu0 0
          %4097 = vperm.xlu0 %4096, %v3923
          %v4098 = vpop.permute.xlu0 %4097
          %4101 = vset.pattern.permute.xlu0 0
          %4102 = vperm.xlu0 %4101, %v3924
          %v4103 = vpop.permute.xlu0 %4102
          %4106 = vset.pattern.permute.xlu0 0
          %4107 = vperm.xlu0 %4106, %v3925
          %v4108 = vpop.permute.xlu0 %4107
          %4111 = vset.pattern.permute.xlu0 0
          %4112 = vperm.xlu0 %4111, %v3926
          %v4113 = vpop.permute.xlu0 %4112
          %4116 = vset.pattern.permute.xlu0 0
          %4117 = vperm.xlu0 %4116, %v3927
          %v4118 = vpop.permute.xlu0 %4117
          %4121 = vset.pattern.permute.xlu0 0
          %4122 = vperm.xlu0 %4121, %v3928
          %v4123 = vpop.permute.xlu0 %4122
          %4126 = vset.pattern.permute.xlu0 0
          %4127 = vperm.xlu0 %4126, %v3929
          %v4128 = vpop.permute.xlu0 %4127
          %4131 = vset.pattern.permute.xlu0 0
          %4132 = vperm.xlu0 %4131, %v3930
          %v4133 = vpop.permute.xlu0 %4132
          %4136 = vset.pattern.permute.xlu0 0
          %4137 = vperm.xlu0 %4136, %v3931
          %v4138 = vpop.permute.xlu0 %4137
          %4141 = vset.pattern.permute.xlu0 0
          %4142 = vperm.xlu0 %4141, %v3932
          %v4143 = vpop.permute.xlu0 %4142
          %4146 = vset.pattern.permute.xlu0 0
          %4147 = vperm.xlu0 %4146, %v3933
          %v4148 = vpop.permute.xlu0 %4147
          %4151 = vset.pattern.permute.xlu0 0
          %4152 = vperm.xlu0 %4151, %v3934
          %v4153 = vpop.permute.xlu0 %4152
          %4156 = vset.pattern.permute.xlu0 0
          %4157 = vperm.xlu0 %4156, %v3935
          %v4158 = vpop.permute.xlu0 %4157
          %4161 = vset.pattern.permute.xlu0 0
          %4162 = vperm.xlu0 %4161, %v3936
          %v4163 = vpop.permute.xlu0 %4162
          %4166 = vset.pattern.permute.xlu0 0
          %4167 = vperm.xlu0 %4166, %v3937
          %v4168 = vpop.permute.xlu0 %4167
          %4171 = vset.pattern.permute.xlu0 0
          %4172 = vperm.xlu0 %4171, %v3938
          %v4173 = vpop.permute.xlu0 %4172
          %4176 = vset.pattern.permute.xlu0 0
          %4177 = vperm.xlu0 %4176, %v3939
          %v4178 = vpop.permute.xlu0 %4177
          %4181 = vset.pattern.permute.xlu0 0
          %4182 = vperm.xlu0 %4181, %v3940
          %v4183 = vpop.permute.xlu0 %4182
          %4186 = vset.pattern.permute.xlu0 0
          %4187 = vperm.xlu0 %4186, %v3941
          %v4188 = vpop.permute.xlu0 %4187
          %4191 = vset.pattern.permute.xlu0 0
          %4192 = vperm.xlu0 %4191, %v3942
          %v4193 = vpop.permute.xlu0 %4192
          %4196 = vset.pattern.permute.xlu0 0
          %4197 = vperm.xlu0 %4196, %v3943
          %v4198 = vpop.permute.xlu0 %4197
          %v4200 = vsub.f32 %v3784, %v4043
          %v4201 = vsub.f32 %v3785, %v4048
          %v4202 = vsub.f32 %v3786, %v4053
          %v4203 = vsub.f32 %v3787, %v4058
          %v4204 = vsub.f32 %v3788, %v4063
          %v4205 = vsub.f32 %v3789, %v4068
          %v4206 = vsub.f32 %v3790, %v4073
          %v4207 = vsub.f32 %v3791, %v4078
          %v4208 = vsub.f32 %v3792, %v4083
          %v4209 = vsub.f32 %v3793, %v4088
          %v4210 = vsub.f32 %v3794, %v4093
          %v4211 = vsub.f32 %v3795, %v4098
          %v4212 = vsub.f32 %v3796, %v4103
          %v4213 = vsub.f32 %v3797, %v4108
          %v4214 = vsub.f32 %v3798, %v4113
          %v4215 = vsub.f32 %v3799, %v4118
          %v4216 = vsub.f32 %v3800, %v4123
          %v4217 = vsub.f32 %v3801, %v4128
          %v4218 = vsub.f32 %v3802, %v4133
          %v4219 = vsub.f32 %v3803, %v4138
          %v4220 = vsub.f32 %v3804, %v4143
          %v4221 = vsub.f32 %v3805, %v4148
          %v4222 = vsub.f32 %v3806, %v4153
          %v4223 = vsub.f32 %v3807, %v4158
          %v4224 = vsub.f32 %v3808, %v4163
          %v4225 = vsub.f32 %v3809, %v4168
          %v4226 = vsub.f32 %v3810, %v4173
          %v4227 = vsub.f32 %v3811, %v4178
          %v4228 = vsub.f32 %v3812, %v4183
          %v4229 = vsub.f32 %v3813, %v4188
          %v4230 = vsub.f32 %v3814, %v4193
          %v4231 = vsub.f32 %v3815, %v4198
          %v4232 = vmul.f32 %v4200, 1.442695
          %v4233 = vpow.pop %v4232
          %v4234 = vmul.f32 %v4201, 1.442695
          %v4235 = vpow.pop %v4234
          %v4236 = vmul.f32 %v4202, 1.442695
          %v4237 = vpow.pop %v4236
          %v4238 = vmul.f32 %v4203, 1.442695
          %v4239 = vpow.pop %v4238
          %v4240 = vmul.f32 %v4204, 1.442695
          %v4241 = vpow.pop %v4240
          %v4242 = vmul.f32 %v4205, 1.442695
          %v4243 = vpow.pop %v4242
          %v4244 = vmul.f32 %v4206, 1.442695
          %v4245 = vpow.pop %v4244
          %v4246 = vmul.f32 %v4207, 1.442695
          %v4247 = vpow.pop %v4246
          %v4248 = vmul.f32 %v4208, 1.442695
          %v4249 = vpow.pop %v4248
          %v4250 = vmul.f32 %v4209, 1.442695
          %v4251 = vpow.pop %v4250
          %v4252 = vmul.f32 %v4210, 1.442695
          %v4253 = vpow.pop %v4252
          %v4254 = vmul.f32 %v4211, 1.442695
          %v4255 = vpow.pop %v4254
          %v4256 = vmul.f32 %v4212, 1.442695
          %v4257 = vpow.pop %v4256
          %v4258 = vmul.f32 %v4213, 1.442695
          %v4259 = vpow.pop %v4258
          %v4260 = vmul.f32 %v4214, 1.442695
          %v4261 = vpow.pop %v4260
          %v4262 = vmul.f32 %v4215, 1.442695
          %v4263 = vpow.pop %v4262
          %v4264 = vmul.f32 %v4216, 1.442695
          %v4265 = vpow.pop %v4264
          %v4266 = vmul.f32 %v4217, 1.442695
          %v4267 = vpow.pop %v4266
          %v4268 = vmul.f32 %v4218, 1.442695
          %v4269 = vpow.pop %v4268
          %v4270 = vmul.f32 %v4219, 1.442695
          %v4271 = vpow.pop %v4270
          %v4272 = vmul.f32 %v4220, 1.442695
          %v4273 = vpow.pop %v4272
          %v4274 = vmul.f32 %v4221, 1.442695
          %v4275 = vpow.pop %v4274
          %v4276 = vmul.f32 %v4222, 1.442695
          %v4277 = vpow.pop %v4276
          %v4278 = vmul.f32 %v4223, 1.442695
          %v4279 = vpow.pop %v4278
          %v4280 = vmul.f32 %v4224, 1.442695
          %v4281 = vpow.pop %v4280
          %v4282 = vmul.f32 %v4225, 1.442695
          %v4283 = vpow.pop %v4282
          %v4284 = vmul.f32 %v4226, 1.442695
          %v4285 = vpow.pop %v4284
          %v4286 = vmul.f32 %v4227, 1.442695
          %v4287 = vpow.pop %v4286
          %v4288 = vmul.f32 %v4228, 1.442695
          %v4289 = vpow.pop %v4288
          %v4290 = vmul.f32 %v4229, 1.442695
          %v4291 = vpow.pop %v4290
          %v4292 = vmul.f32 %v4230, 1.442695
          %v4293 = vpow.pop %v4292
          %v4294 = vmul.f32 %v4231, 1.442695
          %v4295 = vpow.pop %v4294
          %v4296 = vld [vmem:[#allocation7] sm:$0xff]
          %v4297 = vld [vmem:[#allocation7 + $0x8] sm:$0xff]
          %v4298 = vld [vmem:[#allocation7 + $0x10] sm:$0xff]
          %v4299 = vld [vmem:[#allocation7 + $0x18] sm:$0xff]
          %v4300 = vld [vmem:[#allocation7 + $0x20] sm:$0xff]
          %v4301 = vld [vmem:[#allocation7 + $0x28] sm:$0xff]
          %v4302 = vld [vmem:[#allocation7 + $0x30] sm:$0xff]
          %v4303 = vld [vmem:[#allocation7 + $0x38] sm:$0xff]
          %v4304 = vld [vmem:[#allocation7 + $0x40] sm:$0xff]
          %v4305 = vld [vmem:[#allocation7 + $0x48] sm:$0xff]
          %v4306 = vld [vmem:[#allocation7 + $0x50] sm:$0xff]
          %v4307 = vld [vmem:[#allocation7 + $0x58] sm:$0xff]
          %v4308 = vld [vmem:[#allocation7 + $0x60] sm:$0xff]
          %v4309 = vld [vmem:[#allocation7 + $0x68] sm:$0xff]
          %v4310 = vld [vmem:[#allocation7 + $0x70] sm:$0xff]
          %v4311 = vld [vmem:[#allocation7 + $0x78] sm:$0xff]
          %v4312 = vld [vmem:[#allocation7 + $0x80] sm:$0xff]
          %v4313 = vld [vmem:[#allocation7 + $0x88] sm:$0xff]
          %v4314 = vld [vmem:[#allocation7 + $0x90] sm:$0xff]
          %v4315 = vld [vmem:[#allocation7 + $0x98] sm:$0xff]
          %v4316 = vld [vmem:[#allocation7 + $0xa0] sm:$0xff]
          %v4317 = vld [vmem:[#allocation7 + $0xa8] sm:$0xff]
          %v4318 = vld [vmem:[#allocation7 + $0xb0] sm:$0xff]
          %v4319 = vld [vmem:[#allocation7 + $0xb8] sm:$0xff]
          %v4320 = vld [vmem:[#allocation7 + $0xc0] sm:$0xff]
          %v4321 = vld [vmem:[#allocation7 + $0xc8] sm:$0xff]
          %v4322 = vld [vmem:[#allocation7 + $0xd0] sm:$0xff]
          %v4323 = vld [vmem:[#allocation7 + $0xd8] sm:$0xff]
          %v4324 = vld [vmem:[#allocation7 + $0xe0] sm:$0xff]
          %v4325 = vld [vmem:[#allocation7 + $0xe8] sm:$0xff]
          %v4326 = vld [vmem:[#allocation7 + $0xf0] sm:$0xff]
          %v4327 = vld [vmem:[#allocation7 + $0xf8] sm:$0xff]
          %v4328 = vmul.f32 %v3977, %v4296
          %v4329 = vmul.f32 %v3979, %v4297
          %v4330 = vmul.f32 %v3981, %v4298
          %v4331 = vmul.f32 %v3983, %v4299
          %v4332 = vmul.f32 %v3985, %v4300
          %v4333 = vmul.f32 %v3987, %v4301
          %v4334 = vmul.f32 %v3989, %v4302
          %v4335 = vmul.f32 %v3991, %v4303
          %v4336 = vmul.f32 %v3993, %v4304
          %v4337 = vmul.f32 %v3995, %v4305
          %v4338 = vmul.f32 %v3997, %v4306
          %v4339 = vmul.f32 %v3999, %v4307
          %v4340 = vmul.f32 %v4001, %v4308
          %v4341 = vmul.f32 %v4003, %v4309
          %v4342 = vmul.f32 %v4005, %v4310
          %v4343 = vmul.f32 %v4007, %v4311
          %v4344 = vmul.f32 %v4009, %v4312
          %v4345 = vmul.f32 %v4011, %v4313
          %v4346 = vmul.f32 %v4013, %v4314
          %v4347 = vmul.f32 %v4015, %v4315
          %v4348 = vmul.f32 %v4017, %v4316
          %v4349 = vmul.f32 %v4019, %v4317
          %v4350 = vmul.f32 %v4021, %v4318
          %v4351 = vmul.f32 %v4023, %v4319
          %v4352 = vmul.f32 %v4025, %v4320
          %v4353 = vmul.f32 %v4027, %v4321
          %v4354 = vmul.f32 %v4029, %v4322
          %v4355 = vmul.f32 %v4031, %v4323
          %v4356 = vmul.f32 %v4033, %v4324
          %v4357 = vmul.f32 %v4035, %v4325
          %v4358 = vmul.f32 %v4037, %v4326
          %v4359 = vmul.f32 %v4039, %v4327
          %4360 = vadd.xlane.f32.xlu0 %v4233
          %v4361 = vpop.xlane.xlu0 %4360
          %4362 = vadd.xlane.f32.xlu0 %v4235
          %v4363 = vpop.xlane.xlu0 %4362
          %4364 = vadd.xlane.f32.xlu0 %v4237
          %v4365 = vpop.xlane.xlu0 %4364
          %4366 = vadd.xlane.f32.xlu0 %v4239
          %v4367 = vpop.xlane.xlu0 %4366
          %4368 = vadd.xlane.f32.xlu0 %v4241
          %v4369 = vpop.xlane.xlu0 %4368
          %4370 = vadd.xlane.f32.xlu0 %v4243
          %v4371 = vpop.xlane.xlu0 %4370
          %4372 = vadd.xlane.f32.xlu0 %v4245
          %v4373 = vpop.xlane.xlu0 %4372
          %4374 = vadd.xlane.f32.xlu0 %v4247
          %v4375 = vpop.xlane.xlu0 %4374
          %4376 = vadd.xlane.f32.xlu0 %v4249
          %v4377 = vpop.xlane.xlu0 %4376
          %4378 = vadd.xlane.f32.xlu0 %v4251
          %v4379 = vpop.xlane.xlu0 %4378
          %4380 = vadd.xlane.f32.xlu0 %v4253
          %v4381 = vpop.xlane.xlu0 %4380
          %4382 = vadd.xlane.f32.xlu0 %v4255
          %v4383 = vpop.xlane.xlu0 %4382
          %4384 = vadd.xlane.f32.xlu0 %v4257
          %v4385 = vpop.xlane.xlu0 %4384
          %4386 = vadd.xlane.f32.xlu0 %v4259
          %v4387 = vpop.xlane.xlu0 %4386
          %4388 = vadd.xlane.f32.xlu0 %v4261
          %v4389 = vpop.xlane.xlu0 %4388
          %4390 = vadd.xlane.f32.xlu0 %v4263
          %v4391 = vpop.xlane.xlu0 %4390
          %4392 = vadd.xlane.f32.xlu0 %v4265
          %v4393 = vpop.xlane.xlu0 %4392
          %4394 = vadd.xlane.f32.xlu0 %v4267
          %v4395 = vpop.xlane.xlu0 %4394
          %4396 = vadd.xlane.f32.xlu0 %v4269
          %v4397 = vpop.xlane.xlu0 %4396
          %4398 = vadd.xlane.f32.xlu0 %v4271
          %v4399 = vpop.xlane.xlu0 %4398
          %4400 = vadd.xlane.f32.xlu0 %v4273
          %v4401 = vpop.xlane.xlu0 %4400
          %4402 = vadd.xlane.f32.xlu0 %v4275
          %v4403 = vpop.xlane.xlu0 %4402
          %4404 = vadd.xlane.f32.xlu0 %v4277
          %v4405 = vpop.xlane.xlu0 %4404
          %4406 = vadd.xlane.f32.xlu0 %v4279
          %v4407 = vpop.xlane.xlu0 %4406
          %4408 = vadd.xlane.f32.xlu0 %v4281
          %v4409 = vpop.xlane.xlu0 %4408
          %4410 = vadd.xlane.f32.xlu0 %v4283
          %v4411 = vpop.xlane.xlu0 %4410
          %4412 = vadd.xlane.f32.xlu0 %v4285
          %v4413 = vpop.xlane.xlu0 %4412
          %4414 = vadd.xlane.f32.xlu0 %v4287
          %v4415 = vpop.xlane.xlu0 %4414
          %4416 = vadd.xlane.f32.xlu0 %v4289
          %v4417 = vpop.xlane.xlu0 %4416
          %4418 = vadd.xlane.f32.xlu0 %v4291
          %v4419 = vpop.xlane.xlu0 %4418
          %4420 = vadd.xlane.f32.xlu0 %v4293
          %v4421 = vpop.xlane.xlu0 %4420
          %4422 = vadd.xlane.f32.xlu0 %v4295
          %v4423 = vpop.xlane.xlu0 %4422
          %v4424 = vadd.f32 %v4328, %v4361
          %v4425 = vadd.f32 %v4329, %v4363
          %v4426 = vadd.f32 %v4330, %v4365
          %v4427 = vadd.f32 %v4331, %v4367
          %v4428 = vadd.f32 %v4332, %v4369
          %v4429 = vadd.f32 %v4333, %v4371
          %v4430 = vadd.f32 %v4334, %v4373
          %v4431 = vadd.f32 %v4335, %v4375
          %v4432 = vadd.f32 %v4336, %v4377
          %v4433 = vadd.f32 %v4337, %v4379
          %v4434 = vadd.f32 %v4338, %v4381
          %v4435 = vadd.f32 %v4339, %v4383
          %v4436 = vadd.f32 %v4340, %v4385
          %v4437 = vadd.f32 %v4341, %v4387
          %v4438 = vadd.f32 %v4342, %v4389
          %v4439 = vadd.f32 %v4343, %v4391
          %v4440 = vadd.f32 %v4344, %v4393
          %v4441 = vadd.f32 %v4345, %v4395
          %v4442 = vadd.f32 %v4346, %v4397
          %v4443 = vadd.f32 %v4347, %v4399
          %v4444 = vadd.f32 %v4348, %v4401
          %v4445 = vadd.f32 %v4349, %v4403
          %v4446 = vadd.f32 %v4350, %v4405
          %v4447 = vadd.f32 %v4351, %v4407
          %v4448 = vadd.f32 %v4352, %v4409
          %v4449 = vadd.f32 %v4353, %v4411
          %v4450 = vadd.f32 %v4354, %v4413
          %v4451 = vadd.f32 %v4355, %v4415
          %v4452 = vadd.f32 %v4356, %v4417
          %v4453 = vadd.f32 %v4357, %v4419
          %v4454 = vadd.f32 %v4358, %v4421
          %v4455 = vadd.f32 %v4359, %v4423
          %vm4456 = vcmask 7168
          %4457 = vst.msk [vmem:[#allocation7] sm:$0xff] %vm4456, %v4424
          %4458 = vst.msk [vmem:[#allocation7 + $0x8] sm:$0xff] %vm4456, %v4425
          %4459 = vst.msk [vmem:[#allocation7 + $0x10] sm:$0xff] %vm4456, %v4426
          %4460 = vst.msk [vmem:[#allocation7 + $0x18] sm:$0xff] %vm4456, %v4427
          %4461 = vst.msk [vmem:[#allocation7 + $0x20] sm:$0xff] %vm4456, %v4428
          %4462 = vst.msk [vmem:[#allocation7 + $0x28] sm:$0xff] %vm4456, %v4429
          %4463 = vst.msk [vmem:[#allocation7 + $0x30] sm:$0xff] %vm4456, %v4430
          %4464 = vst.msk [vmem:[#allocation7 + $0x38] sm:$0xff] %vm4456, %v4431
          %4465 = vst.msk [vmem:[#allocation7 + $0x40] sm:$0xff] %vm4456, %v4432
          %4466 = vst.msk [vmem:[#allocation7 + $0x48] sm:$0xff] %vm4456, %v4433
          %4467 = vst.msk [vmem:[#allocation7 + $0x50] sm:$0xff] %vm4456, %v4434
          %4468 = vst.msk [vmem:[#allocation7 + $0x58] sm:$0xff] %vm4456, %v4435
          %4469 = vst.msk [vmem:[#allocation7 + $0x60] sm:$0xff] %vm4456, %v4436
          %4470 = vst.msk [vmem:[#allocation7 + $0x68] sm:$0xff] %vm4456, %v4437
          %4471 = vst.msk [vmem:[#allocation7 + $0x70] sm:$0xff] %vm4456, %v4438
          %4472 = vst.msk [vmem:[#allocation7 + $0x78] sm:$0xff] %vm4456, %v4439
          %4473 = vst.msk [vmem:[#allocation7 + $0x80] sm:$0xff] %vm4456, %v4440
          %4474 = vst.msk [vmem:[#allocation7 + $0x88] sm:$0xff] %vm4456, %v4441
          %4475 = vst.msk [vmem:[#allocation7 + $0x90] sm:$0xff] %vm4456, %v4442
          %4476 = vst.msk [vmem:[#allocation7 + $0x98] sm:$0xff] %vm4456, %v4443
          %4477 = vst.msk [vmem:[#allocation7 + $0xa0] sm:$0xff] %vm4456, %v4444
          %4478 = vst.msk [vmem:[#allocation7 + $0xa8] sm:$0xff] %vm4456, %v4445
          %4479 = vst.msk [vmem:[#allocation7 + $0xb0] sm:$0xff] %vm4456, %v4446
          %4480 = vst.msk [vmem:[#allocation7 + $0xb8] sm:$0xff] %vm4456, %v4447
          %4481 = vst.msk [vmem:[#allocation7 + $0xc0] sm:$0xff] %vm4456, %v4448
          %4482 = vst.msk [vmem:[#allocation7 + $0xc8] sm:$0xff] %vm4456, %v4449
          %4483 = vst.msk [vmem:[#allocation7 + $0xd0] sm:$0xff] %vm4456, %v4450
          %4484 = vst.msk [vmem:[#allocation7 + $0xd8] sm:$0xff] %vm4456, %v4451
          %4485 = vst.msk [vmem:[#allocation7 + $0xe0] sm:$0xff] %vm4456, %v4452
          %4486 = vst.msk [vmem:[#allocation7 + $0xe8] sm:$0xff] %vm4456, %v4453
          %4487 = vst.msk [vmem:[#allocation7 + $0xf0] sm:$0xff] %vm4456, %v4454
          %4488 = vst.msk [vmem:[#allocation7 + $0xf8] sm:$0xff] %vm4456, %v4455
          %v4489 = vld [vmem:[#allocation5] sm:$0xff]
          %v4490 = vld [vmem:[#allocation5 + $0x8] sm:$0xff]
          %v4491 = vld [vmem:[#allocation5 + $0x10] sm:$0xff]
          %v4492 = vld [vmem:[#allocation5 + $0x18] sm:$0xff]
          %v4493 = vld [vmem:[#allocation5 + $0x20] sm:$0xff]
          %v4494 = vld [vmem:[#allocation5 + $0x28] sm:$0xff]
          %v4495 = vld [vmem:[#allocation5 + $0x30] sm:$0xff]
          %v4496 = vld [vmem:[#allocation5 + $0x38] sm:$0xff]
          %v4497 = vld [vmem:[#allocation5 + $0x40] sm:$0xff]
          %v4498 = vld [vmem:[#allocation5 + $0x48] sm:$0xff]
          %v4499 = vld [vmem:[#allocation5 + $0x50] sm:$0xff]
          %v4500 = vld [vmem:[#allocation5 + $0x58] sm:$0xff]
          %v4501 = vld [vmem:[#allocation5 + $0x60] sm:$0xff]
          %v4502 = vld [vmem:[#allocation5 + $0x68] sm:$0xff]
          %v4503 = vld [vmem:[#allocation5 + $0x70] sm:$0xff]
          %v4504 = vld [vmem:[#allocation5 + $0x78] sm:$0xff]
          %v4505 = vld [vmem:[#allocation5 + $0x80] sm:$0xff]
          %v4506 = vld [vmem:[#allocation5 + $0x88] sm:$0xff]
          %v4507 = vld [vmem:[#allocation5 + $0x90] sm:$0xff]
          %v4508 = vld [vmem:[#allocation5 + $0x98] sm:$0xff]
          %v4509 = vld [vmem:[#allocation5 + $0xa0] sm:$0xff]
          %v4510 = vld [vmem:[#allocation5 + $0xa8] sm:$0xff]
          %v4511 = vld [vmem:[#allocation5 + $0xb0] sm:$0xff]
          %v4512 = vld [vmem:[#allocation5 + $0xb8] sm:$0xff]
          %v4513 = vld [vmem:[#allocation5 + $0xc0] sm:$0xff]
          %v4514 = vld [vmem:[#allocation5 + $0xc8] sm:$0xff]
          %v4515 = vld [vmem:[#allocation5 + $0xd0] sm:$0xff]
          %v4516 = vld [vmem:[#allocation5 + $0xd8] sm:$0xff]
          %v4517 = vld [vmem:[#allocation5 + $0xe0] sm:$0xff]
          %v4518 = vld [vmem:[#allocation5 + $0xe8] sm:$0xff]
          %v4519 = vld [vmem:[#allocation5 + $0xf0] sm:$0xff]
          %v4520 = vld [vmem:[#allocation5 + $0xf8] sm:$0xff]
          %4522 = vset.pattern.permute.xlu0 0
          %4523 = vperm.xlu0 %4522, %v3977
          %v4524 = vpop.permute.xlu0 %4523
          %4527 = vset.pattern.permute.xlu0 0
          %4528 = vperm.xlu0 %4527, %v3979
          %v4529 = vpop.permute.xlu0 %4528
          %4532 = vset.pattern.permute.xlu0 0
          %4533 = vperm.xlu0 %4532, %v3981
          %v4534 = vpop.permute.xlu0 %4533
          %4537 = vset.pattern.permute.xlu0 0
          %4538 = vperm.xlu0 %4537, %v3983
          %v4539 = vpop.permute.xlu0 %4538
          %4542 = vset.pattern.permute.xlu0 0
          %4543 = vperm.xlu0 %4542, %v3985
          %v4544 = vpop.permute.xlu0 %4543
          %4547 = vset.pattern.permute.xlu0 0
          %4548 = vperm.xlu0 %4547, %v3987
          %v4549 = vpop.permute.xlu0 %4548
          %4552 = vset.pattern.permute.xlu0 0
          %4553 = vperm.xlu0 %4552, %v3989
          %v4554 = vpop.permute.xlu0 %4553
          %4557 = vset.pattern.permute.xlu0 0
          %4558 = vperm.xlu0 %4557, %v3991
          %v4559 = vpop.permute.xlu0 %4558
          %4562 = vset.pattern.permute.xlu0 0
          %4563 = vperm.xlu0 %4562, %v3993
          %v4564 = vpop.permute.xlu0 %4563
          %4567 = vset.pattern.permute.xlu0 0
          %4568 = vperm.xlu0 %4567, %v3995
          %v4569 = vpop.permute.xlu0 %4568
          %4572 = vset.pattern.permute.xlu0 0
          %4573 = vperm.xlu0 %4572, %v3997
          %v4574 = vpop.permute.xlu0 %4573
          %4577 = vset.pattern.permute.xlu0 0
          %4578 = vperm.xlu0 %4577, %v3999
          %v4579 = vpop.permute.xlu0 %4578
          %4582 = vset.pattern.permute.xlu0 0
          %4583 = vperm.xlu0 %4582, %v4001
          %v4584 = vpop.permute.xlu0 %4583
          %4587 = vset.pattern.permute.xlu0 0
          %4588 = vperm.xlu0 %4587, %v4003
          %v4589 = vpop.permute.xlu0 %4588
          %4592 = vset.pattern.permute.xlu0 0
          %4593 = vperm.xlu0 %4592, %v4005
          %v4594 = vpop.permute.xlu0 %4593
          %4597 = vset.pattern.permute.xlu0 0
          %4598 = vperm.xlu0 %4597, %v4007
          %v4599 = vpop.permute.xlu0 %4598
          %4602 = vset.pattern.permute.xlu0 0
          %4603 = vperm.xlu0 %4602, %v4009
          %v4604 = vpop.permute.xlu0 %4603
          %4607 = vset.pattern.permute.xlu0 0
          %4608 = vperm.xlu0 %4607, %v4011
          %v4609 = vpop.permute.xlu0 %4608
          %4612 = vset.pattern.permute.xlu0 0
          %4613 = vperm.xlu0 %4612, %v4013
          %v4614 = vpop.permute.xlu0 %4613
          %4617 = vset.pattern.permute.xlu0 0
          %4618 = vperm.xlu0 %4617, %v4015
          %v4619 = vpop.permute.xlu0 %4618
          %4622 = vset.pattern.permute.xlu0 0
          %4623 = vperm.xlu0 %4622, %v4017
          %v4624 = vpop.permute.xlu0 %4623
          %4627 = vset.pattern.permute.xlu0 0
          %4628 = vperm.xlu0 %4627, %v4019
          %v4629 = vpop.permute.xlu0 %4628
          %4632 = vset.pattern.permute.xlu0 0
          %4633 = vperm.xlu0 %4632, %v4021
          %v4634 = vpop.permute.xlu0 %4633
          %4637 = vset.pattern.permute.xlu0 0
          %4638 = vperm.xlu0 %4637, %v4023
          %v4639 = vpop.permute.xlu0 %4638
          %4642 = vset.pattern.permute.xlu0 0
          %4643 = vperm.xlu0 %4642, %v4025
          %v4644 = vpop.permute.xlu0 %4643
          %4647 = vset.pattern.permute.xlu0 0
          %4648 = vperm.xlu0 %4647, %v4027
          %v4649 = vpop.permute.xlu0 %4648
          %4652 = vset.pattern.permute.xlu0 0
          %4653 = vperm.xlu0 %4652, %v4029
          %v4654 = vpop.permute.xlu0 %4653
          %4657 = vset.pattern.permute.xlu0 0
          %4658 = vperm.xlu0 %4657, %v4031
          %v4659 = vpop.permute.xlu0 %4658
          %4662 = vset.pattern.permute.xlu0 0
          %4663 = vperm.xlu0 %4662, %v4033
          %v4664 = vpop.permute.xlu0 %4663
          %4667 = vset.pattern.permute.xlu0 0
          %4668 = vperm.xlu0 %4667, %v4035
          %v4669 = vpop.permute.xlu0 %4668
          %4672 = vset.pattern.permute.xlu0 0
          %4673 = vperm.xlu0 %4672, %v4037
          %v4674 = vpop.permute.xlu0 %4673
          %4677 = vset.pattern.permute.xlu0 0
          %4678 = vperm.xlu0 %4677, %v4039
          %v4679 = vpop.permute.xlu0 %4678
          %v4681 = vmul.f32 %v4524, %v4489
          %v4682 = vmul.f32 %v4529, %v4490
          %v4683 = vmul.f32 %v4534, %v4491
          %v4684 = vmul.f32 %v4539, %v4492
          %v4685 = vmul.f32 %v4544, %v4493
          %v4686 = vmul.f32 %v4549, %v4494
          %v4687 = vmul.f32 %v4554, %v4495
          %v4688 = vmul.f32 %v4559, %v4496
          %v4689 = vmul.f32 %v4564, %v4497
          %v4690 = vmul.f32 %v4569, %v4498
          %v4691 = vmul.f32 %v4574, %v4499
          %v4692 = vmul.f32 %v4579, %v4500
          %v4693 = vmul.f32 %v4584, %v4501
          %v4694 = vmul.f32 %v4589, %v4502
          %v4695 = vmul.f32 %v4594, %v4503
          %v4696 = vmul.f32 %v4599, %v4504
          %v4697 = vmul.f32 %v4604, %v4505
          %v4698 = vmul.f32 %v4609, %v4506
          %v4699 = vmul.f32 %v4614, %v4507
          %v4700 = vmul.f32 %v4619, %v4508
          %v4701 = vmul.f32 %v4624, %v4509
          %v4702 = vmul.f32 %v4629, %v4510
          %v4703 = vmul.f32 %v4634, %v4511
          %v4704 = vmul.f32 %v4639, %v4512
          %v4705 = vmul.f32 %v4644, %v4513
          %v4706 = vmul.f32 %v4649, %v4514
          %v4707 = vmul.f32 %v4654, %v4515
          %v4708 = vmul.f32 %v4659, %v4516
          %v4709 = vmul.f32 %v4664, %v4517
          %v4710 = vmul.f32 %v4669, %v4518
          %v4711 = vmul.f32 %v4674, %v4519
          %v4712 = vmul.f32 %v4679, %v4520
          %4713 = vmatprep.subr.mxu0 0.0
          %4714 = vmatpush1.msra.mxu0 %v2993
          %4715 = vmatprep.subr.mxu0 0.0
          %4716 = vmatpush1.msra.mxu0 %v2998
          %4717 = vmatprep.subr.mxu0 0.0
          %4718 = vmatpush1.msra.mxu0 %v3003
          %4719 = vmatprep.subr.mxu0 0.0
          %4720 = vmatpush1.msra.mxu0 %v3008
          %4721 = vmatprep.subr.mxu0 0.0
          %4722 = vmatpush1.msra.mxu0 %v3013
          %4723 = vmatprep.subr.mxu0 0.0
          %4724 = vmatpush1.msra.mxu0 %v3018
          %4725 = vmatprep.subr.mxu0 0.0
          %4726 = vmatpush1.msra.mxu0 %v3023
          %4727 = vmatprep.subr.mxu0 0.0
          %4728 = vmatpush1.msra.mxu0 %v3028
          %4729 = vmatprep.subr.mxu0 0.0
          %4730 = vmatpush1.msra.mxu0 %v3033
          %4731 = vmatprep.subr.mxu0 0.0
          %4732 = vmatpush1.msra.mxu0 %v3038
          %4733 = vmatprep.subr.mxu0 0.0
          %4734 = vmatpush1.msra.mxu0 %v3043
          %4735 = vmatprep.subr.mxu0 0.0
          %4736 = vmatpush1.msra.mxu0 %v3048
          %4737 = vmatprep.subr.mxu0 0.0
          %4738 = vmatpush1.msra.mxu0 %v3053
          %4739 = vmatprep.subr.mxu0 0.0
          %4740 = vmatpush1.msra.mxu0 %v3058
          %4741 = vmatprep.subr.mxu0 0.0
          %4742 = vmatpush1.msra.mxu0 %v3063
          %4743 = vmatprep.subr.mxu0 0.0
          %4744 = vmatpush1.msra.mxu0 %v3068
          %4745 = vmatprep.subr.mxu0 0.0
          %4746 = vmatpush1.msra.mxu0 0.0
          %4747 = vmatprep.subr.mxu0 0.0
          %4748 = vmatpush1.msra.mxu0 0.0
          %4749 = vmatprep.subr.mxu0 0.0
          %4750 = vmatpush1.msra.mxu0 0.0
          %4751 = vmatprep.subr.mxu0 0.0
          %4752 = vmatpush1.msra.mxu0 0.0
          %4753 = vmatprep.subr.mxu0 0.0
          %4754 = vmatpush1.msra.mxu0 0.0
          %4755 = vmatprep.subr.mxu0 0.0
          %4756 = vmatpush1.msra.mxu0 0.0
          %4757 = vmatprep.subr.mxu0 0.0
          %4758 = vmatpush1.msra.mxu0 0.0
          %4759 = vmatprep.subr.mxu0 0.0
          %4760 = vmatpush1.msra.mxu0 0.0
          %4761 = vmatprep.subr.mxu0 0.0
          %4762 = vmatpush1.msra.mxu0 0.0
          %4763 = vmatprep.subr.mxu0 0.0
          %4764 = vmatpush1.msra.mxu0 0.0
          %4765 = vmatprep.subr.mxu0 0.0
          %4766 = vmatpush1.msra.mxu0 0.0
          %4767 = vmatprep.subr.mxu0 0.0
          %4768 = vmatpush1.msra.mxu0 0.0
          %4769 = vmatprep.subr.mxu0 0.0
          %4770 = vmatpush1.msra.mxu0 0.0
          %4771 = vmatprep.subr.mxu0 0.0
          %4772 = vmatpush1.msra.mxu0 0.0
          %4773 = vmatprep.subr.mxu0 0.0
          %4774 = vmatpush1.msra.mxu0 0.0
          %4775 = vmatprep.subr.mxu0 0.0
          %4776 = vmatpush1.msra.mxu0 0.0
          %4777 = vmatprep.mubr.f32.mxu0 0.0
          %4778 = vmatmul.mubr.f32.gmra.mrb[0].mxu0 %v4233
          %v4779 = vpop.f32.mrb[0].mxu0
          %v4780 = vadd.f32 0.0, %v4779
          %v4781 = vpop.f32.mrb[0].mxu0
          %4782 = vmatprep.mubr.f32.mxu0 0.0
          %4783 = vmatmul.mubr.f32.gmra.mrb[0].mxu0 %v4235
          %v4784 = vpop.f32.mrb[0].mxu0
          %v4785 = vadd.f32 0.0, %v4784
          %v4786 = vpop.f32.mrb[0].mxu0
          %4787 = vmatprep.mubr.f32.mxu0 0.0
          %4788 = vmatmul.mubr.f32.gmra.mrb[0].mxu0 %v4237
          %v4789 = vpop.f32.mrb[0].mxu0
          %v4790 = vadd.f32 0.0, %v4789
          %v4791 = vpop.f32.mrb[0].mxu0
          %4792 = vmatprep.mubr.f32.mxu0 0.0
          %4793 = vmatmul.mubr.f32.gmra.mrb[0].mxu0 %v4239
          %v4794 = vpop.f32.mrb[0].mxu0
          %v4795 = vadd.f32 0.0, %v4794
          %v4796 = vpop.f32.mrb[0].mxu0
          %4797 = vmatprep.mubr.f32.mxu0 0.0
          %4798 = vmatmul.mubr.f32.gmra.mrb[0].mxu0 %v4241
          %v4799 = vpop.f32.mrb[0].mxu0
          %v4800 = vadd.f32 0.0, %v4799
          %v4801 = vpop.f32.mrb[0].mxu0
          %4802 = vmatprep.mubr.f32.mxu0 0.0
          %4803 = vmatmul.mubr.f32.gmra.mrb[0].mxu0 %v4243
          %v4804 = vpop.f32.mrb[0].mxu0
          %v4805 = vadd.f32 0.0, %v4804
          %v4806 = vpop.f32.mrb[0].mxu0
          %4807 = vmatprep.mubr.f32.mxu0 0.0
          %4808 = vmatmul.mubr.f32.gmra.mrb[0].mxu0 %v4245
          %v4809 = vpop.f32.mrb[0].mxu0
          %v4810 = vadd.f32 0.0, %v4809
          %v4811 = vpop.f32.mrb[0].mxu0
          %4812 = vmatprep.mubr.f32.mxu0 0.0
          %4813 = vmatmul.mubr.f32.gmra.mrb[0].mxu0 %v4247
          %v4814 = vpop.f32.mrb[0].mxu0
          %v4815 = vadd.f32 0.0, %v4814
          %v4816 = vpop.f32.mrb[0].mxu0
          %4817 = vmatprep.mubr.f32.mxu0 0.0
          %4818 = vmatmul.mubr.f32.gmra.mrb[0].mxu0 %v4249
          %v4819 = vpop.f32.mrb[0].mxu0
          %v4820 = vadd.f32 0.0, %v4819
          %v4821 = vpop.f32.mrb[0].mxu0
          %4822 = vmatprep.mubr.f32.mxu0 0.0
          %4823 = vmatmul.mubr.f32.gmra.mrb[0].mxu0 %v4251
          %v4824 = vpop.f32.mrb[0].mxu0
          %v4825 = vadd.f32 0.0, %v4824
          %v4826 = vpop.f32.mrb[0].mxu0
          %4827 = vmatprep.mubr.f32.mxu0 0.0
          %4828 = vmatmul.mubr.f32.gmra.mrb[0].mxu0 %v4253
          %v4829 = vpop.f32.mrb[0].mxu0
          %v4830 = vadd.f32 0.0, %v4829
          %v4831 = vpop.f32.mrb[0].mxu0
          %4832 = vmatprep.mubr.f32.mxu0 0.0
          %4833 = vmatmul.mubr.f32.gmra.mrb[0].mxu0 %v4255
          %v4834 = vpop.f32.mrb[0].mxu0
          %v4835 = vadd.f32 0.0, %v4834
          %v4836 = vpop.f32.mrb[0].mxu0
          %4837 = vmatprep.mubr.f32.mxu0 0.0
          %4838 = vmatmul.mubr.f32.gmra.mrb[0].mxu0 %v4257
          %v4839 = vpop.f32.mrb[0].mxu0
          %v4840 = vadd.f32 0.0, %v4839
          %v4841 = vpop.f32.mrb[0].mxu0
          %4842 = vmatprep.mubr.f32.mxu0 0.0
          %4843 = vmatmul.mubr.f32.gmra.mrb[0].mxu0 %v4259
          %v4844 = vpop.f32.mrb[0].mxu0
          %v4845 = vadd.f32 0.0, %v4844
          %v4846 = vpop.f32.mrb[0].mxu0
          %4847 = vmatprep.mubr.f32.mxu0 0.0
          %4848 = vmatmul.mubr.f32.gmra.mrb[0].mxu0 %v4261
          %v4849 = vpop.f32.mrb[0].mxu0
          %v4850 = vadd.f32 0.0, %v4849
          %v4851 = vpop.f32.mrb[0].mxu0
          %4852 = vmatprep.mubr.f32.mxu0 0.0
          %4853 = vmatmul.mubr.f32.gmra.mrb[0].mxu0 %v4263
          %v4854 = vpop.f32.mrb[0].mxu0
          %v4855 = vadd.f32 0.0, %v4854
          %v4856 = vpop.f32.mrb[0].mxu0
          %4857 = vdwg.mxu0
          %4858 = vmatprep.subr.mxu0 0.0
          %4859 = vmatpush1.msra.mxu0 %v3152
          %4860 = vmatprep.subr.mxu0 0.0
          %4861 = vmatpush1.msra.mxu0 %v3154
          %4862 = vmatprep.subr.mxu0 0.0
          %4863 = vmatpush1.msra.mxu0 %v3156
          %4864 = vmatprep.subr.mxu0 0.0
          %4865 = vmatpush1.msra.mxu0 %v3158
          %4866 = vmatprep.subr.mxu0 0.0
          %4867 = vmatpush1.msra.mxu0 %v3160
          %4868 = vmatprep.subr.mxu0 0.0
          %4869 = vmatpush1.msra.mxu0 %v3162
          %4870 = vmatprep.subr.mxu0 0.0
          %4871 = vmatpush1.msra.mxu0 %v3164
          %4872 = vmatprep.subr.mxu0 0.0
          %4873 = vmatpush1.msra.mxu0 %v3166
          %4874 = vmatprep.subr.mxu0 0.0
          %4875 = vmatpush1.msra.mxu0 %v3168
          %4876 = vmatprep.subr.mxu0 0.0
          %4877 = vmatpush1.msra.mxu0 %v3170
          %4878 = vmatprep.subr.mxu0 0.0
          %4879 = vmatpush1.msra.mxu0 %v3172
          %4880 = vmatprep.subr.mxu0 0.0
          %4881 = vmatpush1.msra.mxu0 %v3174
          %4882 = vmatprep.subr.mxu0 0.0
          %4883 = vmatpush1.msra.mxu0 %v3176
          %4884 = vmatprep.subr.mxu0 0.0
          %4885 = vmatpush1.msra.mxu0 %v3178
          %4886 = vmatprep.subr.mxu0 0.0
          %4887 = vmatpush1.msra.mxu0 %v3180
          %4888 = vmatprep.subr.mxu0 0.0
          %4889 = vmatpush1.msra.mxu0 %v3182
          %4890 = vmatprep.subr.mxu0 0.0
          %4891 = vmatpush1.msra.mxu0 0.0
          %4892 = vmatprep.subr.mxu0 0.0
          %4893 = vmatpush1.msra.mxu0 0.0
          %4894 = vmatprep.subr.mxu0 0.0
          %4895 = vmatpush1.msra.mxu0 0.0
          %4896 = vmatprep.subr.mxu0 0.0
          %4897 = vmatpush1.msra.mxu0 0.0
          %4898 = vmatprep.subr.mxu0 0.0
          %4899 = vmatpush1.msra.mxu0 0.0
          %4900 = vmatprep.subr.mxu0 0.0
          %4901 = vmatpush1.msra.mxu0 0.0
          %4902 = vmatprep.subr.mxu0 0.0
          %4903 = vmatpush1.msra.mxu0 0.0
          %4904 = vmatprep.subr.mxu0 0.0
          %4905 = vmatpush1.msra.mxu0 0.0
          %4906 = vmatprep.subr.mxu0 0.0
          %4907 = vmatpush1.msra.mxu0 0.0
          %4908 = vmatprep.subr.mxu0 0.0
          %4909 = vmatpush1.msra.mxu0 0.0
          %4910 = vmatprep.subr.mxu0 0.0
          %4911 = vmatpush1.msra.mxu0 0.0
          %4912 = vmatprep.subr.mxu0 0.0
          %4913 = vmatpush1.msra.mxu0 0.0
          %4914 = vmatprep.subr.mxu0 0.0
          %4915 = vmatpush1.msra.mxu0 0.0
          %4916 = vmatprep.subr.mxu0 0.0
          %4917 = vmatpush1.msra.mxu0 0.0
          %4918 = vmatprep.subr.mxu0 0.0
          %4919 = vmatpush1.msra.mxu0 0.0
          %4920 = vmatprep.subr.mxu0 0.0
          %4921 = vmatpush1.msra.mxu0 0.0
          %4922 = vmatprep.mubr.f32.mxu0 0.0
          %4923 = vmatmul.mubr.f32.gmra.mrb[0].mxu0 %v4265
          %v4924 = vpop.f32.mrb[0].mxu0
          %v4925 = vadd.f32 0.0, %v4924
          %v4926 = vpop.f32.mrb[0].mxu0
          %4927 = vmatprep.mubr.f32.mxu0 0.0
          %4928 = vmatmul.mubr.f32.gmra.mrb[0].mxu0 %v4267
          %v4929 = vpop.f32.mrb[0].mxu0
          %v4930 = vadd.f32 0.0, %v4929
          %v4931 = vpop.f32.mrb[0].mxu0
          %4932 = vmatprep.mubr.f32.mxu0 0.0
          %4933 = vmatmul.mubr.f32.gmra.mrb[0].mxu0 %v4269
          %v4934 = vpop.f32.mrb[0].mxu0
          %v4935 = vadd.f32 0.0, %v4934
          %v4936 = vpop.f32.mrb[0].mxu0
          %4937 = vmatprep.mubr.f32.mxu0 0.0
          %4938 = vmatmul.mubr.f32.gmra.mrb[0].mxu0 %v4271
          %v4939 = vpop.f32.mrb[0].mxu0
          %v4940 = vadd.f32 0.0, %v4939
          %v4941 = vpop.f32.mrb[0].mxu0
          %4942 = vmatprep.mubr.f32.mxu0 0.0
          %4943 = vmatmul.mubr.f32.gmra.mrb[0].mxu0 %v4273
          %v4944 = vpop.f32.mrb[0].mxu0
          %v4945 = vadd.f32 0.0, %v4944
          %v4946 = vpop.f32.mrb[0].mxu0
          %4947 = vmatprep.mubr.f32.mxu0 0.0
          %4948 = vmatmul.mubr.f32.gmra.mrb[0].mxu0 %v4275
          %v4949 = vpop.f32.mrb[0].mxu0
          %v4950 = vadd.f32 0.0, %v4949
          %v4951 = vpop.f32.mrb[0].mxu0
          %4952 = vmatprep.mubr.f32.mxu0 0.0
          %4953 = vmatmul.mubr.f32.gmra.mrb[0].mxu0 %v4277
          %v4954 = vpop.f32.mrb[0].mxu0
          %v4955 = vadd.f32 0.0, %v4954
          %v4956 = vpop.f32.mrb[0].mxu0
          %4957 = vmatprep.mubr.f32.mxu0 0.0
          %4958 = vmatmul.mubr.f32.gmra.mrb[0].mxu0 %v4279
          %v4959 = vpop.f32.mrb[0].mxu0
          %v4960 = vadd.f32 0.0, %v4959
          %v4961 = vpop.f32.mrb[0].mxu0
          %4962 = vmatprep.mubr.f32.mxu0 0.0
          %4963 = vmatmul.mubr.f32.gmra.mrb[0].mxu0 %v4281
          %v4964 = vpop.f32.mrb[0].mxu0
          %v4965 = vadd.f32 0.0, %v4964
          %v4966 = vpop.f32.mrb[0].mxu0
          %4967 = vmatprep.mubr.f32.mxu0 0.0
          %4968 = vmatmul.mubr.f32.gmra.mrb[0].mxu0 %v4283
          %v4969 = vpop.f32.mrb[0].mxu0
          %v4970 = vadd.f32 0.0, %v4969
          %v4971 = vpop.f32.mrb[0].mxu0
          %4972 = vmatprep.mubr.f32.mxu0 0.0
          %4973 = vmatmul.mubr.f32.gmra.mrb[0].mxu0 %v4285
          %v4974 = vpop.f32.mrb[0].mxu0
          %v4975 = vadd.f32 0.0, %v4974
          %v4976 = vpop.f32.mrb[0].mxu0
          %4977 = vmatprep.mubr.f32.mxu0 0.0
          %4978 = vmatmul.mubr.f32.gmra.mrb[0].mxu0 %v4287
          %v4979 = vpop.f32.mrb[0].mxu0
          %v4980 = vadd.f32 0.0, %v4979
          %v4981 = vpop.f32.mrb[0].mxu0
          %4982 = vmatprep.mubr.f32.mxu0 0.0
          %4983 = vmatmul.mubr.f32.gmra.mrb[0].mxu0 %v4289
          %v4984 = vpop.f32.mrb[0].mxu0
          %v4985 = vadd.f32 0.0, %v4984
          %v4986 = vpop.f32.mrb[0].mxu0
          %4987 = vmatprep.mubr.f32.mxu0 0.0
          %4988 = vmatmul.mubr.f32.gmra.mrb[0].mxu0 %v4291
          %v4989 = vpop.f32.mrb[0].mxu0
          %v4990 = vadd.f32 0.0, %v4989
          %v4991 = vpop.f32.mrb[0].mxu0
          %4992 = vmatprep.mubr.f32.mxu0 0.0
          %4993 = vmatmul.mubr.f32.gmra.mrb[0].mxu0 %v4293
          %v4994 = vpop.f32.mrb[0].mxu0
          %v4995 = vadd.f32 0.0, %v4994
          %v4996 = vpop.f32.mrb[0].mxu0
          %4997 = vmatprep.mubr.f32.mxu0 0.0
          %4998 = vmatmul.mubr.f32.gmra.mrb[0].mxu0 %v4295
          %v4999 = vpop.f32.mrb[0].mxu0
          %v5000 = vadd.f32 0.0, %v4999
          %v5001 = vpop.f32.mrb[0].mxu0
          %5002 = vdwg.mxu0
          %v5003 = vadd.f32 %v4681, %v4780
          %v5004 = vadd.f32 %v4682, %v4785
          %v5005 = vadd.f32 %v4683, %v4790
          %v5006 = vadd.f32 %v4684, %v4795
          %v5007 = vadd.f32 %v4685, %v4800
          %v5008 = vadd.f32 %v4686, %v4805
          %v5009 = vadd.f32 %v4687, %v4810
          %v5010 = vadd.f32 %v4688, %v4815
          %v5011 = vadd.f32 %v4689, %v4820
          %v5012 = vadd.f32 %v4690, %v4825
          %v5013 = vadd.f32 %v4691, %v4830
          %v5014 = vadd.f32 %v4692, %v4835
          %v5015 = vadd.f32 %v4693, %v4840
          %v5016 = vadd.f32 %v4694, %v4845
          %v5017 = vadd.f32 %v4695, %v4850
          %v5018 = vadd.f32 %v4696, %v4855
          %v5019 = vadd.f32 %v4697, %v4925
          %v5020 = vadd.f32 %v4698, %v4930
          %v5021 = vadd.f32 %v4699, %v4935
          %v5022 = vadd.f32 %v4700, %v4940
          %v5023 = vadd.f32 %v4701, %v4945
          %v5024 = vadd.f32 %v4702, %v4950
          %v5025 = vadd.f32 %v4703, %v4955
          %v5026 = vadd.f32 %v4704, %v4960
          %v5027 = vadd.f32 %v4705, %v4965
          %v5028 = vadd.f32 %v4706, %v4970
          %v5029 = vadd.f32 %v4707, %v4975
          %v5030 = vadd.f32 %v4708, %v4980
          %v5031 = vadd.f32 %v4709, %v4985
          %v5032 = vadd.f32 %v4710, %v4990
          %v5033 = vadd.f32 %v4711, %v4995
          %v5034 = vadd.f32 %v4712, %v5000
          %5035 = vst.msk [vmem:[#allocation5] sm:$0xff] %vm3201, %v5003
          %5036 = vst.msk [vmem:[#allocation5 + $0x8] sm:$0xff] %vm3201, %v5004
          %5037 = vst.msk [vmem:[#allocation5 + $0x10] sm:$0xff] %vm3201, %v5005
          %5038 = vst.msk [vmem:[#allocation5 + $0x18] sm:$0xff] %vm3201, %v5006
          %5039 = vst.msk [vmem:[#allocation5 + $0x20] sm:$0xff] %vm3201, %v5007
          %5040 = vst.msk [vmem:[#allocation5 + $0x28] sm:$0xff] %vm3201, %v5008
          %5041 = vst.msk [vmem:[#allocation5 + $0x30] sm:$0xff] %vm3201, %v5009
          %5042 = vst.msk [vmem:[#allocation5 + $0x38] sm:$0xff] %vm3201, %v5010
          %5043 = vst.msk [vmem:[#allocation5 + $0x40] sm:$0xff] %vm3201, %v5011
          %5044 = vst.msk [vmem:[#allocation5 + $0x48] sm:$0xff] %vm3201, %v5012
          %5045 = vst.msk [vmem:[#allocation5 + $0x50] sm:$0xff] %vm3201, %v5013
          %5046 = vst.msk [vmem:[#allocation5 + $0x58] sm:$0xff] %vm3201, %v5014
          %5047 = vst.msk [vmem:[#allocation5 + $0x60] sm:$0xff] %vm3201, %v5015
          %5048 = vst.msk [vmem:[#allocation5 + $0x68] sm:$0xff] %vm3201, %v5016
          %5049 = vst.msk [vmem:[#allocation5 + $0x70] sm:$0xff] %vm3201, %v5017
          %5050 = vst.msk [vmem:[#allocation5 + $0x78] sm:$0xff] %vm3201, %v5018
          %5051 = vst.msk [vmem:[#allocation5 + $0x80] sm:$0xff] %vm3201, %v5019
          %5052 = vst.msk [vmem:[#allocation5 + $0x88] sm:$0xff] %vm3201, %v5020
          %5053 = vst.msk [vmem:[#allocation5 + $0x90] sm:$0xff] %vm3201, %v5021
          %5054 = vst.msk [vmem:[#allocation5 + $0x98] sm:$0xff] %vm3201, %v5022
          %5055 = vst.msk [vmem:[#allocation5 + $0xa0] sm:$0xff] %vm3201, %v5023
          %5056 = vst.msk [vmem:[#allocation5 + $0xa8] sm:$0xff] %vm3201, %v5024
          %5057 = vst.msk [vmem:[#allocation5 + $0xb0] sm:$0xff] %vm3201, %v5025
          %5058 = vst.msk [vmem:[#allocation5 + $0xb8] sm:$0xff] %vm3201, %v5026
          %5059 = vst.msk [vmem:[#allocation5 + $0xc0] sm:$0xff] %vm3201, %v5027
          %5060 = vst.msk [vmem:[#allocation5 + $0xc8] sm:$0xff] %vm3201, %v5028
          %5061 = vst.msk [vmem:[#allocation5 + $0xd0] sm:$0xff] %vm3201, %v5029
          %5062 = vst.msk [vmem:[#allocation5 + $0xd8] sm:$0xff] %vm3201, %v5030
          %5063 = vst.msk [vmem:[#allocation5 + $0xe0] sm:$0xff] %vm3201, %v5031
          %5064 = vst.msk [vmem:[#allocation5 + $0xe8] sm:$0xff] %vm3201, %v5032
          %5065 = vst.msk [vmem:[#allocation5 + $0xf0] sm:$0xff] %vm3201, %v5033
          %5066 = vst.msk [vmem:[#allocation5 + $0xf8] sm:$0xff] %vm3201, %v5034
          %5067 = vst.msk [vmem:[#allocation6] sm:$0xff] %vm4456, %v3912
          %5068 = vst.msk [vmem:[#allocation6 + $0x8] sm:$0xff] %vm4456, %v3913
          %5069 = vst.msk [vmem:[#allocation6 + $0x10] sm:$0xff] %vm4456, %v3914
          %5070 = vst.msk [vmem:[#allocation6 + $0x18] sm:$0xff] %vm4456, %v3915
          %5071 = vst.msk [vmem:[#allocation6 + $0x20] sm:$0xff] %vm4456, %v3916
          %5072 = vst.msk [vmem:[#allocation6 + $0x28] sm:$0xff] %vm4456, %v3917
          %5073 = vst.msk [vmem:[#allocation6 + $0x30] sm:$0xff] %vm4456, %v3918
          %5074 = vst.msk [vmem:[#allocation6 + $0x38] sm:$0xff] %vm4456, %v3919
          %5075 = vst.msk [vmem:[#allocation6 + $0x40] sm:$0xff] %vm4456, %v3920
          %5076 = vst.msk [vmem:[#allocation6 + $0x48] sm:$0xff] %vm4456, %v3921
          %5077 = vst.msk [vmem:[#allocation6 + $0x50] sm:$0xff] %vm4456, %v3922
          %5078 = vst.msk [vmem:[#allocation6 + $0x58] sm:$0xff] %vm4456, %v3923
          %5079 = vst.msk [vmem:[#allocation6 + $0x60] sm:$0xff] %vm4456, %v3924
          %5080 = vst.msk [vmem:[#allocation6 + $0x68] sm:$0xff] %vm4456, %v3925
          %5081 = vst.msk [vmem:[#allocation6 + $0x70] sm:$0xff] %vm4456, %v3926
          %5082 = vst.msk [vmem:[#allocation6 + $0x78] sm:$0xff] %vm4456, %v3927
          %5083 = vst.msk [vmem:[#allocation6 + $0x80] sm:$0xff] %vm4456, %v3928
          %5084 = vst.msk [vmem:[#allocation6 + $0x88] sm:$0xff] %vm4456, %v3929
          %5085 = vst.msk [vmem:[#allocation6 + $0x90] sm:$0xff] %vm4456, %v3930
          %5086 = vst.msk [vmem:[#allocation6 + $0x98] sm:$0xff] %vm4456, %v3931
          %5087 = vst.msk [vmem:[#allocation6 + $0xa0] sm:$0xff] %vm4456, %v3932
          %5088 = vst.msk [vmem:[#allocation6 + $0xa8] sm:$0xff] %vm4456, %v3933
          %5089 = vst.msk [vmem:[#allocation6 + $0xb0] sm:$0xff] %vm4456, %v3934
          %5090 = vst.msk [vmem:[#allocation6 + $0xb8] sm:$0xff] %vm4456, %v3935
          %5091 = vst.msk [vmem:[#allocation6 + $0xc0] sm:$0xff] %vm4456, %v3936
          %5092 = vst.msk [vmem:[#allocation6 + $0xc8] sm:$0xff] %vm4456, %v3937
          %5093 = vst.msk [vmem:[#allocation6 + $0xd0] sm:$0xff] %vm4456, %v3938
          %5094 = vst.msk [vmem:[#allocation6 + $0xd8] sm:$0xff] %vm4456, %v3939
          %5095 = vst.msk [vmem:[#allocation6 + $0xe0] sm:$0xff] %vm4456, %v3940
          %5096 = vst.msk [vmem:[#allocation6 + $0xe8] sm:$0xff] %vm4456, %v3941
          %5097 = vst.msk [vmem:[#allocation6 + $0xf0] sm:$0xff] %vm4456, %v3942
          %5098 = vst.msk [vmem:[#allocation6 + $0xf8] sm:$0xff] %vm4456, %v3943
          %v5099 = vld [vmem:[#allocation7] sm:$0xff]
          %v5100 = vld [vmem:[#allocation7 + $0x8] sm:$0xff]
          %v5101 = vld [vmem:[#allocation7 + $0x10] sm:$0xff]
          %v5102 = vld [vmem:[#allocation7 + $0x18] sm:$0xff]
          %v5103 = vld [vmem:[#allocation7 + $0x20] sm:$0xff]
          %v5104 = vld [vmem:[#allocation7 + $0x28] sm:$0xff]
          %v5105 = vld [vmem:[#allocation7 + $0x30] sm:$0xff]
          %v5106 = vld [vmem:[#allocation7 + $0x38] sm:$0xff]
          %v5107 = vld [vmem:[#allocation7 + $0x40] sm:$0xff]
          %v5108 = vld [vmem:[#allocation7 + $0x48] sm:$0xff]
          %v5109 = vld [vmem:[#allocation7 + $0x50] sm:$0xff]
          %v5110 = vld [vmem:[#allocation7 + $0x58] sm:$0xff]
          %v5111 = vld [vmem:[#allocation7 + $0x60] sm:$0xff]
          %v5112 = vld [vmem:[#allocation7 + $0x68] sm:$0xff]
          %v5113 = vld [vmem:[#allocation7 + $0x70] sm:$0xff]
          %v5114 = vld [vmem:[#allocation7 + $0x78] sm:$0xff]
          %v5115 = vld [vmem:[#allocation7 + $0x80] sm:$0xff]
          %v5116 = vld [vmem:[#allocation7 + $0x88] sm:$0xff]
          %v5117 = vld [vmem:[#allocation7 + $0x90] sm:$0xff]
          %v5118 = vld [vmem:[#allocation7 + $0x98] sm:$0xff]
          %v5119 = vld [vmem:[#allocation7 + $0xa0] sm:$0xff]
          %v5120 = vld [vmem:[#allocation7 + $0xa8] sm:$0xff]
          %v5121 = vld [vmem:[#allocation7 + $0xb0] sm:$0xff]
          %v5122 = vld [vmem:[#allocation7 + $0xb8] sm:$0xff]
          %v5123 = vld [vmem:[#allocation7 + $0xc0] sm:$0xff]
          %v5124 = vld [vmem:[#allocation7 + $0xc8] sm:$0xff]
          %v5125 = vld [vmem:[#allocation7 + $0xd0] sm:$0xff]
          %v5126 = vld [vmem:[#allocation7 + $0xd8] sm:$0xff]
          %v5127 = vld [vmem:[#allocation7 + $0xe0] sm:$0xff]
          %v5128 = vld [vmem:[#allocation7 + $0xe8] sm:$0xff]
          %v5129 = vld [vmem:[#allocation7 + $0xf0] sm:$0xff]
          %v5130 = vld [vmem:[#allocation7 + $0xf8] sm:$0xff]
          %v5131 = vrcp.pop %v5099
          %v5132 = vrcp.pop %v5100
          %v5133 = vrcp.pop %v5101
          %v5134 = vrcp.pop %v5102
          %v5135 = vrcp.pop %v5103
          %v5136 = vrcp.pop %v5104
          %v5137 = vrcp.pop %v5105
          %v5138 = vrcp.pop %v5106
          %v5139 = vrcp.pop %v5107
          %v5140 = vrcp.pop %v5108
          %v5141 = vrcp.pop %v5109
          %v5142 = vrcp.pop %v5110
          %v5143 = vrcp.pop %v5111
          %v5144 = vrcp.pop %v5112
          %v5145 = vrcp.pop %v5113
          %v5146 = vrcp.pop %v5114
          %v5147 = vrcp.pop %v5115
          %v5148 = vrcp.pop %v5116
          %v5149 = vrcp.pop %v5117
          %v5150 = vrcp.pop %v5118
          %v5151 = vrcp.pop %v5119
          %v5152 = vrcp.pop %v5120
          %v5153 = vrcp.pop %v5121
          %v5154 = vrcp.pop %v5122
          %v5155 = vrcp.pop %v5123
          %v5156 = vrcp.pop %v5124
          %v5157 = vrcp.pop %v5125
          %v5158 = vrcp.pop %v5126
          %v5159 = vrcp.pop %v5127
          %v5160 = vrcp.pop %v5128
          %v5161 = vrcp.pop %v5129
          %v5162 = vrcp.pop %v5130
          %v5163 = vld [vmem:[#allocation5] sm:$0xff]
          %v5164 = vld [vmem:[#allocation5 + $0x8] sm:$0xff]
          %v5165 = vld [vmem:[#allocation5 + $0x10] sm:$0xff]
          %v5166 = vld [vmem:[#allocation5 + $0x18] sm:$0xff]
          %v5167 = vld [vmem:[#allocation5 + $0x20] sm:$0xff]
          %v5168 = vld [vmem:[#allocation5 + $0x28] sm:$0xff]
          %v5169 = vld [vmem:[#allocation5 + $0x30] sm:$0xff]
          %v5170 = vld [vmem:[#allocation5 + $0x38] sm:$0xff]
          %v5171 = vld [vmem:[#allocation5 + $0x40] sm:$0xff]
          %v5172 = vld [vmem:[#allocation5 + $0x48] sm:$0xff]
          %v5173 = vld [vmem:[#allocation5 + $0x50] sm:$0xff]
          %v5174 = vld [vmem:[#allocation5 + $0x58] sm:$0xff]
          %v5175 = vld [vmem:[#allocation5 + $0x60] sm:$0xff]
          %v5176 = vld [vmem:[#allocation5 + $0x68] sm:$0xff]
          %v5177 = vld [vmem:[#allocation5 + $0x70] sm:$0xff]
          %v5178 = vld [vmem:[#allocation5 + $0x78] sm:$0xff]
          %v5179 = vld [vmem:[#allocation5 + $0x80] sm:$0xff]
          %v5180 = vld [vmem:[#allocation5 + $0x88] sm:$0xff]
          %v5181 = vld [vmem:[#allocation5 + $0x90] sm:$0xff]
          %v5182 = vld [vmem:[#allocation5 + $0x98] sm:$0xff]
          %v5183 = vld [vmem:[#allocation5 + $0xa0] sm:$0xff]
          %v5184 = vld [vmem:[#allocation5 + $0xa8] sm:$0xff]
          %v5185 = vld [vmem:[#allocation5 + $0xb0] sm:$0xff]
          %v5186 = vld [vmem:[#allocation5 + $0xb8] sm:$0xff]
          %v5187 = vld [vmem:[#allocation5 + $0xc0] sm:$0xff]
          %v5188 = vld [vmem:[#allocation5 + $0xc8] sm:$0xff]
          %v5189 = vld [vmem:[#allocation5 + $0xd0] sm:$0xff]
          %v5190 = vld [vmem:[#allocation5 + $0xd8] sm:$0xff]
          %v5191 = vld [vmem:[#allocation5 + $0xe0] sm:$0xff]
          %v5192 = vld [vmem:[#allocation5 + $0xe8] sm:$0xff]
          %v5193 = vld [vmem:[#allocation5 + $0xf0] sm:$0xff]
          %v5194 = vld [vmem:[#allocation5 + $0xf8] sm:$0xff]
          %5196 = vset.pattern.permute.xlu0 0
          %5197 = vperm.xlu0 %5196, %v5131
          %v5198 = vpop.permute.xlu0 %5197
          %5201 = vset.pattern.permute.xlu0 0
          %5202 = vperm.xlu0 %5201, %v5132
          %v5203 = vpop.permute.xlu0 %5202
          %5206 = vset.pattern.permute.xlu0 0
          %5207 = vperm.xlu0 %5206, %v5133
          %v5208 = vpop.permute.xlu0 %5207
          %5211 = vset.pattern.permute.xlu0 0
          %5212 = vperm.xlu0 %5211, %v5134
          %v5213 = vpop.permute.xlu0 %5212
          %5216 = vset.pattern.permute.xlu0 0
          %5217 = vperm.xlu0 %5216, %v5135
          %v5218 = vpop.permute.xlu0 %5217
          %5221 = vset.pattern.permute.xlu0 0
          %5222 = vperm.xlu0 %5221, %v5136
          %v5223 = vpop.permute.xlu0 %5222
          %5226 = vset.pattern.permute.xlu0 0
          %5227 = vperm.xlu0 %5226, %v5137
          %v5228 = vpop.permute.xlu0 %5227
          %5231 = vset.pattern.permute.xlu0 0
          %5232 = vperm.xlu0 %5231, %v5138
          %v5233 = vpop.permute.xlu0 %5232
          %5236 = vset.pattern.permute.xlu0 0
          %5237 = vperm.xlu0 %5236, %v5139
          %v5238 = vpop.permute.xlu0 %5237
          %5241 = vset.pattern.permute.xlu0 0
          %5242 = vperm.xlu0 %5241, %v5140
          %v5243 = vpop.permute.xlu0 %5242
          %5246 = vset.pattern.permute.xlu0 0
          %5247 = vperm.xlu0 %5246, %v5141
          %v5248 = vpop.permute.xlu0 %5247
          %5251 = vset.pattern.permute.xlu0 0
          %5252 = vperm.xlu0 %5251, %v5142
          %v5253 = vpop.permute.xlu0 %5252
          %5256 = vset.pattern.permute.xlu0 0
          %5257 = vperm.xlu0 %5256, %v5143
          %v5258 = vpop.permute.xlu0 %5257
          %5261 = vset.pattern.permute.xlu0 0
          %5262 = vperm.xlu0 %5261, %v5144
          %v5263 = vpop.permute.xlu0 %5262
          %5266 = vset.pattern.permute.xlu0 0
          %5267 = vperm.xlu0 %5266, %v5145
          %v5268 = vpop.permute.xlu0 %5267
          %5271 = vset.pattern.permute.xlu0 0
          %5272 = vperm.xlu0 %5271, %v5146
          %v5273 = vpop.permute.xlu0 %5272
          %5276 = vset.pattern.permute.xlu0 0
          %5277 = vperm.xlu0 %5276, %v5147
          %v5278 = vpop.permute.xlu0 %5277
          %5281 = vset.pattern.permute.xlu0 0
          %5282 = vperm.xlu0 %5281, %v5148
          %v5283 = vpop.permute.xlu0 %5282
          %5286 = vset.pattern.permute.xlu0 0
          %5287 = vperm.xlu0 %5286, %v5149
          %v5288 = vpop.permute.xlu0 %5287
          %5291 = vset.pattern.permute.xlu0 0
          %5292 = vperm.xlu0 %5291, %v5150
          %v5293 = vpop.permute.xlu0 %5292
          %5296 = vset.pattern.permute.xlu0 0
          %5297 = vperm.xlu0 %5296, %v5151
          %v5298 = vpop.permute.xlu0 %5297
          %5301 = vset.pattern.permute.xlu0 0
          %5302 = vperm.xlu0 %5301, %v5152
          %v5303 = vpop.permute.xlu0 %5302
          %5306 = vset.pattern.permute.xlu0 0
          %5307 = vperm.xlu0 %5306, %v5153
          %v5308 = vpop.permute.xlu0 %5307
          %5311 = vset.pattern.permute.xlu0 0
          %5312 = vperm.xlu0 %5311, %v5154
          %v5313 = vpop.permute.xlu0 %5312
          %5316 = vset.pattern.permute.xlu0 0
          %5317 = vperm.xlu0 %5316, %v5155
          %v5318 = vpop.permute.xlu0 %5317
          %5321 = vset.pattern.permute.xlu0 0
          %5322 = vperm.xlu0 %5321, %v5156
          %v5323 = vpop.permute.xlu0 %5322
          %5326 = vset.pattern.permute.xlu0 0
          %5327 = vperm.xlu0 %5326, %v5157
          %v5328 = vpop.permute.xlu0 %5327
          %5331 = vset.pattern.permute.xlu0 0
          %5332 = vperm.xlu0 %5331, %v5158
          %v5333 = vpop.permute.xlu0 %5332
          %5336 = vset.pattern.permute.xlu0 0
          %5337 = vperm.xlu0 %5336, %v5159
          %v5338 = vpop.permute.xlu0 %5337
          %5341 = vset.pattern.permute.xlu0 0
          %5342 = vperm.xlu0 %5341, %v5160
          %v5343 = vpop.permute.xlu0 %5342
          %5346 = vset.pattern.permute.xlu0 0
          %5347 = vperm.xlu0 %5346, %v5161
          %v5348 = vpop.permute.xlu0 %5347
          %5351 = vset.pattern.permute.xlu0 0
          %5352 = vperm.xlu0 %5351, %v5162
          %v5353 = vpop.permute.xlu0 %5352
          %v5355 = vmul.f32 %v5163, %v5198
          %v5356 = vmul.f32 %v5164, %v5203
          %v5357 = vmul.f32 %v5165, %v5208
          %v5358 = vmul.f32 %v5166, %v5213
          %v5359 = vmul.f32 %v5167, %v5218
          %v5360 = vmul.f32 %v5168, %v5223
          %v5361 = vmul.f32 %v5169, %v5228
          %v5362 = vmul.f32 %v5170, %v5233
          %v5363 = vmul.f32 %v5171, %v5238
          %v5364 = vmul.f32 %v5172, %v5243
          %v5365 = vmul.f32 %v5173, %v5248
          %v5366 = vmul.f32 %v5174, %v5253
          %v5367 = vmul.f32 %v5175, %v5258
          %v5368 = vmul.f32 %v5176, %v5263
          %v5369 = vmul.f32 %v5177, %v5268
          %v5370 = vmul.f32 %v5178, %v5273
          %v5371 = vmul.f32 %v5179, %v5278
          %v5372 = vmul.f32 %v5180, %v5283
          %v5373 = vmul.f32 %v5181, %v5288
          %v5374 = vmul.f32 %v5182, %v5293
          %v5375 = vmul.f32 %v5183, %v5298
          %v5376 = vmul.f32 %v5184, %v5303
          %v5377 = vmul.f32 %v5185, %v5308
          %v5378 = vmul.f32 %v5186, %v5313
          %v5379 = vmul.f32 %v5187, %v5318
          %v5380 = vmul.f32 %v5188, %v5323
          %v5381 = vmul.f32 %v5189, %v5328
          %v5382 = vmul.f32 %v5190, %v5333
          %v5383 = vmul.f32 %v5191, %v5338
          %v5384 = vmul.f32 %v5192, %v5343
          %v5385 = vmul.f32 %v5193, %v5348
          %v5386 = vmul.f32 %v5194, %v5353
          %5403 = vrot.lane.b32.xlu0 %v5371, 64
          %v5404 = vpop.permute.xlu0 %5403
          %5405 = vrot.lane.b32.xlu0 %v5372, 64
          %v5406 = vpop.permute.xlu0 %5405
          %5407 = vrot.lane.b32.xlu0 %v5373, 64
          %v5408 = vpop.permute.xlu0 %5407
          %5409 = vrot.lane.b32.xlu0 %v5374, 64
          %v5410 = vpop.permute.xlu0 %5409
          %5411 = vrot.lane.b32.xlu0 %v5375, 64
          %v5412 = vpop.permute.xlu0 %5411
          %5413 = vrot.lane.b32.xlu0 %v5376, 64
          %v5414 = vpop.permute.xlu0 %5413
          %5415 = vrot.lane.b32.xlu0 %v5377, 64
          %v5416 = vpop.permute.xlu0 %5415
          %5417 = vrot.lane.b32.xlu0 %v5378, 64
          %v5418 = vpop.permute.xlu0 %5417
          %5419 = vrot.lane.b32.xlu0 %v5379, 64
          %v5420 = vpop.permute.xlu0 %5419
          %5421 = vrot.lane.b32.xlu0 %v5380, 64
          %v5422 = vpop.permute.xlu0 %5421
          %5423 = vrot.lane.b32.xlu0 %v5381, 64
          %v5424 = vpop.permute.xlu0 %5423
          %5425 = vrot.lane.b32.xlu0 %v5382, 64
          %v5426 = vpop.permute.xlu0 %5425
          %5427 = vrot.lane.b32.xlu0 %v5383, 64
          %v5428 = vpop.permute.xlu0 %5427
          %5429 = vrot.lane.b32.xlu0 %v5384, 64
          %v5430 = vpop.permute.xlu0 %5429
          %5431 = vrot.lane.b32.xlu0 %v5385, 64
          %v5432 = vpop.permute.xlu0 %5431
          %5433 = vrot.lane.b32.xlu0 %v5386, 64
          %v5434 = vpop.permute.xlu0 %5433
          %v5451 = vsel %vm3201, %v5355, %v5404
          %v5452 = vsel %vm3201, %v5356, %v5406
          %v5453 = vsel %vm3201, %v5357, %v5408
          %v5454 = vsel %vm3201, %v5358, %v5410
          %v5455 = vsel %vm3201, %v5359, %v5412
          %v5456 = vsel %vm3201, %v5360, %v5414
          %v5457 = vsel %vm3201, %v5361, %v5416
          %v5458 = vsel %vm3201, %v5362, %v5418
          %v5459 = vsel %vm3201, %v5363, %v5420
          %v5460 = vsel %vm3201, %v5364, %v5422
          %v5461 = vsel %vm3201, %v5365, %v5424
          %v5462 = vsel %vm3201, %v5366, %v5426
          %v5463 = vsel %vm3201, %v5367, %v5428
          %v5464 = vsel %vm3201, %v5368, %v5430
          %v5465 = vsel %vm3201, %v5369, %v5432
          %v5466 = vsel %vm3201, %v5370, %v5434
          %v5467 = vld [vmem:[#allocation19] sm:$0xff]
          %v5468 = vld [vmem:[#allocation19 + $0x8] sm:$0xff]
          %v5469 = vld [vmem:[#allocation19 + $0x10] sm:$0xff]
          %v5470 = vld [vmem:[#allocation19 + $0x18] sm:$0xff]
          %v5471 = vld [vmem:[#allocation19 + $0x20] sm:$0xff]
          %v5472 = vld [vmem:[#allocation19 + $0x28] sm:$0xff]
          %v5473 = vld [vmem:[#allocation19 + $0x30] sm:$0xff]
          %v5474 = vld [vmem:[#allocation19 + $0x38] sm:$0xff]
          %v5475 = vld [vmem:[#allocation19 + $0x40] sm:$0xff]
          %v5476 = vld [vmem:[#allocation19 + $0x48] sm:$0xff]
          %v5477 = vld [vmem:[#allocation19 + $0x50] sm:$0xff]
          %v5478 = vld [vmem:[#allocation19 + $0x58] sm:$0xff]
          %v5479 = vld [vmem:[#allocation19 + $0x60] sm:$0xff]
          %v5480 = vld [vmem:[#allocation19 + $0x68] sm:$0xff]
          %v5481 = vld [vmem:[#allocation19 + $0x70] sm:$0xff]
          %v5482 = vld [vmem:[#allocation19 + $0x78] sm:$0xff]
          %v5483 = vld [vmem:[%s10] sm:$0x1]
          %v5485 = vlaneseq
          %v5486 = vshrl.u32 %v5485, 7
          %v5487 = vsub.s32 0, %v5486
          %v5488 = vrot.slane %v5483, %v5487
          %5490 = vmatprep.subr.mxu0 0.0
          %5491 = vmatpush1.msra.mxu0 %v5467
          %5492 = vmatprep.subr.mxu0 0.0
          %5493 = vmatpush1.msra.mxu0 %v5468
          %5494 = vmatprep.subr.mxu0 0.0
          %5495 = vmatpush1.msra.mxu0 %v5469
          %5496 = vmatprep.subr.mxu0 0.0
          %5497 = vmatpush1.msra.mxu0 %v5470
          %5498 = vmatprep.subr.mxu0 0.0
          %5499 = vmatpush1.msra.mxu0 %v5471
          %5500 = vmatprep.subr.mxu0 0.0
          %5501 = vmatpush1.msra.mxu0 %v5472
          %5502 = vmatprep.subr.mxu0 0.0
          %5503 = vmatpush1.msra.mxu0 %v5473
          %5504 = vmatprep.subr.mxu0 0.0
          %5505 = vmatpush1.msra.mxu0 %v5474
          %5506 = vmatprep.subr.mxu0 0.0
          %5507 = vmatpush1.msra.mxu0 %v5475
          %5508 = vmatprep.subr.mxu0 0.0
          %5509 = vmatpush1.msra.mxu0 %v5476
          %5510 = vmatprep.subr.mxu0 0.0
          %5511 = vmatpush1.msra.mxu0 %v5477
          %5512 = vmatprep.subr.mxu0 0.0
          %5513 = vmatpush1.msra.mxu0 %v5478
          %5514 = vmatprep.subr.mxu0 0.0
          %5515 = vmatpush1.msra.mxu0 %v5479
          %5516 = vmatprep.subr.mxu0 0.0
          %5517 = vmatpush1.msra.mxu0 %v5480
          %5518 = vmatprep.subr.mxu0 0.0
          %5519 = vmatpush1.msra.mxu0 %v5481
          %5520 = vmatprep.subr.mxu0 0.0
          %5521 = vmatpush1.msra.mxu0 %v5482
          %5522 = vmatprep.subr.mxu0 0.0
          %5523 = vmatpush1.msra.mxu0 0.0
          %5524 = vmatprep.subr.mxu0 0.0
          %5525 = vmatpush1.msra.mxu0 0.0
          %5526 = vmatprep.subr.mxu0 0.0
          %5527 = vmatpush1.msra.mxu0 0.0
          %5528 = vmatprep.subr.mxu0 0.0
          %5529 = vmatpush1.msra.mxu0 0.0
          %5530 = vmatprep.subr.mxu0 0.0
          %5531 = vmatpush1.msra.mxu0 0.0
          %5532 = vmatprep.subr.mxu0 0.0
          %5533 = vmatpush1.msra.mxu0 0.0
          %5534 = vmatprep.subr.mxu0 0.0
          %5535 = vmatpush1.msra.mxu0 0.0
          %5536 = vmatprep.subr.mxu0 0.0
          %5537 = vmatpush1.msra.mxu0 0.0
          %5538 = vmatprep.subr.mxu0 0.0
          %5539 = vmatpush1.msra.mxu0 0.0
          %5540 = vmatprep.subr.mxu0 0.0
          %5541 = vmatpush1.msra.mxu0 0.0
          %5542 = vmatprep.subr.mxu0 0.0
          %5543 = vmatpush1.msra.mxu0 0.0
          %5544 = vmatprep.subr.mxu0 0.0
          %5545 = vmatpush1.msra.mxu0 0.0
          %5546 = vmatprep.subr.mxu0 0.0
          %5547 = vmatpush1.msra.mxu0 0.0
          %5548 = vmatprep.subr.mxu0 0.0
          %5549 = vmatpush1.msra.mxu0 0.0
          %5550 = vmatprep.subr.mxu0 0.0
          %5551 = vmatpush1.msra.mxu0 0.0
          %5552 = vmatprep.subr.mxu0 0.0
          %5553 = vmatpush1.msra.mxu0 0.0
          %5554 = vmatprep.mubr.f32.mxu0 0.0
          %5555 = vmatmul.mubr.f32.gmra.mrb[0].mxu0 %v5451
          %v5556 = vpop.f32.mrb[0].mxu0
          %v5557 = vadd.f32 %v5488, %v5556
          %v5558 = vpop.f32.mrb[0].mxu0
          %5559 = vmatprep.mubr.f32.mxu0 0.0
          %5560 = vmatmul.mubr.f32.gmra.mrb[0].mxu0 %v5452
          %v5561 = vpop.f32.mrb[0].mxu0
          %v5562 = vadd.f32 %v5488, %v5561
          %v5563 = vpop.f32.mrb[0].mxu0
          %5564 = vmatprep.mubr.f32.mxu0 0.0
          %5565 = vmatmul.mubr.f32.gmra.mrb[0].mxu0 %v5453
          %v5566 = vpop.f32.mrb[0].mxu0
          %v5567 = vadd.f32 %v5488, %v5566
          %v5568 = vpop.f32.mrb[0].mxu0
          %5569 = vmatprep.mubr.f32.mxu0 0.0
          %5570 = vmatmul.mubr.f32.gmra.mrb[0].mxu0 %v5454
          %v5571 = vpop.f32.mrb[0].mxu0
          %v5572 = vadd.f32 %v5488, %v5571
          %v5573 = vpop.f32.mrb[0].mxu0
          %5574 = vmatprep.mubr.f32.mxu0 0.0
          %5575 = vmatmul.mubr.f32.gmra.mrb[0].mxu0 %v5455
          %v5576 = vpop.f32.mrb[0].mxu0
          %v5577 = vadd.f32 %v5488, %v5576
          %v5578 = vpop.f32.mrb[0].mxu0
          %5579 = vmatprep.mubr.f32.mxu0 0.0
          %5580 = vmatmul.mubr.f32.gmra.mrb[0].mxu0 %v5456
          %v5581 = vpop.f32.mrb[0].mxu0
          %v5582 = vadd.f32 %v5488, %v5581
          %v5583 = vpop.f32.mrb[0].mxu0
          %5584 = vmatprep.mubr.f32.mxu0 0.0
          %5585 = vmatmul.mubr.f32.gmra.mrb[0].mxu0 %v5457
          %v5586 = vpop.f32.mrb[0].mxu0
          %v5587 = vadd.f32 %v5488, %v5586
          %v5588 = vpop.f32.mrb[0].mxu0
          %5589 = vmatprep.mubr.f32.mxu0 0.0
          %5590 = vmatmul.mubr.f32.gmra.mrb[0].mxu0 %v5458
          %v5591 = vpop.f32.mrb[0].mxu0
          %v5592 = vadd.f32 %v5488, %v5591
          %v5593 = vpop.f32.mrb[0].mxu0
          %5594 = vmatprep.mubr.f32.mxu0 0.0
          %5595 = vmatmul.mubr.f32.gmra.mrb[0].mxu0 %v5459
          %v5596 = vpop.f32.mrb[0].mxu0
          %v5597 = vadd.f32 %v5488, %v5596
          %v5598 = vpop.f32.mrb[0].mxu0
          %5599 = vmatprep.mubr.f32.mxu0 0.0
          %5600 = vmatmul.mubr.f32.gmra.mrb[0].mxu0 %v5460
          %v5601 = vpop.f32.mrb[0].mxu0
          %v5602 = vadd.f32 %v5488, %v5601
          %v5603 = vpop.f32.mrb[0].mxu0
          %5604 = vmatprep.mubr.f32.mxu0 0.0
          %5605 = vmatmul.mubr.f32.gmra.mrb[0].mxu0 %v5461
          %v5606 = vpop.f32.mrb[0].mxu0
          %v5607 = vadd.f32 %v5488, %v5606
          %v5608 = vpop.f32.mrb[0].mxu0
          %5609 = vmatprep.mubr.f32.mxu0 0.0
          %5610 = vmatmul.mubr.f32.gmra.mrb[0].mxu0 %v5462
          %v5611 = vpop.f32.mrb[0].mxu0
          %v5612 = vadd.f32 %v5488, %v5611
          %v5613 = vpop.f32.mrb[0].mxu0
          %5614 = vmatprep.mubr.f32.mxu0 0.0
          %5615 = vmatmul.mubr.f32.gmra.mrb[0].mxu0 %v5463
          %v5616 = vpop.f32.mrb[0].mxu0
          %v5617 = vadd.f32 %v5488, %v5616
          %v5618 = vpop.f32.mrb[0].mxu0
          %5619 = vmatprep.mubr.f32.mxu0 0.0
          %5620 = vmatmul.mubr.f32.gmra.mrb[0].mxu0 %v5464
          %v5621 = vpop.f32.mrb[0].mxu0
          %v5622 = vadd.f32 %v5488, %v5621
          %v5623 = vpop.f32.mrb[0].mxu0
          %5624 = vmatprep.mubr.f32.mxu0 0.0
          %5625 = vmatmul.mubr.f32.gmra.mrb[0].mxu0 %v5465
          %v5626 = vpop.f32.mrb[0].mxu0
          %v5627 = vadd.f32 %v5488, %v5626
          %v5628 = vpop.f32.mrb[0].mxu0
          %5629 = vmatprep.mubr.f32.mxu0 0.0
          %5630 = vmatmul.mubr.f32.gmra.mrb[0].mxu0 %v5466
          %v5631 = vpop.f32.mrb[0].mxu0
          %v5632 = vadd.f32 %v5488, %v5631
          %v5633 = vpop.f32.mrb[0].mxu0
          %5634 = vdwg.mxu0
          %5635 = vst [vmem:[%s441] sm:$0xff] %v5557
          %5636 = vst [vmem:[%s441 + $0x8] sm:$0xff] %v5562
          %5637 = vst [vmem:[%s441 + $0x10] sm:$0xff] %v5567
          %5638 = vst [vmem:[%s441 + $0x18] sm:$0xff] %v5572
          %5639 = vst [vmem:[%s441 + $0x20] sm:$0xff] %v5577
          %5640 = vst [vmem:[%s441 + $0x28] sm:$0xff] %v5582
          %5641 = vst [vmem:[%s441 + $0x30] sm:$0xff] %v5587
          %5642 = vst [vmem:[%s441 + $0x38] sm:$0xff] %v5592
          %5643 = vst [vmem:[%s441 + $0x40] sm:$0xff] %v5597
          %5644 = vst [vmem:[%s441 + $0x48] sm:$0xff] %v5602
          %5645 = vst [vmem:[%s441 + $0x50] sm:$0xff] %v5607
          %5646 = vst [vmem:[%s441 + $0x58] sm:$0xff] %v5612
          %5647 = vst [vmem:[%s441 + $0x60] sm:$0xff] %v5617
          %5648 = vst [vmem:[%s441 + $0x68] sm:$0xff] %v5622
          %5649 = vst [vmem:[%s441 + $0x70] sm:$0xff] %v5627
          %5650 = vst [vmem:[%s441 + $0x78] sm:$0xff] %v5632
        $region88: #{tpu_custom_call.1} parent=55 // pred_fallthru
          _
        %s5651 = sand.u32 %s260, 1
        %s5652 = scalar_lea.sflag [#allocation13], %s5651
        %s5653 = sand.u32 %s260, 1
        %s5654 = smul.addr %s5653, 128
        %s5655 = scalar_lea.vmem [#allocation20], %s5654
        // Predicated region
        $region89: #{tpu_custom_call.1} parent=55 // pred_check
          %p5656 = pneg %p270
        $region90: #{tpu_custom_call.1} parent=55 // pred_check_branch
          %5658 = sbr.rel (%p5656) target = $region92
        $region91: #{tpu_custom_call.1} parent=55 // pred_region
          %s5659 = sld [smem:[#allocation9 + %s43]]
          %s5660 = smul.u32 16, %s5659
          %s5662 = ssub.s32 2048, 2048
          %5663 = vsyncadd %s5652, %s5662
          %s5664 = smul.addr %s42, 64
          %s5665 = sadd.s32 %s5660, %s5664
          %s5666 = smul.addr %s5665, 128
          %s5667 = scalar_lea.hbm %s11, %s5666
          %s5668 = sshll.u32 %s5655, 4
          %s5669 = int_to_ptr.vmem [resolvable:$true] %s5668
          %5674 = dma.vmem_to_hbm [thread:$0]  %s5669, 2048, %s5667, %s5652, 128, 128, 8
        $region92: #{tpu_custom_call.1} parent=55 // pred_fallthru
          _
      $region56: #{tpu_custom_call.1} parent=5 // pred_fallthru
        _
      %p5675 = scmp.le.s32.totalorder 2, %s33
      // Predicated region
      $region93: #{tpu_custom_call.1} parent=5 // pred_check
        %p5676 = pneg %p5675
      $region94: #{tpu_custom_call.1} parent=5 // pred_check_branch
        %5678 = sbr.rel (%p5676) target = $region96
      $region95: #{tpu_custom_call.1} parent=5 // pred_region
        %s5679 = ssub.s32 %s33, 2
        // Predicated region
        $region97: #{tpu_custom_call.1} parent=95 // pred_check
          %p5680 = pneg %p276
        $region98: #{tpu_custom_call.1} parent=95 // pred_check_branch
          %5682 = sbr.rel (%p5680) target = $region100
        $region99: #{tpu_custom_call.1} parent=95 // pred_region
          %s5683 = sand.u32 %s261, 1
          %s5684 = scalar_lea.sflag [#allocation13], %s5683
          %s5685 = sand.u32 %s261, 1
          %s5686 = smul.addr %s5685, 128
          %s5687 = scalar_lea.vmem [#allocation20], %s5686
          %5688 = dma.done %s5684, 2048
        $region100: #{tpu_custom_call.1} parent=95 // pred_fallthru
          _
      $region96: #{tpu_custom_call.1} parent=5 // pred_fallthru
        _
    $region6: #{tpu_custom_call.1} parent=1 // loop_footer
      %s37 = sadd.s32 1, %s33
    $region7: #{tpu_custom_call.1} parent=1 // loop_footer_branch
      %32 = sbr.rel target = $region3
    $region8: #{tpu_custom_call.1} parent=1 // loop_exit
      _
    %5689 = vsyncpa [#allocation12], 1
    %s5690 = scalar_lea.sflag [#allocation12], 1
    %5691 = vsyncpa %s5690, 1
    %5692 = vsyncpa [#allocation15], 1
    %5693 = vsyncpa [#allocation18], 1
    %5694 = vsyncpa [#allocation13], 1
    %s5695 = scalar_lea.sflag [#allocation13], 1
    %5696 = vsyncpa %s5695, 1

</llo_original>
